<compile_context>
chip_gen: v7x
topology: tpu7x:2x2x1
jax: 0.10.0
libtpu: 0.0.40
codegen_flags: <defaults>
</compile_context>

<pallas_src>
import functools

import jax
import jax.numpy as jnp
from jax.experimental import pallas as pl
from jax.experimental.pallas import tpu as pltpu

LATENT_DIM = 100
LATENT_PAD = 128                      # lane-aligned K for layer 1
DIMS = [LATENT_DIM, 256, 512, 1024, 1024]


def _mlp_kernel(z_ref,
                w1_ref, b1_ref,
                w2_ref, b2_ref,
                w3_ref, b3_ref,
                w4_ref, b4_ref,
                o_ref):
    # bf16 MXU matmuls with f32 accumulation; bias/ReLU in f32, then cast
    # back to bf16 to feed the next MXU pass.
    h = jnp.dot(z_ref[...], w1_ref[...], preferred_element_type=jnp.float32)
    h = jnp.maximum(h + b1_ref[...], 0.0).astype(jnp.bfloat16)
    h = jnp.dot(h, w2_ref[...], preferred_element_type=jnp.float32)
    h = jnp.maximum(h + b2_ref[...], 0.0).astype(jnp.bfloat16)
    h = jnp.dot(h, w3_ref[...], preferred_element_type=jnp.float32)
    h = jnp.maximum(h + b3_ref[...], 0.0).astype(jnp.bfloat16)
    h = jnp.dot(h, w4_ref[...], preferred_element_type=jnp.float32)
    o_ref[...] = (h + b4_ref[...]).astype(o_ref.dtype)


def _choose_tile_b(batch):
    """Largest MXU-friendly batch tile <= batch, preferring >=2 grid steps
    (v7x megacore) whenever the split keeps tiles >= 128 rows."""
    tile = 8
    for t in (512, 256, 128, 64, 32, 16, 8):
        if batch >= t:
            tile = t
            break
    if tile >= 256 and pl.cdiv(batch, tile) < 2:
        tile //= 2                    # grid becomes >=2 with tiles >=128
    return tile


def _vmem_budget_bytes(tile_b, out_bytes):
    """Explicit scoped-VMEM budget: resident bf16 weights (single-buffered),
    double-buffered z / output tiles, f32+bf16 layer intermediates, plus
    headroom for compiler scratch.  Stays well under v7x's 64 MiB even at
    tile_b=512 (~24 MiB)."""
    w_bytes = sum(di * do for di, do in zip(DIMS[:-1], DIMS[1:])) * 2  # bf16
    w_bytes += (LATENT_PAD - LATENT_DIM) * DIMS[1] * 2                 # W1 pad
    b_bytes = sum(DIMS[1:]) * 4                                        # f32
    in_tile = tile_b * LATENT_PAD * 2                                  # bf16
    out_tile = tile_b * DIMS[-1] * out_bytes
    inter = tile_b * sum(DIMS[1:4]) * (4 + 2)     # f32 acc + bf16 recast
    inter += tile_b * DIMS[-1] * 4                # final f32 acc
    total = w_bytes + b_bytes + 2 * in_tile + 2 * out_tile + inter
    return int(total + (8 << 20))                 # headroom


def prepare_params(params):
    """One-time conversion (call OUTSIDE the per-step jit): pad W1's K dim to
    128, cast weights to bf16 (MXU-native) and biases to f32.  Returns a flat
    tuple (w1, b1, ..., w4, b4) ready to feed to the kernel."""
    flat = []
    for li, (w, b) in enumerate(params):
        w = jnp.asarray(w, jnp.float32)
        b = jnp.asarray(b, jnp.float32).reshape(1, -1)
        if li == 0:
            w = jnp.pad(w, ((0, LATENT_PAD - LATENT_DIM), (0, 0)))
        flat.append(w.astype(jnp.bfloat16))
        flat.append(b)
    return tuple(flat)


@functools.partial(jax.jit, static_argnames=("tile_b",))
def _generator_forward_impl(z, flat_params, *, tile_b):
    B, D = z.shape
    assert D == LATENT_DIM
    out_dim = DIMS[-1]
    out_dtype = jnp.float32           # match the PyTorch module's output dtype

    # Pad batch to a tile multiple and latent dim to 128; cast activations to
    # bf16.  (Zero padding contributes nothing to the matmuls.)
    padded_b = pl.cdiv(B, tile_b) * tile_b
    z_p = jnp.pad(z, ((0, padded_b - B), (0, LATENT_PAD - D))).astype(jnp.bfloat16)

    weight_mode = pl.Buffered(1)      # constant blocks: no double-buffering
    in_specs = [pl.BlockSpec((tile_b, LATENT_PAD), lambda i: (i, 0))]
    for arr in flat_params:
        in_specs.append(pl.BlockSpec(arr.shape, lambda i: (0, 0),
                                     pipeline_mode=weight_mode))

    out_specs = pl.BlockSpec((tile_b, out_dim), lambda i: (i, 0))

    flops = 2 * padded_b * sum(di * do for di, do in zip(DIMS[:-1], DIMS[1:]))
    param_bytes = sum(int(a.size) * a.dtype.itemsize for a in flat_params)
    bytes_accessed = (param_bytes
                      + padded_b * (LATENT_PAD * 2 + out_dim * jnp.dtype(out_dtype).itemsize))

    out = pl.pallas_call(
        _mlp_kernel,
        out_shape=jax.ShapeDtypeStruct((padded_b, out_dim), out_dtype),
        grid=(padded_b // tile_b,),
        in_specs=in_specs,
        out_specs=out_specs,
        compiler_params=pltpu.CompilerParams(
            dimension_semantics=("parallel",),
            vmem_limit_bytes=_vmem_budget_bytes(
                tile_b, jnp.dtype(out_dtype).itemsize)),
        cost_estimate=pl.CostEstimate(
            flops=flops, transcendentals=0, bytes_accessed=bytes_accessed),
    )(z_p, *flat_params)
    return out[:B]


def generator_forward(z, prepared_params, *, tile_b=None):
    """prepared_params = prepare_params([(w1, b1), ..., (w4, b4)]).
    wi: (in, out), bi: (out,) or (1, out)."""
    if tile_b is None:
        tile_b = _choose_tile_b(z.shape[0])
    return _generator_forward_impl(z, prepared_params, tile_b=tile_b)


def init_params(key):
    """Mimics torch.nn.Linear default init: U(-1/sqrt(fan_in), 1/sqrt(fan_in))."""
    params = []
    for idx, (d_in, d_out) in enumerate(zip(DIMS[:-1], DIMS[1:])):
        kw, kb = jax.random.split(jax.random.fold_in(key, idx))
        bound = 1.0 / (float(d_in) ** 0.5)
        w = jax.random.uniform(kw, (d_in, d_out), jnp.float32, -bound, bound)
        b = jax.random.uniform(kb, (1, d_out), jnp.float32, -bound, bound)
        params.append((w, b))
    return params


def reference_forward(z, params):
    h = z
    for i, (w, b) in enumerate(params):
        h = h @ w + b
        if i < len(params) - 1:
            h = jnp.maximum(h, 0.0)
    return h


if __name__ == "__main__":
    key = jax.random.PRNGKey(0)
    k_params, k_z = jax.random.split(key)

    params = init_params(k_params)
    prepared = prepare_params(params)     # one-time bf16 cast / W1 pad

    B = 8
    z = jax.random.normal(k_z, (B, LATENT_DIM), jnp.float32)

    out = generator_forward(z, prepared)
    out = jax.block_until_ready(out)

    ref = reference_forward(z, params)
    assert out.shape == (B, DIMS[-1])
    assert out.dtype == jnp.float32
    # bf16 matmul inputs (f32 accumulation) -> loosened tolerance vs f32 ref.
    assert jnp.allclose(out, ref, atol=3e-2, rtol=3e-2), "mismatch vs reference"

    print("KERNEL_OK")
</pallas_src>

<mosaic_0001>
module attributes {stable_mosaic.version = 11 : i64} {
  func.func @_mlp_kernel(%arg0: i32, %arg1: memref<8x128xbf16, #tpu.memory_space<vmem>>, %arg2: memref<128x256xbf16, #tpu.memory_space<vmem>>, %arg3: memref<1x256xf32, #tpu.memory_space<vmem>>, %arg4: memref<256x512xbf16, #tpu.memory_space<vmem>>, %arg5: memref<1x512xf32, #tpu.memory_space<vmem>>, %arg6: memref<512x1024xbf16, #tpu.memory_space<vmem>>, %arg7: memref<1x1024xf32, #tpu.memory_space<vmem>>, %arg8: memref<1024x1024xbf16, #tpu.memory_space<vmem>>, %arg9: memref<1x1024xf32, #tpu.memory_space<vmem>>, %arg10: memref<8x1024xf32, #tpu.memory_space<vmem>>) attributes {dimension_semantics = [#tpu.dimension_semantics<parallel>], iteration_bounds = array<i64: 1>, scalar_prefetch = 0 : i64, scratch_operands = 0 : i64, tpu.core_type = #tpu.core_type<tc>, window_params = [{transform_indices = @transform_0, window_bounds = array<i64: 8, 128>}, {pipeline_mode = #tpu.pipeline_mode<synchronous>, transform_indices = @transform_1, window_bounds = array<i64: 128, 256>}, {pipeline_mode = #tpu.pipeline_mode<synchronous>, transform_indices = @transform_2, window_bounds = array<i64: 1, 256>}, {pipeline_mode = #tpu.pipeline_mode<synchronous>, transform_indices = @transform_3, window_bounds = array<i64: 256, 512>}, {pipeline_mode = #tpu.pipeline_mode<synchronous>, transform_indices = @transform_4, window_bounds = array<i64: 1, 512>}, {pipeline_mode = #tpu.pipeline_mode<synchronous>, transform_indices = @transform_5, window_bounds = array<i64: 512, 1024>}, {pipeline_mode = #tpu.pipeline_mode<synchronous>, transform_indices = @transform_6, window_bounds = array<i64: 1, 1024>}, {pipeline_mode = #tpu.pipeline_mode<synchronous>, transform_indices = @transform_7, window_bounds = array<i64: 1024, 1024>}, {pipeline_mode = #tpu.pipeline_mode<synchronous>, transform_indices = @transform_8, window_bounds = array<i64: 1, 1024>}, {transform_indices = @transform_9, window_bounds = array<i64: 8, 1024>}]} {
    %c0 = arith.constant 0 : index
    %c0_0 = arith.constant 0 : index
    %0 = vector.load %arg1[%c0, %c0_0] : memref<8x128xbf16, #tpu.memory_space<vmem>>, vector<8x128xbf16>
    %c0_1 = arith.constant 0 : index
    %c0_2 = arith.constant 0 : index
    %1 = vector.load %arg2[%c0_1, %c0_2] : memref<128x256xbf16, #tpu.memory_space<vmem>>, vector<128x256xbf16>
    %cst = arith.constant dense<0.000000e+00> : vector<8x256xf32>
    %2 = tpu.matmul %0, %1, %cst {dimension_numbers = #tpu.dot_dimension_numbers<[1], [0], [0], [1], [0, 0, 1, 1], [], []>} : vector<8x128xbf16>, vector<128x256xbf16>, vector<8x256xf32> -> vector<8x256xf32>
    %c0_3 = arith.constant 0 : index
    %c0_4 = arith.constant 0 : index
    %3 = vector.load %arg3[%c0_3, %c0_4] : memref<1x256xf32, #tpu.memory_space<vmem>>, vector<1x256xf32>
    %4 = vector.broadcast %3 : vector<1x256xf32> to vector<8x256xf32>
    %5 = arith.addf %2, %4 : vector<8x256xf32>
    %cst_5 = arith.constant 0.000000e+00 : f32
    %6 = vector.broadcast %cst_5 : f32 to vector<8x256xf32>
    %7 = arith.maximumf %5, %6 : vector<8x256xf32>
    %8 = arith.truncf %7 : vector<8x256xf32> to vector<8x256xbf16>
    %c0_6 = arith.constant 0 : index
    %c0_7 = arith.constant 0 : index
    %9 = vector.load %arg4[%c0_6, %c0_7] : memref<256x512xbf16, #tpu.memory_space<vmem>>, vector<256x512xbf16>
    %cst_8 = arith.constant dense<0.000000e+00> : vector<8x512xf32>
    %10 = tpu.matmul %8, %9, %cst_8 {dimension_numbers = #tpu.dot_dimension_numbers<[1], [0], [0], [1], [0, 0, 1, 1], [], []>} : vector<8x256xbf16>, vector<256x512xbf16>, vector<8x512xf32> -> vector<8x512xf32>
    %c0_9 = arith.constant 0 : index
    %c0_10 = arith.constant 0 : index
    %11 = vector.load %arg5[%c0_9, %c0_10] : memref<1x512xf32, #tpu.memory_space<vmem>>, vector<1x512xf32>
    %12 = vector.broadcast %11 : vector<1x512xf32> to vector<8x512xf32>
    %13 = arith.addf %10, %12 : vector<8x512xf32>
    %cst_11 = arith.constant 0.000000e+00 : f32
    %14 = vector.broadcast %cst_11 : f32 to vector<8x512xf32>
    %15 = arith.maximumf %13, %14 : vector<8x512xf32>
    %16 = arith.truncf %15 : vector<8x512xf32> to vector<8x512xbf16>
    %c0_12 = arith.constant 0 : index
    %c0_13 = arith.constant 0 : index
    %17 = vector.load %arg6[%c0_12, %c0_13] : memref<512x1024xbf16, #tpu.memory_space<vmem>>, vector<512x1024xbf16>
    %cst_14 = arith.constant dense<0.000000e+00> : vector<8x1024xf32>
    %18 = tpu.matmul %16, %17, %cst_14 {dimension_numbers = #tpu.dot_dimension_numbers<[1], [0], [0], [1], [0, 0, 1, 1], [], []>} : vector<8x512xbf16>, vector<512x1024xbf16>, vector<8x1024xf32> -> vector<8x1024xf32>
    %c0_15 = arith.constant 0 : index
    %c0_16 = arith.constant 0 : index
    %19 = vector.load %arg7[%c0_15, %c0_16] : memref<1x1024xf32, #tpu.memory_space<vmem>>, vector<1x1024xf32>
    %20 = vector.broadcast %19 : vector<1x1024xf32> to vector<8x1024xf32>
    %21 = arith.addf %18, %20 : vector<8x1024xf32>
    %cst_17 = arith.constant 0.000000e+00 : f32
    %22 = vector.broadcast %cst_17 : f32 to vector<8x1024xf32>
    %23 = arith.maximumf %21, %22 : vector<8x1024xf32>
    %24 = arith.truncf %23 : vector<8x1024xf32> to vector<8x1024xbf16>
    %c0_18 = arith.constant 0 : index
    %c0_19 = arith.constant 0 : index
    %25 = vector.load %arg8[%c0_18, %c0_19] : memref<1024x1024xbf16, #tpu.memory_space<vmem>>, vector<1024x1024xbf16>
    %cst_20 = arith.constant dense<0.000000e+00> : vector<8x1024xf32>
    %26 = tpu.matmul %24, %25, %cst_20 {dimension_numbers = #tpu.dot_dimension_numbers<[1], [0], [0], [1], [0, 0, 1, 1], [], []>} : vector<8x1024xbf16>, vector<1024x1024xbf16>, vector<8x1024xf32> -> vector<8x1024xf32>
    %c0_21 = arith.constant 0 : index
    %c0_22 = arith.constant 0 : index
    %27 = vector.load %arg9[%c0_21, %c0_22] : memref<1x1024xf32, #tpu.memory_space<vmem>>, vector<1x1024xf32>
    %28 = vector.broadcast %27 : vector<1x1024xf32> to vector<8x1024xf32>
    %29 = arith.addf %26, %28 : vector<8x1024xf32>
    %c0_23 = arith.constant 0 : index
    %c0_24 = arith.constant 0 : index
    %30 = vector.load %arg10[%c0_23, %c0_24] : memref<8x1024xf32, #tpu.memory_space<vmem>>, vector<8x1024xf32>
    tpu.vector_store %arg10[%c0_23, %c0_24], %29 {strides = array<i32>} : memref<8x1024xf32, #tpu.memory_space<vmem>>, vector<8x1024xf32>,
    return
  }
  func.func @transform_0(%arg0: i32) -> (i32, i32) {
    %c0_i32 = arith.constant 0 : i32
    %c0_i32_0 = arith.constant 0 : i32
    return %arg0, %c0_i32 : i32, i32
  }
  func.func @transform_1(%arg0: i32) -> (i32, i32) {
    %c0_i32 = arith.constant 0 : i32
    %c0_i32_0 = arith.constant 0 : i32
    %c0_i32_1 = arith.constant 0 : i32
    return %c0_i32, %c0_i32_0 : i32, i32
  }
  func.func @transform_2(%arg0: i32) -> (i32, i32) {
    %c0_i32 = arith.constant 0 : i32
    %c0_i32_0 = arith.constant 0 : i32
    %c0_i32_1 = arith.constant 0 : i32
    return %c0_i32, %c0_i32_0 : i32, i32
  }
  func.func @transform_3(%arg0: i32) -> (i32, i32) {
    %c0_i32 = arith.constant 0 : i32
    %c0_i32_0 = arith.constant 0 : i32
    %c0_i32_1 = arith.constant 0 : i32
    return %c0_i32, %c0_i32_0 : i32, i32
  }
  func.func @transform_4(%arg0: i32) -> (i32, i32) {
    %c0_i32 = arith.constant 0 : i32
    %c0_i32_0 = arith.constant 0 : i32
    %c0_i32_1 = arith.constant 0 : i32
    return %c0_i32, %c0_i32_0 : i32, i32
  }
  func.func @transform_5(%arg0: i32) -> (i32, i32) {
    %c0_i32 = arith.constant 0 : i32
    %c0_i32_0 = arith.constant 0 : i32
    %c0_i32_1 = arith.constant 0 : i32
    return %c0_i32, %c0_i32_0 : i32, i32
  }
  func.func @transform_6(%arg0: i32) -> (i32, i32) {
    %c0_i32 = arith.constant 0 : i32
    %c0_i32_0 = arith.constant 0 : i32
    %c0_i32_1 = arith.constant 0 : i32
    return %c0_i32, %c0_i32_0 : i32, i32
  }
  func.func @transform_7(%arg0: i32) -> (i32, i32) {
    %c0_i32 = arith.constant 0 : i32
    %c0_i32_0 = arith.constant 0 : i32
    %c0_i32_1 = arith.constant 0 : i32
    return %c0_i32, %c0_i32_0 : i32, i32
  }
  func.func @transform_8(%arg0: i32) -> (i32, i32) {
    %c0_i32 = arith.constant 0 : i32
    %c0_i32_0 = arith.constant 0 : i32
    %c0_i32_1 = arith.constant 0 : i32
    return %c0_i32, %c0_i32_0 : i32, i32
  }
  func.func @transform_9(%arg0: i32) -> (i32, i32) {
    %c0_i32 = arith.constant 0 : i32
    %c0_i32_0 = arith.constant 0 : i32
    return %arg0, %c0_i32 : i32, i32
  }
}

</mosaic_0001>

<llo_original>
// kernel: _generator_forward_impl.1
$region0: #{_generator_forward_impl.1}
  #allocation0 [shape = 'u32[]', space=smem, size = 0x4, offset = 0x4, fixed_abs, tag = 'smem constant byte address 0x4 - core index']
  #allocation1 [shape = 'u32[144,128]{1,0:T(1,128)}', space=vmem, size = 0x12000, scoped, tag = 'internal scratch']
  %s0 = inlined_call_operand.vmem [shape: bf16[8,128], index: 0, kind: input, shape index: {}]
  %s1 = inlined_call_operand.hbm [shape: bf16[128,256], index: 1, kind: input, shape index: {}]
  %s2 = inlined_call_operand.hbm [shape: f32[1,256], index: 2, kind: input, shape index: {}]
  %s3 = inlined_call_operand.hbm [shape: bf16[256,512], index: 3, kind: input, shape index: {}]
  %s4 = inlined_call_operand.hbm [shape: f32[1,512], index: 4, kind: input, shape index: {}]
  %s5 = inlined_call_operand.hbm [shape: bf16[512,1024], index: 5, kind: input, shape index: {}]
  %s6 = inlined_call_operand.hbm [shape: f32[1,1024], index: 6, kind: input, shape index: {}]
  %s7 = inlined_call_operand.hbm [shape: bf16[1024,1024], index: 7, kind: input, shape index: {}]
  %s8 = inlined_call_operand.hbm [shape: f32[1,1024], index: 8, kind: input, shape index: {}]
  %s9 = inlined_call_operand.hbm [shape: f32[8,1024], index: 9, kind: output, shape index: {}]
  %s10 = sld [smem:[#allocation0]]
  $region78: #{_generator_forward_impl.1} parent=0
    _
  %s12 = ssub.s32 1, %s10
  %s13 = scalar_select 0, %s12, %s10
  $region1: #{_generator_forward_impl.1} parent=0
    #allocation2 [shape = 'u8[65536]{0}', space=vmem, size = 0x10000, scoped, tag = 'input window, operand 1, single buffered']
    #allocation3 [shape = 's32[1]{0}', space=sflag, size = 0x4, scoped, tag = 'scoped memory for _generator_forward_impl.1']
    #allocation4 [shape = 's32[1]{0}', space=sflag, size = 0x4, scoped, tag = 'scoped memory for _generator_forward_impl.1']
    #allocation5 [shape = 'u8[1024]{0}', space=vmem, size = 0x400, scoped, tag = 'input window, operand 2, single buffered']
    #allocation6 [shape = 's32[1]{0}', space=sflag, size = 0x4, scoped, tag = 'scoped memory for _generator_forward_impl.1']
    #allocation7 [shape = 'u8[262144]{0}', space=vmem, size = 0x40000, scoped, tag = 'input window, operand 3, single buffered']
    #allocation8 [shape = 'u8[2048]{0}', space=vmem, size = 0x800, scoped, tag = 'input window, operand 4, single buffered']
    #allocation9 [shape = 's32[1]{0}', space=sflag, size = 0x4, scoped, tag = 'scoped memory for _generator_forward_impl.1']
    #allocation10 [shape = 'u8[1048576]{0}', space=vmem, size = 0x100000, scoped, tag = 'input window, operand 5, single buffered']
    #allocation11 [shape = 'u8[4096]{0}', space=vmem, size = 0x1000, scoped, tag = 'input window, operand 6, single buffered']
    #allocation12 [shape = 's32[1]{0}', space=sflag, size = 0x4, scoped, tag = 'scoped memory for _generator_forward_impl.1']
    #allocation13 [shape = 'u8[2097152]{0}', space=vmem, size = 0x200000, scoped, tag = 'input window, operand 7, single buffered']
    #allocation14 [shape = 'u8[4096]{0}', space=vmem, size = 0x1000, scoped, tag = 'input window, operand 8, single buffered']
    #allocation15 [shape = 's32[1]{0}', space=sflag, size = 0x4, scoped, tag = 'scoped memory for _generator_forward_impl.1']
    #allocation16 [shape = 'u8[32768]{0}', space=vmem, size = 0x8000, scoped, tag = 'output window, operand 0, single buffered']
    %14 = vsyncpa [#allocation3], 0
    %15 = vsyncpa [#allocation6], 0
    %16 = vsyncpa [#allocation9], 0
    %17 = vsyncpa [#allocation12], 0
    %18 = vsyncpa [#allocation15], 0
    %19 = vsyncpa [#allocation4], 0
    // Predicated region
    $region2: #{_generator_forward_impl.1} parent=1 // pred_check
      _
    $region3: #{_generator_forward_impl.1} parent=1 // pred_check_branch
      %21 = sbr.rel (0) target = $region5
    $region4: #{_generator_forward_impl.1} parent=1 // pred_region
      _
    $region5: #{_generator_forward_impl.1} parent=1 // pred_fallthru
      _
    // Predicated region
    $region6: #{_generator_forward_impl.1} parent=1 // pred_check
      _
    $region7: #{_generator_forward_impl.1} parent=1 // pred_check_branch
      %23 = sbr.rel (0) target = $region9
    $region8: #{_generator_forward_impl.1} parent=1 // pred_region
      %s25 = ssub.s32 2048, 2048
      %26 = vsyncadd [#allocation3], %s25
      %s27 = sshll.u32 [#allocation2], 4
      %s28 = int_to_ptr.vmem [resolvable:$true] %s27
      %33 = dma.hbm_to_vmem [thread:$0]  %s1, 2048, %s28, [#allocation3], 128, 128, 8
    $region9: #{_generator_forward_impl.1} parent=1 // pred_fallthru
      _
    // Predicated region
    $region10: #{_generator_forward_impl.1} parent=1 // pred_check
      _
    $region11: #{_generator_forward_impl.1} parent=1 // pred_check_branch
      %35 = sbr.rel (0) target = $region13
    $region12: #{_generator_forward_impl.1} parent=1 // pred_region
      %s37 = ssub.s32 32, 32
      %38 = vsyncadd [#allocation6], %s37
      %s40 = sshll.u32 [#allocation5], 4
      %s41 = int_to_ptr.vmem [resolvable:$true] %s40
      %43 = dma.hbm_to_vmem [thread:$0]  %s2, 32, %s41, [#allocation6]
    $region13: #{_generator_forward_impl.1} parent=1 // pred_fallthru
      _
    // Predicated region
    $region14: #{_generator_forward_impl.1} parent=1 // pred_check
      _
    $region15: #{_generator_forward_impl.1} parent=1 // pred_check_branch
      %45 = sbr.rel (0) target = $region17
    $region16: #{_generator_forward_impl.1} parent=1 // pred_region
      %s47 = ssub.s32 8192, 8192
      %48 = vsyncadd [#allocation6], %s47
      %s49 = sshll.u32 [#allocation7], 4
      %s50 = int_to_ptr.vmem [resolvable:$true] %s49
      %55 = dma.hbm_to_vmem [thread:$0]  %s3, 8192, %s50, [#allocation6], 256, 256, 16
    $region17: #{_generator_forward_impl.1} parent=1 // pred_fallthru
      _
    // Predicated region
    $region18: #{_generator_forward_impl.1} parent=1 // pred_check
      _
    $region19: #{_generator_forward_impl.1} parent=1 // pred_check_branch
      %57 = sbr.rel (0) target = $region21
    $region20: #{_generator_forward_impl.1} parent=1 // pred_region
      %s59 = ssub.s32 64, 64
      %60 = vsyncadd [#allocation9], %s59
      %s62 = sshll.u32 [#allocation8], 4
      %s63 = int_to_ptr.vmem [resolvable:$true] %s62
      %65 = dma.hbm_to_vmem [thread:$0]  %s4, 64, %s63, [#allocation9]
    $region21: #{_generator_forward_impl.1} parent=1 // pred_fallthru
      _
    // Predicated region
    $region22: #{_generator_forward_impl.1} parent=1 // pred_check
      _
    $region23: #{_generator_forward_impl.1} parent=1 // pred_check_branch
      %67 = sbr.rel (0) target = $region25
    $region24: #{_generator_forward_impl.1} parent=1 // pred_region
      %s69 = ssub.s32 32768, 32768
      %70 = vsyncadd [#allocation9], %s69
      %s71 = sshll.u32 [#allocation10], 4
      %s72 = int_to_ptr.vmem [resolvable:$true] %s71
      %77 = dma.hbm_to_vmem [thread:$0]  %s5, 32768, %s72, [#allocation9], 512, 512, 32
    $region25: #{_generator_forward_impl.1} parent=1 // pred_fallthru
      _
    // Predicated region
    $region26: #{_generator_forward_impl.1} parent=1 // pred_check
      _
    $region27: #{_generator_forward_impl.1} parent=1 // pred_check_branch
      %79 = sbr.rel (0) target = $region29
    $region28: #{_generator_forward_impl.1} parent=1 // pred_region
      %s81 = ssub.s32 128, 128
      %82 = vsyncadd [#allocation12], %s81
      %s84 = sshll.u32 [#allocation11], 4
      %s85 = int_to_ptr.vmem [resolvable:$true] %s84
      %87 = dma.hbm_to_vmem [thread:$0]  %s6, 128, %s85, [#allocation12]
    $region29: #{_generator_forward_impl.1} parent=1 // pred_fallthru
      _
    // Predicated region
    $region30: #{_generator_forward_impl.1} parent=1 // pred_check
      _
    $region31: #{_generator_forward_impl.1} parent=1 // pred_check_branch
      %89 = sbr.rel (0) target = $region33
    $region32: #{_generator_forward_impl.1} parent=1 // pred_region
      %s91 = ssub.s32 65536, 65536
      %92 = vsyncadd [#allocation12], %s91
      %s93 = sshll.u32 [#allocation13], 4
      %s94 = int_to_ptr.vmem [resolvable:$true] %s93
      %99 = dma.hbm_to_vmem [thread:$0]  %s7, 65536, %s94, [#allocation12], 512, 512, 32
    $region33: #{_generator_forward_impl.1} parent=1 // pred_fallthru
      _
    // Predicated region
    $region34: #{_generator_forward_impl.1} parent=1 // pred_check
      _
    $region35: #{_generator_forward_impl.1} parent=1 // pred_check_branch
      %101 = sbr.rel (0) target = $region37
    $region36: #{_generator_forward_impl.1} parent=1 // pred_region
      %s103 = ssub.s32 128, 128
      %104 = vsyncadd [#allocation15], %s103
      %s106 = sshll.u32 [#allocation14], 4
      %s107 = int_to_ptr.vmem [resolvable:$true] %s106
      %109 = dma.hbm_to_vmem [thread:$0]  %s8, 128, %s107, [#allocation15]
    $region37: #{_generator_forward_impl.1} parent=1 // pred_fallthru
      _
    // Predicated region
    $region38: #{_generator_forward_impl.1} parent=1 // pred_check
      _
    $region39: #{_generator_forward_impl.1} parent=1 // pred_check_branch
      %111 = sbr.rel (0) target = $region41
    $region40: #{_generator_forward_impl.1} parent=1 // pred_region
      %112 = dma.done [#allocation3], 2048
    $region41: #{_generator_forward_impl.1} parent=1 // pred_fallthru
      _
    // Predicated region
    $region42: #{_generator_forward_impl.1} parent=1 // pred_check
      _
    $region43: #{_generator_forward_impl.1} parent=1 // pred_check_branch
      %114 = sbr.rel (0) target = $region45
    $region44: #{_generator_forward_impl.1} parent=1 // pred_region
      %115 = dma.done [#allocation6], 32
    $region45: #{_generator_forward_impl.1} parent=1 // pred_fallthru
      _
    // Predicated region
    $region46: #{_generator_forward_impl.1} parent=1 // pred_check
      _
    $region47: #{_generator_forward_impl.1} parent=1 // pred_check_branch
      %117 = sbr.rel (0) target = $region49
    $region48: #{_generator_forward_impl.1} parent=1 // pred_region
      %118 = dma.done [#allocation6], 8192
    $region49: #{_generator_forward_impl.1} parent=1 // pred_fallthru
      _
    // Predicated region
    $region50: #{_generator_forward_impl.1} parent=1 // pred_check
      _
    $region51: #{_generator_forward_impl.1} parent=1 // pred_check_branch
      %120 = sbr.rel (0) target = $region53
    $region52: #{_generator_forward_impl.1} parent=1 // pred_region
      %121 = dma.done [#allocation9], 64
    $region53: #{_generator_forward_impl.1} parent=1 // pred_fallthru
      _
    // Predicated region
    $region54: #{_generator_forward_impl.1} parent=1 // pred_check
      _
    $region55: #{_generator_forward_impl.1} parent=1 // pred_check_branch
      %123 = sbr.rel (0) target = $region57
    $region56: #{_generator_forward_impl.1} parent=1 // pred_region
      %124 = dma.done [#allocation9], 32768
    $region57: #{_generator_forward_impl.1} parent=1 // pred_fallthru
      _
    // Predicated region
    $region58: #{_generator_forward_impl.1} parent=1 // pred_check
      _
    $region59: #{_generator_forward_impl.1} parent=1 // pred_check_branch
      %126 = sbr.rel (0) target = $region61
    $region60: #{_generator_forward_impl.1} parent=1 // pred_region
      %127 = dma.done [#allocation12], 128
    $region61: #{_generator_forward_impl.1} parent=1 // pred_fallthru
      _
    // Predicated region
    $region62: #{_generator_forward_impl.1} parent=1 // pred_check
      _
    $region63: #{_generator_forward_impl.1} parent=1 // pred_check_branch
      %129 = sbr.rel (0) target = $region65
    $region64: #{_generator_forward_impl.1} parent=1 // pred_region
      %130 = dma.done [#allocation12], 65536
    $region65: #{_generator_forward_impl.1} parent=1 // pred_fallthru
      _
    // Predicated region
    $region66: #{_generator_forward_impl.1} parent=1 // pred_check
      _
    $region67: #{_generator_forward_impl.1} parent=1 // pred_check_branch
      %132 = sbr.rel (0) target = $region69
    $region68: #{_generator_forward_impl.1} parent=1 // pred_region
      %133 = dma.done [#allocation15], 128
    $region69: #{_generator_forward_impl.1} parent=1 // pred_fallthru
      _
    %v135 = vld [vmem:[%s0] sm:$0xf]
    %v136 = vld [vmem:[#allocation2] sm:$0xff]
    %v137 = vld [vmem:[#allocation2 + $0x8] sm:$0xff]
    %v138 = vld [vmem:[#allocation2 + $0x10] sm:$0xff]
    %v139 = vld [vmem:[#allocation2 + $0x18] sm:$0xff]
    %v140 = vld [vmem:[#allocation2 + $0x20] sm:$0xff]
    %v141 = vld [vmem:[#allocation2 + $0x28] sm:$0xff]
    %v142 = vld [vmem:[#allocation2 + $0x30] sm:$0xff]
    %v143 = vld [vmem:[#allocation2 + $0x38] sm:$0xff]
    %v144 = vld [vmem:[#allocation2 + $0x40] sm:$0xff]
    %v145 = vld [vmem:[#allocation2 + $0x48] sm:$0xff]
    %v146 = vld [vmem:[#allocation2 + $0x50] sm:$0xff]
    %v147 = vld [vmem:[#allocation2 + $0x58] sm:$0xff]
    %v148 = vld [vmem:[#allocation2 + $0x60] sm:$0xff]
    %v149 = vld [vmem:[#allocation2 + $0x68] sm:$0xff]
    %v150 = vld [vmem:[#allocation2 + $0x70] sm:$0xff]
    %v151 = vld [vmem:[#allocation2 + $0x78] sm:$0xff]
    %v152 = vld [vmem:[#allocation5] sm:$0x3]
    %v154 = vlaneseq
    %v155 = vshrl.u32 %v154, 7
    %v156 = vsub.s32 0, %v155
    %v157 = vrot.slane %v152, %v156
    %v158 = vlaneseq
    %v159 = vshrl.u32 %v158, 7
    %v160 = vsub.s32 1, %v159
    %v161 = vrot.slane %v152, %v160
    %v180 = vunpack.c.l.b16 %v136
    %v181 = vunpack.c.h.b16 %v136
    %v182 = vunpack.c.l.b16 %v137
    %v183 = vunpack.c.h.b16 %v137
    %v184 = vunpack.c.l.b16 %v138
    %v185 = vunpack.c.h.b16 %v138
    %v186 = vunpack.c.l.b16 %v139
    %v187 = vunpack.c.h.b16 %v139
    %v188 = vunpack.c.l.b16 %v140
    %v189 = vunpack.c.h.b16 %v140
    %v190 = vunpack.c.l.b16 %v141
    %v191 = vunpack.c.h.b16 %v141
    %v192 = vunpack.c.l.b16 %v142
    %v193 = vunpack.c.h.b16 %v142
    %v194 = vunpack.c.l.b16 %v143
    %v195 = vunpack.c.h.b16 %v143
    %v196 = vunpack.c.l.b16 %v144
    %v197 = vunpack.c.h.b16 %v144
    %v198 = vunpack.c.l.b16 %v145
    %v199 = vunpack.c.h.b16 %v145
    %v200 = vunpack.c.l.b16 %v146
    %v201 = vunpack.c.h.b16 %v146
    %v202 = vunpack.c.l.b16 %v147
    %v203 = vunpack.c.h.b16 %v147
    %v204 = vunpack.c.l.b16 %v148
    %v205 = vunpack.c.h.b16 %v148
    %v206 = vunpack.c.l.b16 %v149
    %v207 = vunpack.c.h.b16 %v149
    %v208 = vunpack.c.l.b16 %v150
    %v209 = vunpack.c.h.b16 %v150
    %v210 = vunpack.c.l.b16 %v151
    %v211 = vunpack.c.h.b16 %v151
    %v212 = vpack.c.b16 %v182, %v180
    %v213 = vpack.c.b16 %v183, %v181
    %v214 = vpack.c.b16 %v186, %v184
    %v215 = vpack.c.b16 %v187, %v185
    %v216 = vpack.c.b16 %v190, %v188
    %v217 = vpack.c.b16 %v191, %v189
    %v218 = vpack.c.b16 %v194, %v192
    %v219 = vpack.c.b16 %v195, %v193
    %v220 = vpack.c.b16 %v198, %v196
    %v221 = vpack.c.b16 %v199, %v197
    %v222 = vpack.c.b16 %v202, %v200
    %v223 = vpack.c.b16 %v203, %v201
    %v224 = vpack.c.b16 %v206, %v204
    %v225 = vpack.c.b16 %v207, %v205
    %v226 = vpack.c.b16 %v210, %v208
    %v227 = vpack.c.b16 %v211, %v209
    %244 = vmatprep.subr.bf16.mxu0 %v213
    %245 = vmatpush1.bf16.msra.mxu0 %v212
    %246 = vmatprep.subr.bf16.mxu0 %v215
    %247 = vmatpush1.bf16.msra.mxu0 %v214
    %248 = vmatprep.subr.bf16.mxu0 %v217
    %249 = vmatpush1.bf16.msra.mxu0 %v216
    %250 = vmatprep.subr.bf16.mxu0 %v219
    %251 = vmatpush1.bf16.msra.mxu0 %v218
    %252 = vmatprep.subr.bf16.mxu0 %v221
    %253 = vmatpush1.bf16.msra.mxu0 %v220
    %254 = vmatprep.subr.bf16.mxu0 %v223
    %255 = vmatpush1.bf16.msra.mxu0 %v222
    %256 = vmatprep.subr.bf16.mxu0 %v225
    %257 = vmatpush1.bf16.msra.mxu0 %v224
    %258 = vmatprep.subr.bf16.mxu0 %v227
    %259 = vmatpush1.bf16.msra.mxu0 %v226
    %260 = vmatprep.subr.bf16.mxu0 0
    %261 = vmatpush1.bf16.msra.mxu0 0
    %262 = vmatprep.subr.bf16.mxu0 0
    %263 = vmatpush1.bf16.msra.mxu0 0
    %264 = vmatprep.subr.bf16.mxu0 0
    %265 = vmatpush1.bf16.msra.mxu0 0
    %266 = vmatprep.subr.bf16.mxu0 0
    %267 = vmatpush1.bf16.msra.mxu0 0
    %268 = vmatprep.subr.bf16.mxu0 0
    %269 = vmatpush1.bf16.msra.mxu0 0
    %270 = vmatprep.subr.bf16.mxu0 0
    %271 = vmatpush1.bf16.msra.mxu0 0
    %272 = vmatprep.subr.bf16.mxu0 0
    %273 = vmatpush1.bf16.msra.mxu0 0
    %274 = vmatprep.subr.bf16.mxu0 0
    %275 = vmatpush1.bf16.msra.mxu0 0
    %276 = vmatprep.mubr.bf16.mxu0 0
    %277 = vmatmul.mubr.bf16.gmra.mrb[0].mxu0 %v135
    %v278 = vpop.f32.mrb[0].mxu0
    %v279 = vadd.f32 %v157, %v278
    %v280 = vpop.f32.mrb[0].mxu0
    %v281 = vadd.f32 %v161, %v280
    %v282 = vpop.f32.mrb[0].mxu0
    %v283 = vpop.f32.mrb[0].mxu0
    %284 = vdwg.mxu0
    %v285 = vmax.f32 %v279, 0.0
    %v286 = vmax.f32 %v281, 0.0
    %v287 = vpack.c.bf16 %v285, %v285
    %v288 = vpack.c.bf16 %v286, %v286
    %v289 = vld [vmem:[#allocation7] sm:$0xff]
    %v290 = vld [vmem:[#allocation7 + $0x8] sm:$0xff]
    %v291 = vld [vmem:[#allocation7 + $0x10] sm:$0xff]
    %v292 = vld [vmem:[#allocation7 + $0x18] sm:$0xff]
    %v293 = vld [vmem:[#allocation7 + $0x20] sm:$0xff]
    %v294 = vld [vmem:[#allocation7 + $0x28] sm:$0xff]
    %v295 = vld [vmem:[#allocation7 + $0x30] sm:$0xff]
    %v296 = vld [vmem:[#allocation7 + $0x38] sm:$0xff]
    %v297 = vld [vmem:[#allocation7 + $0x40] sm:$0xff]
    %v298 = vld [vmem:[#allocation7 + $0x48] sm:$0xff]
    %v299 = vld [vmem:[#allocation7 + $0x50] sm:$0xff]
    %v300 = vld [vmem:[#allocation7 + $0x58] sm:$0xff]
    %v301 = vld [vmem:[#allocation7 + $0x60] sm:$0xff]
    %v302 = vld [vmem:[#allocation7 + $0x68] sm:$0xff]
    %v303 = vld [vmem:[#allocation7 + $0x70] sm:$0xff]
    %v304 = vld [vmem:[#allocation7 + $0x78] sm:$0xff]
    %v305 = vld [vmem:[#allocation7 + $0x80] sm:$0xff]
    %v306 = vld [vmem:[#allocation7 + $0x88] sm:$0xff]
    %v307 = vld [vmem:[#allocation7 + $0x90] sm:$0xff]
    %v308 = vld [vmem:[#allocation7 + $0x98] sm:$0xff]
    %v309 = vld [vmem:[#allocation7 + $0xa0] sm:$0xff]
    %v310 = vld [vmem:[#allocation7 + $0xa8] sm:$0xff]
    %v311 = vld [vmem:[#allocation7 + $0xb0] sm:$0xff]
    %v312 = vld [vmem:[#allocation7 + $0xb8] sm:$0xff]
    %v313 = vld [vmem:[#allocation7 + $0xc0] sm:$0xff]
    %v314 = vld [vmem:[#allocation7 + $0xc8] sm:$0xff]
    %v315 = vld [vmem:[#allocation7 + $0xd0] sm:$0xff]
    %v316 = vld [vmem:[#allocation7 + $0xd8] sm:$0xff]
    %v317 = vld [vmem:[#allocation7 + $0xe0] sm:$0xff]
    %v318 = vld [vmem:[#allocation7 + $0xe8] sm:$0xff]
    %v319 = vld [vmem:[#allocation7 + $0xf0] sm:$0xff]
    %v320 = vld [vmem:[#allocation7 + $0xf8] sm:$0xff]
    %v321 = vld [vmem:[#allocation7 + $0x100] sm:$0xff]
    %v322 = vld [vmem:[#allocation7 + $0x108] sm:$0xff]
    %v323 = vld [vmem:[#allocation7 + $0x110] sm:$0xff]
    %v324 = vld [vmem:[#allocation7 + $0x118] sm:$0xff]
    %v325 = vld [vmem:[#allocation7 + $0x120] sm:$0xff]
    %v326 = vld [vmem:[#allocation7 + $0x128] sm:$0xff]
    %v327 = vld [vmem:[#allocation7 + $0x130] sm:$0xff]
    %v328 = vld [vmem:[#allocation7 + $0x138] sm:$0xff]
    %v329 = vld [vmem:[#allocation7 + $0x140] sm:$0xff]
    %v330 = vld [vmem:[#allocation7 + $0x148] sm:$0xff]
    %v331 = vld [vmem:[#allocation7 + $0x150] sm:$0xff]
    %v332 = vld [vmem:[#allocation7 + $0x158] sm:$0xff]
    %v333 = vld [vmem:[#allocation7 + $0x160] sm:$0xff]
    %v334 = vld [vmem:[#allocation7 + $0x168] sm:$0xff]
    %v335 = vld [vmem:[#allocation7 + $0x170] sm:$0xff]
    %v336 = vld [vmem:[#allocation7 + $0x178] sm:$0xff]
    %v337 = vld [vmem:[#allocation7 + $0x180] sm:$0xff]
    %v338 = vld [vmem:[#allocation7 + $0x188] sm:$0xff]
    %v339 = vld [vmem:[#allocation7 + $0x190] sm:$0xff]
    %v340 = vld [vmem:[#allocation7 + $0x198] sm:$0xff]
    %v341 = vld [vmem:[#allocation7 + $0x1a0] sm:$0xff]
    %v342 = vld [vmem:[#allocation7 + $0x1a8] sm:$0xff]
    %v343 = vld [vmem:[#allocation7 + $0x1b0] sm:$0xff]
    %v344 = vld [vmem:[#allocation7 + $0x1b8] sm:$0xff]
    %v345 = vld [vmem:[#allocation7 + $0x1c0] sm:$0xff]
    %v346 = vld [vmem:[#allocation7 + $0x1c8] sm:$0xff]
    %v347 = vld [vmem:[#allocation7 + $0x1d0] sm:$0xff]
    %v348 = vld [vmem:[#allocation7 + $0x1d8] sm:$0xff]
    %v349 = vld [vmem:[#allocation7 + $0x1e0] sm:$0xff]
    %v350 = vld [vmem:[#allocation7 + $0x1e8] sm:$0xff]
    %v351 = vld [vmem:[#allocation7 + $0x1f0] sm:$0xff]
    %v352 = vld [vmem:[#allocation7 + $0x1f8] sm:$0xff]
    %v353 = vld [vmem:[#allocation8] sm:$0xf]
    %v355 = vlaneseq
    %v356 = vshrl.u32 %v355, 7
    %v357 = vsub.s32 0, %v356
    %v358 = vrot.slane %v353, %v357
    %v359 = vlaneseq
    %v360 = vshrl.u32 %v359, 7
    %v361 = vsub.s32 1, %v360
    %v362 = vrot.slane %v353, %v361
    %v363 = vlaneseq
    %v364 = vshrl.u32 %v363, 7
    %v365 = vsub.s32 2, %v364
    %v366 = vrot.slane %v353, %v365
    %v367 = vlaneseq
    %v368 = vshrl.u32 %v367, 7
    %v369 = vsub.s32 3, %v368
    %v370 = vrot.slane %v353, %v369
    %v439 = vunpack.c.l.b16 %v289
    %v440 = vunpack.c.h.b16 %v289
    %v441 = vunpack.c.l.b16 %v290
    %v442 = vunpack.c.h.b16 %v290
    %v443 = vunpack.c.l.b16 %v291
    %v444 = vunpack.c.h.b16 %v291
    %v445 = vunpack.c.l.b16 %v292
    %v446 = vunpack.c.h.b16 %v292
    %v447 = vunpack.c.l.b16 %v293
    %v448 = vunpack.c.h.b16 %v293
    %v449 = vunpack.c.l.b16 %v294
    %v450 = vunpack.c.h.b16 %v294
    %v451 = vunpack.c.l.b16 %v295
    %v452 = vunpack.c.h.b16 %v295
    %v453 = vunpack.c.l.b16 %v296
    %v454 = vunpack.c.h.b16 %v296
    %v455 = vunpack.c.l.b16 %v297
    %v456 = vunpack.c.h.b16 %v297
    %v457 = vunpack.c.l.b16 %v298
    %v458 = vunpack.c.h.b16 %v298
    %v459 = vunpack.c.l.b16 %v299
    %v460 = vunpack.c.h.b16 %v299
    %v461 = vunpack.c.l.b16 %v300
    %v462 = vunpack.c.h.b16 %v300
    %v463 = vunpack.c.l.b16 %v301
    %v464 = vunpack.c.h.b16 %v301
    %v465 = vunpack.c.l.b16 %v302
    %v466 = vunpack.c.h.b16 %v302
    %v467 = vunpack.c.l.b16 %v303
    %v468 = vunpack.c.h.b16 %v303
    %v469 = vunpack.c.l.b16 %v304
    %v470 = vunpack.c.h.b16 %v304
    %v471 = vunpack.c.l.b16 %v305
    %v472 = vunpack.c.h.b16 %v305
    %v473 = vunpack.c.l.b16 %v306
    %v474 = vunpack.c.h.b16 %v306
    %v475 = vunpack.c.l.b16 %v307
    %v476 = vunpack.c.h.b16 %v307
    %v477 = vunpack.c.l.b16 %v308
    %v478 = vunpack.c.h.b16 %v308
    %v479 = vunpack.c.l.b16 %v309
    %v480 = vunpack.c.h.b16 %v309
    %v481 = vunpack.c.l.b16 %v310
    %v482 = vunpack.c.h.b16 %v310
    %v483 = vunpack.c.l.b16 %v311
    %v484 = vunpack.c.h.b16 %v311
    %v485 = vunpack.c.l.b16 %v312
    %v486 = vunpack.c.h.b16 %v312
    %v487 = vunpack.c.l.b16 %v313
    %v488 = vunpack.c.h.b16 %v313
    %v489 = vunpack.c.l.b16 %v314
    %v490 = vunpack.c.h.b16 %v314
    %v491 = vunpack.c.l.b16 %v315
    %v492 = vunpack.c.h.b16 %v315
    %v493 = vunpack.c.l.b16 %v316
    %v494 = vunpack.c.h.b16 %v316
    %v495 = vunpack.c.l.b16 %v317
    %v496 = vunpack.c.h.b16 %v317
    %v497 = vunpack.c.l.b16 %v318
    %v498 = vunpack.c.h.b16 %v318
    %v499 = vunpack.c.l.b16 %v319
    %v500 = vunpack.c.h.b16 %v319
    %v501 = vunpack.c.l.b16 %v320
    %v502 = vunpack.c.h.b16 %v320
    %v503 = vunpack.c.l.b16 %v321
    %v504 = vunpack.c.h.b16 %v321
    %v505 = vunpack.c.l.b16 %v322
    %v506 = vunpack.c.h.b16 %v322
    %v507 = vunpack.c.l.b16 %v323
    %v508 = vunpack.c.h.b16 %v323
    %v509 = vunpack.c.l.b16 %v324
    %v510 = vunpack.c.h.b16 %v324
    %v511 = vunpack.c.l.b16 %v325
    %v512 = vunpack.c.h.b16 %v325
    %v513 = vunpack.c.l.b16 %v326
    %v514 = vunpack.c.h.b16 %v326
    %v515 = vunpack.c.l.b16 %v327
    %v516 = vunpack.c.h.b16 %v327
    %v517 = vunpack.c.l.b16 %v328
    %v518 = vunpack.c.h.b16 %v328
    %v519 = vunpack.c.l.b16 %v329
    %v520 = vunpack.c.h.b16 %v329
    %v521 = vunpack.c.l.b16 %v330
    %v522 = vunpack.c.h.b16 %v330
    %v523 = vunpack.c.l.b16 %v331
    %v524 = vunpack.c.h.b16 %v331
    %v525 = vunpack.c.l.b16 %v332
    %v526 = vunpack.c.h.b16 %v332
    %v527 = vunpack.c.l.b16 %v333
    %v528 = vunpack.c.h.b16 %v333
    %v529 = vunpack.c.l.b16 %v334
    %v530 = vunpack.c.h.b16 %v334
    %v531 = vunpack.c.l.b16 %v335
    %v532 = vunpack.c.h.b16 %v335
    %v533 = vunpack.c.l.b16 %v336
    %v534 = vunpack.c.h.b16 %v336
    %v535 = vunpack.c.l.b16 %v337
    %v536 = vunpack.c.h.b16 %v337
    %v537 = vunpack.c.l.b16 %v338
    %v538 = vunpack.c.h.b16 %v338
    %v539 = vunpack.c.l.b16 %v339
    %v540 = vunpack.c.h.b16 %v339
    %v541 = vunpack.c.l.b16 %v340
    %v542 = vunpack.c.h.b16 %v340
    %v543 = vunpack.c.l.b16 %v341
    %v544 = vunpack.c.h.b16 %v341
    %v545 = vunpack.c.l.b16 %v342
    %v546 = vunpack.c.h.b16 %v342
    %v547 = vunpack.c.l.b16 %v343
    %v548 = vunpack.c.h.b16 %v343
    %v549 = vunpack.c.l.b16 %v344
    %v550 = vunpack.c.h.b16 %v344
    %v551 = vunpack.c.l.b16 %v345
    %v552 = vunpack.c.h.b16 %v345
    %v553 = vunpack.c.l.b16 %v346
    %v554 = vunpack.c.h.b16 %v346
    %v555 = vunpack.c.l.b16 %v347
    %v556 = vunpack.c.h.b16 %v347
    %v557 = vunpack.c.l.b16 %v348
    %v558 = vunpack.c.h.b16 %v348
    %v559 = vunpack.c.l.b16 %v349
    %v560 = vunpack.c.h.b16 %v349
    %v561 = vunpack.c.l.b16 %v350
    %v562 = vunpack.c.h.b16 %v350
    %v563 = vunpack.c.l.b16 %v351
    %v564 = vunpack.c.h.b16 %v351
    %v565 = vunpack.c.l.b16 %v352
    %v566 = vunpack.c.h.b16 %v352
    %v567 = vpack.c.b16 %v443, %v439
    %v568 = vpack.c.b16 %v444, %v440
    %v569 = vpack.c.b16 %v445, %v441
    %v570 = vpack.c.b16 %v446, %v442
    %v571 = vpack.c.b16 %v451, %v447
    %v572 = vpack.c.b16 %v452, %v448
    %v573 = vpack.c.b16 %v453, %v449
    %v574 = vpack.c.b16 %v454, %v450
    %v575 = vpack.c.b16 %v459, %v455
    %v576 = vpack.c.b16 %v460, %v456
    %v577 = vpack.c.b16 %v461, %v457
    %v578 = vpack.c.b16 %v462, %v458
    %v579 = vpack.c.b16 %v467, %v463
    %v580 = vpack.c.b16 %v468, %v464
    %v581 = vpack.c.b16 %v469, %v465
    %v582 = vpack.c.b16 %v470, %v466
    %v583 = vpack.c.b16 %v475, %v471
    %v584 = vpack.c.b16 %v476, %v472
    %v585 = vpack.c.b16 %v477, %v473
    %v586 = vpack.c.b16 %v478, %v474
    %v587 = vpack.c.b16 %v483, %v479
    %v588 = vpack.c.b16 %v484, %v480
    %v589 = vpack.c.b16 %v485, %v481
    %v590 = vpack.c.b16 %v486, %v482
    %v591 = vpack.c.b16 %v491, %v487
    %v592 = vpack.c.b16 %v492, %v488
    %v593 = vpack.c.b16 %v493, %v489
    %v594 = vpack.c.b16 %v494, %v490
    %v595 = vpack.c.b16 %v499, %v495
    %v596 = vpack.c.b16 %v500, %v496
    %v597 = vpack.c.b16 %v501, %v497
    %v598 = vpack.c.b16 %v502, %v498
    %v599 = vpack.c.b16 %v507, %v503
    %v600 = vpack.c.b16 %v508, %v504
    %v601 = vpack.c.b16 %v509, %v505
    %v602 = vpack.c.b16 %v510, %v506
    %v603 = vpack.c.b16 %v515, %v511
    %v604 = vpack.c.b16 %v516, %v512
    %v605 = vpack.c.b16 %v517, %v513
    %v606 = vpack.c.b16 %v518, %v514
    %v607 = vpack.c.b16 %v523, %v519
    %v608 = vpack.c.b16 %v524, %v520
    %v609 = vpack.c.b16 %v525, %v521
    %v610 = vpack.c.b16 %v526, %v522
    %v611 = vpack.c.b16 %v531, %v527
    %v612 = vpack.c.b16 %v532, %v528
    %v613 = vpack.c.b16 %v533, %v529
    %v614 = vpack.c.b16 %v534, %v530
    %v615 = vpack.c.b16 %v539, %v535
    %v616 = vpack.c.b16 %v540, %v536
    %v617 = vpack.c.b16 %v541, %v537
    %v618 = vpack.c.b16 %v542, %v538
    %v619 = vpack.c.b16 %v547, %v543
    %v620 = vpack.c.b16 %v548, %v544
    %v621 = vpack.c.b16 %v549, %v545
    %v622 = vpack.c.b16 %v550, %v546
    %v623 = vpack.c.b16 %v555, %v551
    %v624 = vpack.c.b16 %v556, %v552
    %v625 = vpack.c.b16 %v557, %v553
    %v626 = vpack.c.b16 %v558, %v554
    %v627 = vpack.c.b16 %v563, %v559
    %v628 = vpack.c.b16 %v564, %v560
    %v629 = vpack.c.b16 %v565, %v561
    %v630 = vpack.c.b16 %v566, %v562
    %695 = vmatprep.subr.bf16.mxu0 %v568
    %696 = vmatpush1.bf16.msra.mxu0 %v567
    %697 = vmatprep.subr.bf16.mxu0 %v572
    %698 = vmatpush1.bf16.msra.mxu0 %v571
    %699 = vmatprep.subr.bf16.mxu0 %v576
    %700 = vmatpush1.bf16.msra.mxu0 %v575
    %701 = vmatprep.subr.bf16.mxu0 %v580
    %702 = vmatpush1.bf16.msra.mxu0 %v579
    %703 = vmatprep.subr.bf16.mxu0 %v584
    %704 = vmatpush1.bf16.msra.mxu0 %v583
    %705 = vmatprep.subr.bf16.mxu0 %v588
    %706 = vmatpush1.bf16.msra.mxu0 %v587
    %707 = vmatprep.subr.bf16.mxu0 %v592
    %708 = vmatpush1.bf16.msra.mxu0 %v591
    %709 = vmatprep.subr.bf16.mxu0 %v596
    %710 = vmatpush1.bf16.msra.mxu0 %v595
    %711 = vmatprep.subr.bf16.mxu0 %v600
    %712 = vmatpush1.bf16.msra.mxu0 %v599
    %713 = vmatprep.subr.bf16.mxu0 %v604
    %714 = vmatpush1.bf16.msra.mxu0 %v603
    %715 = vmatprep.subr.bf16.mxu0 %v608
    %716 = vmatpush1.bf16.msra.mxu0 %v607
    %717 = vmatprep.subr.bf16.mxu0 %v612
    %718 = vmatpush1.bf16.msra.mxu0 %v611
    %719 = vmatprep.subr.bf16.mxu0 %v616
    %720 = vmatpush1.bf16.msra.mxu0 %v615
    %721 = vmatprep.subr.bf16.mxu0 %v620
    %722 = vmatpush1.bf16.msra.mxu0 %v619
    %723 = vmatprep.subr.bf16.mxu0 %v624
    %724 = vmatpush1.bf16.msra.mxu0 %v623
    %725 = vmatprep.subr.bf16.mxu0 %v628
    %726 = vmatpush1.bf16.msra.mxu0 %v627
    %727 = vmatprep.mubr.bf16.mxu0 %v288
    %728 = vmatmul.mubr.bf16.gmra.mrb[0].mxu0 %v287
    %v729 = vpop.f32.mrb[0].mxu0
    %v730 = vadd.f32 %v358, %v729
    %v731 = vpop.f32.mrb[0].mxu0
    %v732 = vadd.f32 %v362, %v731
    %v733 = vpop.f32.mrb[0].mxu0
    %v734 = vpop.f32.mrb[0].mxu0
    %735 = vdwg.mxu0
    %736 = vmatprep.subr.bf16.mxu0 %v570
    %737 = vmatpush1.bf16.msra.mxu0 %v569
    %738 = vmatprep.subr.bf16.mxu0 %v574
    %739 = vmatpush1.bf16.msra.mxu0 %v573
    %740 = vmatprep.subr.bf16.mxu0 %v578
    %741 = vmatpush1.bf16.msra.mxu0 %v577
    %742 = vmatprep.subr.bf16.mxu0 %v582
    %743 = vmatpush1.bf16.msra.mxu0 %v581
    %744 = vmatprep.subr.bf16.mxu0 %v586
    %745 = vmatpush1.bf16.msra.mxu0 %v585
    %746 = vmatprep.subr.bf16.mxu0 %v590
    %747 = vmatpush1.bf16.msra.mxu0 %v589
    %748 = vmatprep.subr.bf16.mxu0 %v594
    %749 = vmatpush1.bf16.msra.mxu0 %v593
    %750 = vmatprep.subr.bf16.mxu0 %v598
    %751 = vmatpush1.bf16.msra.mxu0 %v597
    %752 = vmatprep.subr.bf16.mxu0 %v602
    %753 = vmatpush1.bf16.msra.mxu0 %v601
    %754 = vmatprep.subr.bf16.mxu0 %v606
    %755 = vmatpush1.bf16.msra.mxu0 %v605
    %756 = vmatprep.subr.bf16.mxu0 %v610
    %757 = vmatpush1.bf16.msra.mxu0 %v609
    %758 = vmatprep.subr.bf16.mxu0 %v614
    %759 = vmatpush1.bf16.msra.mxu0 %v613
    %760 = vmatprep.subr.bf16.mxu0 %v618
    %761 = vmatpush1.bf16.msra.mxu0 %v617
    %762 = vmatprep.subr.bf16.mxu0 %v622
    %763 = vmatpush1.bf16.msra.mxu0 %v621
    %764 = vmatprep.subr.bf16.mxu0 %v626
    %765 = vmatpush1.bf16.msra.mxu0 %v625
    %766 = vmatprep.subr.bf16.mxu0 %v630
    %767 = vmatpush1.bf16.msra.mxu0 %v629
    %768 = vmatprep.mubr.bf16.mxu0 %v288
    %769 = vmatmul.mubr.bf16.gmra.mrb[0].mxu0 %v287
    %v770 = vpop.f32.mrb[0].mxu0
    %v771 = vadd.f32 %v366, %v770
    %v772 = vpop.f32.mrb[0].mxu0
    %v773 = vadd.f32 %v370, %v772
    %v774 = vpop.f32.mrb[0].mxu0
    %v775 = vpop.f32.mrb[0].mxu0
    %776 = vdwg.mxu0
    %v777 = vmax.f32 %v730, 0.0
    %v778 = vmax.f32 %v732, 0.0
    %v779 = vmax.f32 %v771, 0.0
    %v780 = vmax.f32 %v773, 0.0
    %v781 = vpack.c.bf16 %v777, %v777
    %v782 = vpack.c.bf16 %v778, %v778
    %v783 = vpack.c.bf16 %v779, %v779
    %v784 = vpack.c.bf16 %v780, %v780
    %v785 = vld [vmem:[#allocation10] sm:$0xff]
    %v786 = vld [vmem:[#allocation10 + $0x8] sm:$0xff]
    %v787 = vld [vmem:[#allocation10 + $0x10] sm:$0xff]
    %v788 = vld [vmem:[#allocation10 + $0x18] sm:$0xff]
    %v789 = vld [vmem:[#allocation10 + $0x20] sm:$0xff]
    %v790 = vld [vmem:[#allocation10 + $0x28] sm:$0xff]
    %v791 = vld [vmem:[#allocation10 + $0x30] sm:$0xff]
    %v792 = vld [vmem:[#allocation10 + $0x38] sm:$0xff]
    %v793 = vld [vmem:[#allocation10 + $0x40] sm:$0xff]
    %v794 = vld [vmem:[#allocation10 + $0x48] sm:$0xff]
    %v795 = vld [vmem:[#allocation10 + $0x50] sm:$0xff]
    %v796 = vld [vmem:[#allocation10 + $0x58] sm:$0xff]
    %v797 = vld [vmem:[#allocation10 + $0x60] sm:$0xff]
    %v798 = vld [vmem:[#allocation10 + $0x68] sm:$0xff]
    %v799 = vld [vmem:[#allocation10 + $0x70] sm:$0xff]
    %v800 = vld [vmem:[#allocation10 + $0x78] sm:$0xff]
    %v801 = vld [vmem:[#allocation10 + $0x80] sm:$0xff]
    %v802 = vld [vmem:[#allocation10 + $0x88] sm:$0xff]
    %v803 = vld [vmem:[#allocation10 + $0x90] sm:$0xff]
    %v804 = vld [vmem:[#allocation10 + $0x98] sm:$0xff]
    %v805 = vld [vmem:[#allocation10 + $0xa0] sm:$0xff]
    %v806 = vld [vmem:[#allocation10 + $0xa8] sm:$0xff]
    %v807 = vld [vmem:[#allocation10 + $0xb0] sm:$0xff]
    %v808 = vld [vmem:[#allocation10 + $0xb8] sm:$0xff]
    %v809 = vld [vmem:[#allocation10 + $0xc0] sm:$0xff]
    %v810 = vld [vmem:[#allocation10 + $0xc8] sm:$0xff]
    %v811 = vld [vmem:[#allocation10 + $0xd0] sm:$0xff]
    %v812 = vld [vmem:[#allocation10 + $0xd8] sm:$0xff]
    %v813 = vld [vmem:[#allocation10 + $0xe0] sm:$0xff]
    %v814 = vld [vmem:[#allocation10 + $0xe8] sm:$0xff]
    %v815 = vld [vmem:[#allocation10 + $0xf0] sm:$0xff]
    %v816 = vld [vmem:[#allocation10 + $0xf8] sm:$0xff]
    %v817 = vld [vmem:[#allocation10 + $0x100] sm:$0xff]
    %v818 = vld [vmem:[#allocation10 + $0x108] sm:$0xff]
    %v819 = vld [vmem:[#allocation10 + $0x110] sm:$0xff]
    %v820 = vld [vmem:[#allocation10 + $0x118] sm:$0xff]
    %v821 = vld [vmem:[#allocation10 + $0x120] sm:$0xff]
    %v822 = vld [vmem:[#allocation10 + $0x128] sm:$0xff]
    %v823 = vld [vmem:[#allocation10 + $0x130] sm:$0xff]
    %v824 = vld [vmem:[#allocation10 + $0x138] sm:$0xff]
    %v825 = vld [vmem:[#allocation10 + $0x140] sm:$0xff]
    %v826 = vld [vmem:[#allocation10 + $0x148] sm:$0xff]
    %v827 = vld [vmem:[#allocation10 + $0x150] sm:$0xff]
    %v828 = vld [vmem:[#allocation10 + $0x158] sm:$0xff]
    %v829 = vld [vmem:[#allocation10 + $0x160] sm:$0xff]
    %v830 = vld [vmem:[#allocation10 + $0x168] sm:$0xff]
    %v831 = vld [vmem:[#allocation10 + $0x170] sm:$0xff]
    %v832 = vld [vmem:[#allocation10 + $0x178] sm:$0xff]
    %v833 = vld [vmem:[#allocation10 + $0x180] sm:$0xff]
    %v834 = vld [vmem:[#allocation10 + $0x188] sm:$0xff]
    %v835 = vld [vmem:[#allocation10 + $0x190] sm:$0xff]
    %v836 = vld [vmem:[#allocation10 + $0x198] sm:$0xff]
    %v837 = vld [vmem:[#allocation10 + $0x1a0] sm:$0xff]
    %v838 = vld [vmem:[#allocation10 + $0x1a8] sm:$0xff]
    %v839 = vld [vmem:[#allocation10 + $0x1b0] sm:$0xff]
    %v840 = vld [vmem:[#allocation10 + $0x1b8] sm:$0xff]
    %v841 = vld [vmem:[#allocation10 + $0x1c0] sm:$0xff]
    %v842 = vld [vmem:[#allocation10 + $0x1c8] sm:$0xff]
    %v843 = vld [vmem:[#allocation10 + $0x1d0] sm:$0xff]
    %v844 = vld [vmem:[#allocation10 + $0x1d8] sm:$0xff]
    %v845 = vld [vmem:[#allocation10 + $0x1e0] sm:$0xff]
    %v846 = vld [vmem:[#allocation10 + $0x1e8] sm:$0xff]
    %v847 = vld [vmem:[#allocation10 + $0x1f0] sm:$0xff]
    %v848 = vld [vmem:[#allocation10 + $0x1f8] sm:$0xff]
    %v849 = vld [vmem:[#allocation10 + $0x200] sm:$0xff]
    %v850 = vld [vmem:[#allocation10 + $0x208] sm:$0xff]
    %v851 = vld [vmem:[#allocation10 + $0x210] sm:$0xff]
    %v852 = vld [vmem:[#allocation10 + $0x218] sm:$0xff]
    %v853 = vld [vmem:[#allocation10 + $0x220] sm:$0xff]
    %v854 = vld [vmem:[#allocation10 + $0x228] sm:$0xff]
    %v855 = vld [vmem:[#allocation10 + $0x230] sm:$0xff]
    %v856 = vld [vmem:[#allocation10 + $0x238] sm:$0xff]
    %v857 = vld [vmem:[#allocation10 + $0x240] sm:$0xff]
    %v858 = vld [vmem:[#allocation10 + $0x248] sm:$0xff]
    %v859 = vld [vmem:[#allocation10 + $0x250] sm:$0xff]
    %v860 = vld [vmem:[#allocation10 + $0x258] sm:$0xff]
    %v861 = vld [vmem:[#allocation10 + $0x260] sm:$0xff]
    %v862 = vld [vmem:[#allocation10 + $0x268] sm:$0xff]
    %v863 = vld [vmem:[#allocation10 + $0x270] sm:$0xff]
    %v864 = vld [vmem:[#allocation10 + $0x278] sm:$0xff]
    %v865 = vld [vmem:[#allocation10 + $0x280] sm:$0xff]
    %v866 = vld [vmem:[#allocation10 + $0x288] sm:$0xff]
    %v867 = vld [vmem:[#allocation10 + $0x290] sm:$0xff]
    %v868 = vld [vmem:[#allocation10 + $0x298] sm:$0xff]
    %v869 = vld [vmem:[#allocation10 + $0x2a0] sm:$0xff]
    %v870 = vld [vmem:[#allocation10 + $0x2a8] sm:$0xff]
    %v871 = vld [vmem:[#allocation10 + $0x2b0] sm:$0xff]
    %v872 = vld [vmem:[#allocation10 + $0x2b8] sm:$0xff]
    %v873 = vld [vmem:[#allocation10 + $0x2c0] sm:$0xff]
    %v874 = vld [vmem:[#allocation10 + $0x2c8] sm:$0xff]
    %v875 = vld [vmem:[#allocation10 + $0x2d0] sm:$0xff]
    %v876 = vld [vmem:[#allocation10 + $0x2d8] sm:$0xff]
    %v877 = vld [vmem:[#allocation10 + $0x2e0] sm:$0xff]
    %v878 = vld [vmem:[#allocation10 + $0x2e8] sm:$0xff]
    %v879 = vld [vmem:[#allocation10 + $0x2f0] sm:$0xff]
    %v880 = vld [vmem:[#allocation10 + $0x2f8] sm:$0xff]
    %v881 = vld [vmem:[#allocation10 + $0x300] sm:$0xff]
    %v882 = vld [vmem:[#allocation10 + $0x308] sm:$0xff]
    %v883 = vld [vmem:[#allocation10 + $0x310] sm:$0xff]
    %v884 = vld [vmem:[#allocation10 + $0x318] sm:$0xff]
    %v885 = vld [vmem:[#allocation10 + $0x320] sm:$0xff]
    %v886 = vld [vmem:[#allocation10 + $0x328] sm:$0xff]
    %v887 = vld [vmem:[#allocation10 + $0x330] sm:$0xff]
    %v888 = vld [vmem:[#allocation10 + $0x338] sm:$0xff]
    %v889 = vld [vmem:[#allocation10 + $0x340] sm:$0xff]
    %v890 = vld [vmem:[#allocation10 + $0x348] sm:$0xff]
    %v891 = vld [vmem:[#allocation10 + $0x350] sm:$0xff]
    %v892 = vld [vmem:[#allocation10 + $0x358] sm:$0xff]
    %v893 = vld [vmem:[#allocation10 + $0x360] sm:$0xff]
    %v894 = vld [vmem:[#allocation10 + $0x368] sm:$0xff]
    %v895 = vld [vmem:[#allocation10 + $0x370] sm:$0xff]
    %v896 = vld [vmem:[#allocation10 + $0x378] sm:$0xff]
    %v897 = vld [vmem:[#allocation10 + $0x380] sm:$0xff]
    %v898 = vld [vmem:[#allocation10 + $0x388] sm:$0xff]
    %v899 = vld [vmem:[#allocation10 + $0x390] sm:$0xff]
    %v900 = vld [vmem:[#allocation10 + $0x398] sm:$0xff]
    %v901 = vld [vmem:[#allocation10 + $0x3a0] sm:$0xff]
    %v902 = vld [vmem:[#allocation10 + $0x3a8] sm:$0xff]
    %v903 = vld [vmem:[#allocation10 + $0x3b0] sm:$0xff]
    %v904 = vld [vmem:[#allocation10 + $0x3b8] sm:$0xff]
    %v905 = vld [vmem:[#allocation10 + $0x3c0] sm:$0xff]
    %v906 = vld [vmem:[#allocation10 + $0x3c8] sm:$0xff]
    %v907 = vld [vmem:[#allocation10 + $0x3d0] sm:$0xff]
    %v908 = vld [vmem:[#allocation10 + $0x3d8] sm:$0xff]
    %v909 = vld [vmem:[#allocation10 + $0x3e0] sm:$0xff]
    %v910 = vld [vmem:[#allocation10 + $0x3e8] sm:$0xff]
    %v911 = vld [vmem:[#allocation10 + $0x3f0] sm:$0xff]
    %v912 = vld [vmem:[#allocation10 + $0x3f8] sm:$0xff]
    %v913 = vld [vmem:[#allocation10 + $0x400] sm:$0xff]
    %v914 = vld [vmem:[#allocation10 + $0x408] sm:$0xff]
    %v915 = vld [vmem:[#allocation10 + $0x410] sm:$0xff]
    %v916 = vld [vmem:[#allocation10 + $0x418] sm:$0xff]
    %v917 = vld [vmem:[#allocation10 + $0x420] sm:$0xff]
    %v918 = vld [vmem:[#allocation10 + $0x428] sm:$0xff]
    %v919 = vld [vmem:[#allocation10 + $0x430] sm:$0xff]
    %v920 = vld [vmem:[#allocation10 + $0x438] sm:$0xff]
    %v921 = vld [vmem:[#allocation10 + $0x440] sm:$0xff]
    %v922 = vld [vmem:[#allocation10 + $0x448] sm:$0xff]
    %v923 = vld [vmem:[#allocation10 + $0x450] sm:$0xff]
    %v924 = vld [vmem:[#allocation10 + $0x458] sm:$0xff]
    %v925 = vld [vmem:[#allocation10 + $0x460] sm:$0xff]
    %v926 = vld [vmem:[#allocation10 + $0x468] sm:$0xff]
    %v927 = vld [vmem:[#allocation10 + $0x470] sm:$0xff]
    %v928 = vld [vmem:[#allocation10 + $0x478] sm:$0xff]
    %v929 = vld [vmem:[#allocation10 + $0x480] sm:$0xff]
    %v930 = vld [vmem:[#allocation10 + $0x488] sm:$0xff]
    %v931 = vld [vmem:[#allocation10 + $0x490] sm:$0xff]
    %v932 = vld [vmem:[#allocation10 + $0x498] sm:$0xff]
    %v933 = vld [vmem:[#allocation10 + $0x4a0] sm:$0xff]
    %v934 = vld [vmem:[#allocation10 + $0x4a8] sm:$0xff]
    %v935 = vld [vmem:[#allocation10 + $0x4b0] sm:$0xff]
    %v936 = vld [vmem:[#allocation10 + $0x4b8] sm:$0xff]
    %v937 = vld [vmem:[#allocation10 + $0x4c0] sm:$0xff]
    %v938 = vld [vmem:[#allocation10 + $0x4c8] sm:$0xff]
    %v939 = vld [vmem:[#allocation10 + $0x4d0] sm:$0xff]
    %v940 = vld [vmem:[#allocation10 + $0x4d8] sm:$0xff]
    %v941 = vld [vmem:[#allocation10 + $0x4e0] sm:$0xff]
    %v942 = vld [vmem:[#allocation10 + $0x4e8] sm:$0xff]
    %v943 = vld [vmem:[#allocation10 + $0x4f0] sm:$0xff]
    %v944 = vld [vmem:[#allocation10 + $0x4f8] sm:$0xff]
    %v945 = vld [vmem:[#allocation10 + $0x500] sm:$0xff]
    %v946 = vld [vmem:[#allocation10 + $0x508] sm:$0xff]
    %v947 = vld [vmem:[#allocation10 + $0x510] sm:$0xff]
    %v948 = vld [vmem:[#allocation10 + $0x518] sm:$0xff]
    %v949 = vld [vmem:[#allocation10 + $0x520] sm:$0xff]
    %v950 = vld [vmem:[#allocation10 + $0x528] sm:$0xff]
    %v951 = vld [vmem:[#allocation10 + $0x530] sm:$0xff]
    %v952 = vld [vmem:[#allocation10 + $0x538] sm:$0xff]
    %v953 = vld [vmem:[#allocation10 + $0x540] sm:$0xff]
    %v954 = vld [vmem:[#allocation10 + $0x548] sm:$0xff]
    %v955 = vld [vmem:[#allocation10 + $0x550] sm:$0xff]
    %v956 = vld [vmem:[#allocation10 + $0x558] sm:$0xff]
    %v957 = vld [vmem:[#allocation10 + $0x560] sm:$0xff]
    %v958 = vld [vmem:[#allocation10 + $0x568] sm:$0xff]
    %v959 = vld [vmem:[#allocation10 + $0x570] sm:$0xff]
    %v960 = vld [vmem:[#allocation10 + $0x578] sm:$0xff]
    %v961 = vld [vmem:[#allocation10 + $0x580] sm:$0xff]
    %v962 = vld [vmem:[#allocation10 + $0x588] sm:$0xff]
    %v963 = vld [vmem:[#allocation10 + $0x590] sm:$0xff]
    %v964 = vld [vmem:[#allocation10 + $0x598] sm:$0xff]
    %v965 = vld [vmem:[#allocation10 + $0x5a0] sm:$0xff]
    %v966 = vld [vmem:[#allocation10 + $0x5a8] sm:$0xff]
    %v967 = vld [vmem:[#allocation10 + $0x5b0] sm:$0xff]
    %v968 = vld [vmem:[#allocation10 + $0x5b8] sm:$0xff]
    %v969 = vld [vmem:[#allocation10 + $0x5c0] sm:$0xff]
    %v970 = vld [vmem:[#allocation10 + $0x5c8] sm:$0xff]
    %v971 = vld [vmem:[#allocation10 + $0x5d0] sm:$0xff]
    %v972 = vld [vmem:[#allocation10 + $0x5d8] sm:$0xff]
    %v973 = vld [vmem:[#allocation10 + $0x5e0] sm:$0xff]
    %v974 = vld [vmem:[#allocation10 + $0x5e8] sm:$0xff]
    %v975 = vld [vmem:[#allocation10 + $0x5f0] sm:$0xff]
    %v976 = vld [vmem:[#allocation10 + $0x5f8] sm:$0xff]
    %v977 = vld [vmem:[#allocation10 + $0x600] sm:$0xff]
    %v978 = vld [vmem:[#allocation10 + $0x608] sm:$0xff]
    %v979 = vld [vmem:[#allocation10 + $0x610] sm:$0xff]
    %v980 = vld [vmem:[#allocation10 + $0x618] sm:$0xff]
    %v981 = vld [vmem:[#allocation10 + $0x620] sm:$0xff]
    %v982 = vld [vmem:[#allocation10 + $0x628] sm:$0xff]
    %v983 = vld [vmem:[#allocation10 + $0x630] sm:$0xff]
    %v984 = vld [vmem:[#allocation10 + $0x638] sm:$0xff]
    %v985 = vld [vmem:[#allocation10 + $0x640] sm:$0xff]
    %v986 = vld [vmem:[#allocation10 + $0x648] sm:$0xff]
    %v987 = vld [vmem:[#allocation10 + $0x650] sm:$0xff]
    %v988 = vld [vmem:[#allocation10 + $0x658] sm:$0xff]
    %v989 = vld [vmem:[#allocation10 + $0x660] sm:$0xff]
    %v990 = vld [vmem:[#allocation10 + $0x668] sm:$0xff]
    %v991 = vld [vmem:[#allocation10 + $0x670] sm:$0xff]
    %v992 = vld [vmem:[#allocation10 + $0x678] sm:$0xff]
    %v993 = vld [vmem:[#allocation10 + $0x680] sm:$0xff]
    %v994 = vld [vmem:[#allocation10 + $0x688] sm:$0xff]
    %v995 = vld [vmem:[#allocation10 + $0x690] sm:$0xff]
    %v996 = vld [vmem:[#allocation10 + $0x698] sm:$0xff]
    %v997 = vld [vmem:[#allocation10 + $0x6a0] sm:$0xff]
    %v998 = vld [vmem:[#allocation10 + $0x6a8] sm:$0xff]
    %v999 = vld [vmem:[#allocation10 + $0x6b0] sm:$0xff]
    %v1000 = vld [vmem:[#allocation10 + $0x6b8] sm:$0xff]
    %v1001 = vld [vmem:[#allocation10 + $0x6c0] sm:$0xff]
    %v1002 = vld [vmem:[#allocation10 + $0x6c8] sm:$0xff]
    %v1003 = vld [vmem:[#allocation10 + $0x6d0] sm:$0xff]
    %v1004 = vld [vmem:[#allocation10 + $0x6d8] sm:$0xff]
    %v1005 = vld [vmem:[#allocation10 + $0x6e0] sm:$0xff]
    %v1006 = vld [vmem:[#allocation10 + $0x6e8] sm:$0xff]
    %v1007 = vld [vmem:[#allocation10 + $0x6f0] sm:$0xff]
    %v1008 = vld [vmem:[#allocation10 + $0x6f8] sm:$0xff]
    %v1009 = vld [vmem:[#allocation10 + $0x700] sm:$0xff]
    %v1010 = vld [vmem:[#allocation10 + $0x708] sm:$0xff]
    %v1011 = vld [vmem:[#allocation10 + $0x710] sm:$0xff]
    %v1012 = vld [vmem:[#allocation10 + $0x718] sm:$0xff]
    %v1013 = vld [vmem:[#allocation10 + $0x720] sm:$0xff]
    %v1014 = vld [vmem:[#allocation10 + $0x728] sm:$0xff]
    %v1015 = vld [vmem:[#allocation10 + $0x730] sm:$0xff]
    %v1016 = vld [vmem:[#allocation10 + $0x738] sm:$0xff]
    %v1017 = vld [vmem:[#allocation10 + $0x740] sm:$0xff]
    %v1018 = vld [vmem:[#allocation10 + $0x748] sm:$0xff]
    %v1019 = vld [vmem:[#allocation10 + $0x750] sm:$0xff]
    %v1020 = vld [vmem:[#allocation10 + $0x758] sm:$0xff]
    %v1021 = vld [vmem:[#allocation10 + $0x760] sm:$0xff]
    %v1022 = vld [vmem:[#allocation10 + $0x768] sm:$0xff]
    %v1023 = vld [vmem:[#allocation10 + $0x770] sm:$0xff]
    %v1024 = vld [vmem:[#allocation10 + $0x778] sm:$0xff]
    %v1025 = vld [vmem:[#allocation10 + $0x780] sm:$0xff]
    %v1026 = vld [vmem:[#allocation10 + $0x788] sm:$0xff]
    %v1027 = vld [vmem:[#allocation10 + $0x790] sm:$0xff]
    %v1028 = vld [vmem:[#allocation10 + $0x798] sm:$0xff]
    %v1029 = vld [vmem:[#allocation10 + $0x7a0] sm:$0xff]
    %v1030 = vld [vmem:[#allocation10 + $0x7a8] sm:$0xff]
    %v1031 = vld [vmem:[#allocation10 + $0x7b0] sm:$0xff]
    %v1032 = vld [vmem:[#allocation10 + $0x7b8] sm:$0xff]
    %v1033 = vld [vmem:[#allocation10 + $0x7c0] sm:$0xff]
    %v1034 = vld [vmem:[#allocation10 + $0x7c8] sm:$0xff]
    %v1035 = vld [vmem:[#allocation10 + $0x7d0] sm:$0xff]
    %v1036 = vld [vmem:[#allocation10 + $0x7d8] sm:$0xff]
    %v1037 = vld [vmem:[#allocation10 + $0x7e0] sm:$0xff]
    %v1038 = vld [vmem:[#allocation10 + $0x7e8] sm:$0xff]
    %v1039 = vld [vmem:[#allocation10 + $0x7f0] sm:$0xff]
    %v1040 = vld [vmem:[#allocation10 + $0x7f8] sm:$0xff]
    %v1041 = vld [vmem:[#allocation11] sm:$0xff]
    %v1043 = vlaneseq
    %v1044 = vshrl.u32 %v1043, 7
    %v1045 = vsub.s32 0, %v1044
    %v1046 = vrot.slane %v1041, %v1045
    %v1047 = vlaneseq
    %v1048 = vshrl.u32 %v1047, 7
    %v1049 = vsub.s32 1, %v1048
    %v1050 = vrot.slane %v1041, %v1049
    %v1051 = vlaneseq
    %v1052 = vshrl.u32 %v1051, 7
    %v1053 = vsub.s32 2, %v1052
    %v1054 = vrot.slane %v1041, %v1053
    %v1055 = vlaneseq
    %v1056 = vshrl.u32 %v1055, 7
    %v1057 = vsub.s32 3, %v1056
    %v1058 = vrot.slane %v1041, %v1057
    %v1059 = vlaneseq
    %v1060 = vshrl.u32 %v1059, 7
    %v1061 = vsub.s32 4, %v1060
    %v1062 = vrot.slane %v1041, %v1061
    %v1063 = vlaneseq
    %v1064 = vshrl.u32 %v1063, 7
    %v1065 = vsub.s32 5, %v1064
    %v1066 = vrot.slane %v1041, %v1065
    %v1067 = vlaneseq
    %v1068 = vshrl.u32 %v1067, 7
    %v1069 = vsub.s32 6, %v1068
    %v1070 = vrot.slane %v1041, %v1069
    %v1071 = vlaneseq
    %v1072 = vshrl.u32 %v1071, 7
    %v1073 = vsub.s32 7, %v1072
    %v1074 = vrot.slane %v1041, %v1073
    %v1339 = vunpack.c.l.b16 %v785
    %v1340 = vunpack.c.h.b16 %v785
    %v1341 = vunpack.c.l.b16 %v786
    %v1342 = vunpack.c.h.b16 %v786
    %v1343 = vunpack.c.l.b16 %v787
    %v1344 = vunpack.c.h.b16 %v787
    %v1345 = vunpack.c.l.b16 %v788
    %v1346 = vunpack.c.h.b16 %v788
    %v1347 = vunpack.c.l.b16 %v789
    %v1348 = vunpack.c.h.b16 %v789
    %v1349 = vunpack.c.l.b16 %v790
    %v1350 = vunpack.c.h.b16 %v790
    %v1351 = vunpack.c.l.b16 %v791
    %v1352 = vunpack.c.h.b16 %v791
    %v1353 = vunpack.c.l.b16 %v792
    %v1354 = vunpack.c.h.b16 %v792
    %v1355 = vunpack.c.l.b16 %v793
    %v1356 = vunpack.c.h.b16 %v793
    %v1357 = vunpack.c.l.b16 %v794
    %v1358 = vunpack.c.h.b16 %v794
    %v1359 = vunpack.c.l.b16 %v795
    %v1360 = vunpack.c.h.b16 %v795
    %v1361 = vunpack.c.l.b16 %v796
    %v1362 = vunpack.c.h.b16 %v796
    %v1363 = vunpack.c.l.b16 %v797
    %v1364 = vunpack.c.h.b16 %v797
    %v1365 = vunpack.c.l.b16 %v798
    %v1366 = vunpack.c.h.b16 %v798
    %v1367 = vunpack.c.l.b16 %v799
    %v1368 = vunpack.c.h.b16 %v799
    %v1369 = vunpack.c.l.b16 %v800
    %v1370 = vunpack.c.h.b16 %v800
    %v1371 = vunpack.c.l.b16 %v801
    %v1372 = vunpack.c.h.b16 %v801
    %v1373 = vunpack.c.l.b16 %v802
    %v1374 = vunpack.c.h.b16 %v802
    %v1375 = vunpack.c.l.b16 %v803
    %v1376 = vunpack.c.h.b16 %v803
    %v1377 = vunpack.c.l.b16 %v804
    %v1378 = vunpack.c.h.b16 %v804
    %v1379 = vunpack.c.l.b16 %v805
    %v1380 = vunpack.c.h.b16 %v805
    %v1381 = vunpack.c.l.b16 %v806
    %v1382 = vunpack.c.h.b16 %v806
    %v1383 = vunpack.c.l.b16 %v807
    %v1384 = vunpack.c.h.b16 %v807
    %v1385 = vunpack.c.l.b16 %v808
    %v1386 = vunpack.c.h.b16 %v808
    %v1387 = vunpack.c.l.b16 %v809
    %v1388 = vunpack.c.h.b16 %v809
    %v1389 = vunpack.c.l.b16 %v810
    %v1390 = vunpack.c.h.b16 %v810
    %v1391 = vunpack.c.l.b16 %v811
    %v1392 = vunpack.c.h.b16 %v811
    %v1393 = vunpack.c.l.b16 %v812
    %v1394 = vunpack.c.h.b16 %v812
    %v1395 = vunpack.c.l.b16 %v813
    %v1396 = vunpack.c.h.b16 %v813
    %v1397 = vunpack.c.l.b16 %v814
    %v1398 = vunpack.c.h.b16 %v814
    %v1399 = vunpack.c.l.b16 %v815
    %v1400 = vunpack.c.h.b16 %v815
    %v1401 = vunpack.c.l.b16 %v816
    %v1402 = vunpack.c.h.b16 %v816
    %v1403 = vunpack.c.l.b16 %v817
    %v1404 = vunpack.c.h.b16 %v817
    %v1405 = vunpack.c.l.b16 %v818
    %v1406 = vunpack.c.h.b16 %v818
    %v1407 = vunpack.c.l.b16 %v819
    %v1408 = vunpack.c.h.b16 %v819
    %v1409 = vunpack.c.l.b16 %v820
    %v1410 = vunpack.c.h.b16 %v820
    %v1411 = vunpack.c.l.b16 %v821
    %v1412 = vunpack.c.h.b16 %v821
    %v1413 = vunpack.c.l.b16 %v822
    %v1414 = vunpack.c.h.b16 %v822
    %v1415 = vunpack.c.l.b16 %v823
    %v1416 = vunpack.c.h.b16 %v823
    %v1417 = vunpack.c.l.b16 %v824
    %v1418 = vunpack.c.h.b16 %v824
    %v1419 = vunpack.c.l.b16 %v825
    %v1420 = vunpack.c.h.b16 %v825
    %v1421 = vunpack.c.l.b16 %v826
    %v1422 = vunpack.c.h.b16 %v826
    %v1423 = vunpack.c.l.b16 %v827
    %v1424 = vunpack.c.h.b16 %v827
    %v1425 = vunpack.c.l.b16 %v828
    %v1426 = vunpack.c.h.b16 %v828
    %v1427 = vunpack.c.l.b16 %v829
    %v1428 = vunpack.c.h.b16 %v829
    %v1429 = vunpack.c.l.b16 %v830
    %v1430 = vunpack.c.h.b16 %v830
    %v1431 = vunpack.c.l.b16 %v831
    %v1432 = vunpack.c.h.b16 %v831
    %v1433 = vunpack.c.l.b16 %v832
    %v1434 = vunpack.c.h.b16 %v832
    %v1435 = vunpack.c.l.b16 %v833
    %v1436 = vunpack.c.h.b16 %v833
    %v1437 = vunpack.c.l.b16 %v834
    %v1438 = vunpack.c.h.b16 %v834
    %v1439 = vunpack.c.l.b16 %v835
    %v1440 = vunpack.c.h.b16 %v835
    %v1441 = vunpack.c.l.b16 %v836
    %v1442 = vunpack.c.h.b16 %v836
    %v1443 = vunpack.c.l.b16 %v837
    %v1444 = vunpack.c.h.b16 %v837
    %v1445 = vunpack.c.l.b16 %v838
    %v1446 = vunpack.c.h.b16 %v838
    %v1447 = vunpack.c.l.b16 %v839
    %v1448 = vunpack.c.h.b16 %v839
    %v1449 = vunpack.c.l.b16 %v840
    %v1450 = vunpack.c.h.b16 %v840
    %v1451 = vunpack.c.l.b16 %v841
    %v1452 = vunpack.c.h.b16 %v841
    %v1453 = vunpack.c.l.b16 %v842
    %v1454 = vunpack.c.h.b16 %v842
    %v1455 = vunpack.c.l.b16 %v843
    %v1456 = vunpack.c.h.b16 %v843
    %v1457 = vunpack.c.l.b16 %v844
    %v1458 = vunpack.c.h.b16 %v844
    %v1459 = vunpack.c.l.b16 %v845
    %v1460 = vunpack.c.h.b16 %v845
    %v1461 = vunpack.c.l.b16 %v846
    %v1462 = vunpack.c.h.b16 %v846
    %v1463 = vunpack.c.l.b16 %v847
    %v1464 = vunpack.c.h.b16 %v847
    %v1465 = vunpack.c.l.b16 %v848
    %v1466 = vunpack.c.h.b16 %v848
    %v1467 = vunpack.c.l.b16 %v849
    %v1468 = vunpack.c.h.b16 %v849
    %v1469 = vunpack.c.l.b16 %v850
    %v1470 = vunpack.c.h.b16 %v850
    %v1471 = vunpack.c.l.b16 %v851
    %v1472 = vunpack.c.h.b16 %v851
    %v1473 = vunpack.c.l.b16 %v852
    %v1474 = vunpack.c.h.b16 %v852
    %v1475 = vunpack.c.l.b16 %v853
    %v1476 = vunpack.c.h.b16 %v853
    %v1477 = vunpack.c.l.b16 %v854
    %v1478 = vunpack.c.h.b16 %v854
    %v1479 = vunpack.c.l.b16 %v855
    %v1480 = vunpack.c.h.b16 %v855
    %v1481 = vunpack.c.l.b16 %v856
    %v1482 = vunpack.c.h.b16 %v856
    %v1483 = vunpack.c.l.b16 %v857
    %v1484 = vunpack.c.h.b16 %v857
    %v1485 = vunpack.c.l.b16 %v858
    %v1486 = vunpack.c.h.b16 %v858
    %v1487 = vunpack.c.l.b16 %v859
    %v1488 = vunpack.c.h.b16 %v859
    %v1489 = vunpack.c.l.b16 %v860
    %v1490 = vunpack.c.h.b16 %v860
    %v1491 = vunpack.c.l.b16 %v861
    %v1492 = vunpack.c.h.b16 %v861
    %v1493 = vunpack.c.l.b16 %v862
    %v1494 = vunpack.c.h.b16 %v862
    %v1495 = vunpack.c.l.b16 %v863
    %v1496 = vunpack.c.h.b16 %v863
    %v1497 = vunpack.c.l.b16 %v864
    %v1498 = vunpack.c.h.b16 %v864
    %v1499 = vunpack.c.l.b16 %v865
    %v1500 = vunpack.c.h.b16 %v865
    %v1501 = vunpack.c.l.b16 %v866
    %v1502 = vunpack.c.h.b16 %v866
    %v1503 = vunpack.c.l.b16 %v867
    %v1504 = vunpack.c.h.b16 %v867
    %v1505 = vunpack.c.l.b16 %v868
    %v1506 = vunpack.c.h.b16 %v868
    %v1507 = vunpack.c.l.b16 %v869
    %v1508 = vunpack.c.h.b16 %v869
    %v1509 = vunpack.c.l.b16 %v870
    %v1510 = vunpack.c.h.b16 %v870
    %v1511 = vunpack.c.l.b16 %v871
    %v1512 = vunpack.c.h.b16 %v871
    %v1513 = vunpack.c.l.b16 %v872
    %v1514 = vunpack.c.h.b16 %v872
    %v1515 = vunpack.c.l.b16 %v873
    %v1516 = vunpack.c.h.b16 %v873
    %v1517 = vunpack.c.l.b16 %v874
    %v1518 = vunpack.c.h.b16 %v874
    %v1519 = vunpack.c.l.b16 %v875
    %v1520 = vunpack.c.h.b16 %v875
    %v1521 = vunpack.c.l.b16 %v876
    %v1522 = vunpack.c.h.b16 %v876
    %v1523 = vunpack.c.l.b16 %v877
    %v1524 = vunpack.c.h.b16 %v877
    %v1525 = vunpack.c.l.b16 %v878
    %v1526 = vunpack.c.h.b16 %v878
    %v1527 = vunpack.c.l.b16 %v879
    %v1528 = vunpack.c.h.b16 %v879
    %v1529 = vunpack.c.l.b16 %v880
    %v1530 = vunpack.c.h.b16 %v880
    %v1531 = vunpack.c.l.b16 %v881
    %v1532 = vunpack.c.h.b16 %v881
    %v1533 = vunpack.c.l.b16 %v882
    %v1534 = vunpack.c.h.b16 %v882
    %v1535 = vunpack.c.l.b16 %v883
    %v1536 = vunpack.c.h.b16 %v883
    %v1537 = vunpack.c.l.b16 %v884
    %v1538 = vunpack.c.h.b16 %v884
    %v1539 = vunpack.c.l.b16 %v885
    %v1540 = vunpack.c.h.b16 %v885
    %v1541 = vunpack.c.l.b16 %v886
    %v1542 = vunpack.c.h.b16 %v886
    %v1543 = vunpack.c.l.b16 %v887
    %v1544 = vunpack.c.h.b16 %v887
    %v1545 = vunpack.c.l.b16 %v888
    %v1546 = vunpack.c.h.b16 %v888
    %v1547 = vunpack.c.l.b16 %v889
    %v1548 = vunpack.c.h.b16 %v889
    %v1549 = vunpack.c.l.b16 %v890
    %v1550 = vunpack.c.h.b16 %v890
    %v1551 = vunpack.c.l.b16 %v891
    %v1552 = vunpack.c.h.b16 %v891
    %v1553 = vunpack.c.l.b16 %v892
    %v1554 = vunpack.c.h.b16 %v892
    %v1555 = vunpack.c.l.b16 %v893
    %v1556 = vunpack.c.h.b16 %v893
    %v1557 = vunpack.c.l.b16 %v894
    %v1558 = vunpack.c.h.b16 %v894
    %v1559 = vunpack.c.l.b16 %v895
    %v1560 = vunpack.c.h.b16 %v895
    %v1561 = vunpack.c.l.b16 %v896
    %v1562 = vunpack.c.h.b16 %v896
    %v1563 = vunpack.c.l.b16 %v897
    %v1564 = vunpack.c.h.b16 %v897
    %v1565 = vunpack.c.l.b16 %v898
    %v1566 = vunpack.c.h.b16 %v898
    %v1567 = vunpack.c.l.b16 %v899
    %v1568 = vunpack.c.h.b16 %v899
    %v1569 = vunpack.c.l.b16 %v900
    %v1570 = vunpack.c.h.b16 %v900
    %v1571 = vunpack.c.l.b16 %v901
    %v1572 = vunpack.c.h.b16 %v901
    %v1573 = vunpack.c.l.b16 %v902
    %v1574 = vunpack.c.h.b16 %v902
    %v1575 = vunpack.c.l.b16 %v903
    %v1576 = vunpack.c.h.b16 %v903
    %v1577 = vunpack.c.l.b16 %v904
    %v1578 = vunpack.c.h.b16 %v904
    %v1579 = vunpack.c.l.b16 %v905
    %v1580 = vunpack.c.h.b16 %v905
    %v1581 = vunpack.c.l.b16 %v906
    %v1582 = vunpack.c.h.b16 %v906
    %v1583 = vunpack.c.l.b16 %v907
    %v1584 = vunpack.c.h.b16 %v907
    %v1585 = vunpack.c.l.b16 %v908
    %v1586 = vunpack.c.h.b16 %v908
    %v1587 = vunpack.c.l.b16 %v909
    %v1588 = vunpack.c.h.b16 %v909
    %v1589 = vunpack.c.l.b16 %v910
    %v1590 = vunpack.c.h.b16 %v910
    %v1591 = vunpack.c.l.b16 %v911
    %v1592 = vunpack.c.h.b16 %v911
    %v1593 = vunpack.c.l.b16 %v912
    %v1594 = vunpack.c.h.b16 %v912
    %v1595 = vunpack.c.l.b16 %v913
    %v1596 = vunpack.c.h.b16 %v913
    %v1597 = vunpack.c.l.b16 %v914
    %v1598 = vunpack.c.h.b16 %v914
    %v1599 = vunpack.c.l.b16 %v915
    %v1600 = vunpack.c.h.b16 %v915
    %v1601 = vunpack.c.l.b16 %v916
    %v1602 = vunpack.c.h.b16 %v916
    %v1603 = vunpack.c.l.b16 %v917
    %v1604 = vunpack.c.h.b16 %v917
    %v1605 = vunpack.c.l.b16 %v918
    %v1606 = vunpack.c.h.b16 %v918
    %v1607 = vunpack.c.l.b16 %v919
    %v1608 = vunpack.c.h.b16 %v919
    %v1609 = vunpack.c.l.b16 %v920
    %v1610 = vunpack.c.h.b16 %v920
    %v1611 = vunpack.c.l.b16 %v921
    %v1612 = vunpack.c.h.b16 %v921
    %v1613 = vunpack.c.l.b16 %v922
    %v1614 = vunpack.c.h.b16 %v922
    %v1615 = vunpack.c.l.b16 %v923
    %v1616 = vunpack.c.h.b16 %v923
    %v1617 = vunpack.c.l.b16 %v924
    %v1618 = vunpack.c.h.b16 %v924
    %v1619 = vunpack.c.l.b16 %v925
    %v1620 = vunpack.c.h.b16 %v925
    %v1621 = vunpack.c.l.b16 %v926
    %v1622 = vunpack.c.h.b16 %v926
    %v1623 = vunpack.c.l.b16 %v927
    %v1624 = vunpack.c.h.b16 %v927
    %v1625 = vunpack.c.l.b16 %v928
    %v1626 = vunpack.c.h.b16 %v928
    %v1627 = vunpack.c.l.b16 %v929
    %v1628 = vunpack.c.h.b16 %v929
    %v1629 = vunpack.c.l.b16 %v930
    %v1630 = vunpack.c.h.b16 %v930
    %v1631 = vunpack.c.l.b16 %v931
    %v1632 = vunpack.c.h.b16 %v931
    %v1633 = vunpack.c.l.b16 %v932
    %v1634 = vunpack.c.h.b16 %v932
    %v1635 = vunpack.c.l.b16 %v933
    %v1636 = vunpack.c.h.b16 %v933
    %v1637 = vunpack.c.l.b16 %v934
    %v1638 = vunpack.c.h.b16 %v934
    %v1639 = vunpack.c.l.b16 %v935
    %v1640 = vunpack.c.h.b16 %v935
    %v1641 = vunpack.c.l.b16 %v936
    %v1642 = vunpack.c.h.b16 %v936
    %v1643 = vunpack.c.l.b16 %v937
    %v1644 = vunpack.c.h.b16 %v937
    %v1645 = vunpack.c.l.b16 %v938
    %v1646 = vunpack.c.h.b16 %v938
    %v1647 = vunpack.c.l.b16 %v939
    %v1648 = vunpack.c.h.b16 %v939
    %v1649 = vunpack.c.l.b16 %v940
    %v1650 = vunpack.c.h.b16 %v940
    %v1651 = vunpack.c.l.b16 %v941
    %v1652 = vunpack.c.h.b16 %v941
    %v1653 = vunpack.c.l.b16 %v942
    %v1654 = vunpack.c.h.b16 %v942
    %v1655 = vunpack.c.l.b16 %v943
    %v1656 = vunpack.c.h.b16 %v943
    %v1657 = vunpack.c.l.b16 %v944
    %v1658 = vunpack.c.h.b16 %v944
    %v1659 = vunpack.c.l.b16 %v945
    %v1660 = vunpack.c.h.b16 %v945
    %v1661 = vunpack.c.l.b16 %v946
    %v1662 = vunpack.c.h.b16 %v946
    %v1663 = vunpack.c.l.b16 %v947
    %v1664 = vunpack.c.h.b16 %v947
    %v1665 = vunpack.c.l.b16 %v948
    %v1666 = vunpack.c.h.b16 %v948
    %v1667 = vunpack.c.l.b16 %v949
    %v1668 = vunpack.c.h.b16 %v949
    %v1669 = vunpack.c.l.b16 %v950
    %v1670 = vunpack.c.h.b16 %v950
    %v1671 = vunpack.c.l.b16 %v951
    %v1672 = vunpack.c.h.b16 %v951
    %v1673 = vunpack.c.l.b16 %v952
    %v1674 = vunpack.c.h.b16 %v952
    %v1675 = vunpack.c.l.b16 %v953
    %v1676 = vunpack.c.h.b16 %v953
    %v1677 = vunpack.c.l.b16 %v954
    %v1678 = vunpack.c.h.b16 %v954
    %v1679 = vunpack.c.l.b16 %v955
    %v1680 = vunpack.c.h.b16 %v955
    %v1681 = vunpack.c.l.b16 %v956
    %v1682 = vunpack.c.h.b16 %v956
    %v1683 = vunpack.c.l.b16 %v957
    %v1684 = vunpack.c.h.b16 %v957
    %v1685 = vunpack.c.l.b16 %v958
    %v1686 = vunpack.c.h.b16 %v958
    %v1687 = vunpack.c.l.b16 %v959
    %v1688 = vunpack.c.h.b16 %v959
    %v1689 = vunpack.c.l.b16 %v960
    %v1690 = vunpack.c.h.b16 %v960
    %v1691 = vunpack.c.l.b16 %v961
    %v1692 = vunpack.c.h.b16 %v961
    %v1693 = vunpack.c.l.b16 %v962
    %v1694 = vunpack.c.h.b16 %v962
    %v1695 = vunpack.c.l.b16 %v963
    %v1696 = vunpack.c.h.b16 %v963
    %v1697 = vunpack.c.l.b16 %v964
    %v1698 = vunpack.c.h.b16 %v964
    %v1699 = vunpack.c.l.b16 %v965
    %v1700 = vunpack.c.h.b16 %v965
    %v1701 = vunpack.c.l.b16 %v966
    %v1702 = vunpack.c.h.b16 %v966
    %v1703 = vunpack.c.l.b16 %v967
    %v1704 = vunpack.c.h.b16 %v967
    %v1705 = vunpack.c.l.b16 %v968
    %v1706 = vunpack.c.h.b16 %v968
    %v1707 = vunpack.c.l.b16 %v969
    %v1708 = vunpack.c.h.b16 %v969
    %v1709 = vunpack.c.l.b16 %v970
    %v1710 = vunpack.c.h.b16 %v970
    %v1711 = vunpack.c.l.b16 %v971
    %v1712 = vunpack.c.h.b16 %v971
    %v1713 = vunpack.c.l.b16 %v972
    %v1714 = vunpack.c.h.b16 %v972
    %v1715 = vunpack.c.l.b16 %v973
    %v1716 = vunpack.c.h.b16 %v973
    %v1717 = vunpack.c.l.b16 %v974
    %v1718 = vunpack.c.h.b16 %v974
    %v1719 = vunpack.c.l.b16 %v975
    %v1720 = vunpack.c.h.b16 %v975
    %v1721 = vunpack.c.l.b16 %v976
    %v1722 = vunpack.c.h.b16 %v976
    %v1723 = vunpack.c.l.b16 %v977
    %v1724 = vunpack.c.h.b16 %v977
    %v1725 = vunpack.c.l.b16 %v978
    %v1726 = vunpack.c.h.b16 %v978
    %v1727 = vunpack.c.l.b16 %v979
    %v1728 = vunpack.c.h.b16 %v979
    %v1729 = vunpack.c.l.b16 %v980
    %v1730 = vunpack.c.h.b16 %v980
    %v1731 = vunpack.c.l.b16 %v981
    %v1732 = vunpack.c.h.b16 %v981
    %v1733 = vunpack.c.l.b16 %v982
    %v1734 = vunpack.c.h.b16 %v982
    %v1735 = vunpack.c.l.b16 %v983
    %v1736 = vunpack.c.h.b16 %v983
    %v1737 = vunpack.c.l.b16 %v984
    %v1738 = vunpack.c.h.b16 %v984
    %v1739 = vunpack.c.l.b16 %v985
    %v1740 = vunpack.c.h.b16 %v985
    %v1741 = vunpack.c.l.b16 %v986
    %v1742 = vunpack.c.h.b16 %v986
    %v1743 = vunpack.c.l.b16 %v987
    %v1744 = vunpack.c.h.b16 %v987
    %v1745 = vunpack.c.l.b16 %v988
    %v1746 = vunpack.c.h.b16 %v988
    %v1747 = vunpack.c.l.b16 %v989
    %v1748 = vunpack.c.h.b16 %v989
    %v1749 = vunpack.c.l.b16 %v990
    %v1750 = vunpack.c.h.b16 %v990
    %v1751 = vunpack.c.l.b16 %v991
    %v1752 = vunpack.c.h.b16 %v991
    %v1753 = vunpack.c.l.b16 %v992
    %v1754 = vunpack.c.h.b16 %v992
    %v1755 = vunpack.c.l.b16 %v993
    %v1756 = vunpack.c.h.b16 %v993
    %v1757 = vunpack.c.l.b16 %v994
    %v1758 = vunpack.c.h.b16 %v994
    %v1759 = vunpack.c.l.b16 %v995
    %v1760 = vunpack.c.h.b16 %v995
    %v1761 = vunpack.c.l.b16 %v996
    %v1762 = vunpack.c.h.b16 %v996
    %v1763 = vunpack.c.l.b16 %v997
    %v1764 = vunpack.c.h.b16 %v997
    %v1765 = vunpack.c.l.b16 %v998
    %v1766 = vunpack.c.h.b16 %v998
    %v1767 = vunpack.c.l.b16 %v999
    %v1768 = vunpack.c.h.b16 %v999
    %v1769 = vunpack.c.l.b16 %v1000
    %v1770 = vunpack.c.h.b16 %v1000
    %v1771 = vunpack.c.l.b16 %v1001
    %v1772 = vunpack.c.h.b16 %v1001
    %v1773 = vunpack.c.l.b16 %v1002
    %v1774 = vunpack.c.h.b16 %v1002
    %v1775 = vunpack.c.l.b16 %v1003
    %v1776 = vunpack.c.h.b16 %v1003
    %v1777 = vunpack.c.l.b16 %v1004
    %v1778 = vunpack.c.h.b16 %v1004
    %v1779 = vunpack.c.l.b16 %v1005
    %v1780 = vunpack.c.h.b16 %v1005
    %v1781 = vunpack.c.l.b16 %v1006
    %v1782 = vunpack.c.h.b16 %v1006
    %v1783 = vunpack.c.l.b16 %v1007
    %v1784 = vunpack.c.h.b16 %v1007
    %v1785 = vunpack.c.l.b16 %v1008
    %v1786 = vunpack.c.h.b16 %v1008
    %v1787 = vunpack.c.l.b16 %v1009
    %v1788 = vunpack.c.h.b16 %v1009
    %v1789 = vunpack.c.l.b16 %v1010
    %v1790 = vunpack.c.h.b16 %v1010
    %v1791 = vunpack.c.l.b16 %v1011
    %v1792 = vunpack.c.h.b16 %v1011
    %v1793 = vunpack.c.l.b16 %v1012
    %v1794 = vunpack.c.h.b16 %v1012
    %v1795 = vunpack.c.l.b16 %v1013
    %v1796 = vunpack.c.h.b16 %v1013
    %v1797 = vunpack.c.l.b16 %v1014
    %v1798 = vunpack.c.h.b16 %v1014
    %v1799 = vunpack.c.l.b16 %v1015
    %v1800 = vunpack.c.h.b16 %v1015
    %v1801 = vunpack.c.l.b16 %v1016
    %v1802 = vunpack.c.h.b16 %v1016
    %v1803 = vunpack.c.l.b16 %v1017
    %v1804 = vunpack.c.h.b16 %v1017
    %v1805 = vunpack.c.l.b16 %v1018
    %v1806 = vunpack.c.h.b16 %v1018
    %v1807 = vunpack.c.l.b16 %v1019
    %v1808 = vunpack.c.h.b16 %v1019
    %v1809 = vunpack.c.l.b16 %v1020
    %v1810 = vunpack.c.h.b16 %v1020
    %v1811 = vunpack.c.l.b16 %v1021
    %v1812 = vunpack.c.h.b16 %v1021
    %v1813 = vunpack.c.l.b16 %v1022
    %v1814 = vunpack.c.h.b16 %v1022
    %v1815 = vunpack.c.l.b16 %v1023
    %v1816 = vunpack.c.h.b16 %v1023
    %v1817 = vunpack.c.l.b16 %v1024
    %v1818 = vunpack.c.h.b16 %v1024
    %v1819 = vunpack.c.l.b16 %v1025
    %v1820 = vunpack.c.h.b16 %v1025
    %v1821 = vunpack.c.l.b16 %v1026
    %v1822 = vunpack.c.h.b16 %v1026
    %v1823 = vunpack.c.l.b16 %v1027
    %v1824 = vunpack.c.h.b16 %v1027
    %v1825 = vunpack.c.l.b16 %v1028
    %v1826 = vunpack.c.h.b16 %v1028
    %v1827 = vunpack.c.l.b16 %v1029
    %v1828 = vunpack.c.h.b16 %v1029
    %v1829 = vunpack.c.l.b16 %v1030
    %v1830 = vunpack.c.h.b16 %v1030
    %v1831 = vunpack.c.l.b16 %v1031
    %v1832 = vunpack.c.h.b16 %v1031
    %v1833 = vunpack.c.l.b16 %v1032
    %v1834 = vunpack.c.h.b16 %v1032
    %v1835 = vunpack.c.l.b16 %v1033
    %v1836 = vunpack.c.h.b16 %v1033
    %v1837 = vunpack.c.l.b16 %v1034
    %v1838 = vunpack.c.h.b16 %v1034
    %v1839 = vunpack.c.l.b16 %v1035
    %v1840 = vunpack.c.h.b16 %v1035
    %v1841 = vunpack.c.l.b16 %v1036
    %v1842 = vunpack.c.h.b16 %v1036
    %v1843 = vunpack.c.l.b16 %v1037
    %v1844 = vunpack.c.h.b16 %v1037
    %v1845 = vunpack.c.l.b16 %v1038
    %v1846 = vunpack.c.h.b16 %v1038
    %v1847 = vunpack.c.l.b16 %v1039
    %v1848 = vunpack.c.h.b16 %v1039
    %v1849 = vunpack.c.l.b16 %v1040
    %v1850 = vunpack.c.h.b16 %v1040
    %v1851 = vpack.c.b16 %v1347, %v1339
    %v1852 = vpack.c.b16 %v1348, %v1340
    %v1853 = vpack.c.b16 %v1349, %v1341
    %v1854 = vpack.c.b16 %v1350, %v1342
    %v1855 = vpack.c.b16 %v1351, %v1343
    %v1856 = vpack.c.b16 %v1352, %v1344
    %v1857 = vpack.c.b16 %v1353, %v1345
    %v1858 = vpack.c.b16 %v1354, %v1346
    %v1859 = vpack.c.b16 %v1363, %v1355
    %v1860 = vpack.c.b16 %v1364, %v1356
    %v1861 = vpack.c.b16 %v1365, %v1357
    %v1862 = vpack.c.b16 %v1366, %v1358
    %v1863 = vpack.c.b16 %v1367, %v1359
    %v1864 = vpack.c.b16 %v1368, %v1360
    %v1865 = vpack.c.b16 %v1369, %v1361
    %v1866 = vpack.c.b16 %v1370, %v1362
    %v1867 = vpack.c.b16 %v1379, %v1371
    %v1868 = vpack.c.b16 %v1380, %v1372
    %v1869 = vpack.c.b16 %v1381, %v1373
    %v1870 = vpack.c.b16 %v1382, %v1374
    %v1871 = vpack.c.b16 %v1383, %v1375
    %v1872 = vpack.c.b16 %v1384, %v1376
    %v1873 = vpack.c.b16 %v1385, %v1377
    %v1874 = vpack.c.b16 %v1386, %v1378
    %v1875 = vpack.c.b16 %v1395, %v1387
    %v1876 = vpack.c.b16 %v1396, %v1388
    %v1877 = vpack.c.b16 %v1397, %v1389
    %v1878 = vpack.c.b16 %v1398, %v1390
    %v1879 = vpack.c.b16 %v1399, %v1391
    %v1880 = vpack.c.b16 %v1400, %v1392
    %v1881 = vpack.c.b16 %v1401, %v1393
    %v1882 = vpack.c.b16 %v1402, %v1394
    %v1883 = vpack.c.b16 %v1411, %v1403
    %v1884 = vpack.c.b16 %v1412, %v1404
    %v1885 = vpack.c.b16 %v1413, %v1405
    %v1886 = vpack.c.b16 %v1414, %v1406
    %v1887 = vpack.c.b16 %v1415, %v1407
    %v1888 = vpack.c.b16 %v1416, %v1408
    %v1889 = vpack.c.b16 %v1417, %v1409
    %v1890 = vpack.c.b16 %v1418, %v1410
    %v1891 = vpack.c.b16 %v1427, %v1419
    %v1892 = vpack.c.b16 %v1428, %v1420
    %v1893 = vpack.c.b16 %v1429, %v1421
    %v1894 = vpack.c.b16 %v1430, %v1422
    %v1895 = vpack.c.b16 %v1431, %v1423
    %v1896 = vpack.c.b16 %v1432, %v1424
    %v1897 = vpack.c.b16 %v1433, %v1425
    %v1898 = vpack.c.b16 %v1434, %v1426
    %v1899 = vpack.c.b16 %v1443, %v1435
    %v1900 = vpack.c.b16 %v1444, %v1436
    %v1901 = vpack.c.b16 %v1445, %v1437
    %v1902 = vpack.c.b16 %v1446, %v1438
    %v1903 = vpack.c.b16 %v1447, %v1439
    %v1904 = vpack.c.b16 %v1448, %v1440
    %v1905 = vpack.c.b16 %v1449, %v1441
    %v1906 = vpack.c.b16 %v1450, %v1442
    %v1907 = vpack.c.b16 %v1459, %v1451
    %v1908 = vpack.c.b16 %v1460, %v1452
    %v1909 = vpack.c.b16 %v1461, %v1453
    %v1910 = vpack.c.b16 %v1462, %v1454
    %v1911 = vpack.c.b16 %v1463, %v1455
    %v1912 = vpack.c.b16 %v1464, %v1456
    %v1913 = vpack.c.b16 %v1465, %v1457
    %v1914 = vpack.c.b16 %v1466, %v1458
    %v1915 = vpack.c.b16 %v1475, %v1467
    %v1916 = vpack.c.b16 %v1476, %v1468
    %v1917 = vpack.c.b16 %v1477, %v1469
    %v1918 = vpack.c.b16 %v1478, %v1470
    %v1919 = vpack.c.b16 %v1479, %v1471
    %v1920 = vpack.c.b16 %v1480, %v1472
    %v1921 = vpack.c.b16 %v1481, %v1473
    %v1922 = vpack.c.b16 %v1482, %v1474
    %v1923 = vpack.c.b16 %v1491, %v1483
    %v1924 = vpack.c.b16 %v1492, %v1484
    %v1925 = vpack.c.b16 %v1493, %v1485
    %v1926 = vpack.c.b16 %v1494, %v1486
    %v1927 = vpack.c.b16 %v1495, %v1487
    %v1928 = vpack.c.b16 %v1496, %v1488
    %v1929 = vpack.c.b16 %v1497, %v1489
    %v1930 = vpack.c.b16 %v1498, %v1490
    %v1931 = vpack.c.b16 %v1507, %v1499
    %v1932 = vpack.c.b16 %v1508, %v1500
    %v1933 = vpack.c.b16 %v1509, %v1501
    %v1934 = vpack.c.b16 %v1510, %v1502
    %v1935 = vpack.c.b16 %v1511, %v1503
    %v1936 = vpack.c.b16 %v1512, %v1504
    %v1937 = vpack.c.b16 %v1513, %v1505
    %v1938 = vpack.c.b16 %v1514, %v1506
    %v1939 = vpack.c.b16 %v1523, %v1515
    %v1940 = vpack.c.b16 %v1524, %v1516
    %v1941 = vpack.c.b16 %v1525, %v1517
    %v1942 = vpack.c.b16 %v1526, %v1518
    %v1943 = vpack.c.b16 %v1527, %v1519
    %v1944 = vpack.c.b16 %v1528, %v1520
    %v1945 = vpack.c.b16 %v1529, %v1521
    %v1946 = vpack.c.b16 %v1530, %v1522
    %v1947 = vpack.c.b16 %v1539, %v1531
    %v1948 = vpack.c.b16 %v1540, %v1532
    %v1949 = vpack.c.b16 %v1541, %v1533
    %v1950 = vpack.c.b16 %v1542, %v1534
    %v1951 = vpack.c.b16 %v1543, %v1535
    %v1952 = vpack.c.b16 %v1544, %v1536
    %v1953 = vpack.c.b16 %v1545, %v1537
    %v1954 = vpack.c.b16 %v1546, %v1538
    %v1955 = vpack.c.b16 %v1555, %v1547
    %v1956 = vpack.c.b16 %v1556, %v1548
    %v1957 = vpack.c.b16 %v1557, %v1549
    %v1958 = vpack.c.b16 %v1558, %v1550
    %v1959 = vpack.c.b16 %v1559, %v1551
    %v1960 = vpack.c.b16 %v1560, %v1552
    %v1961 = vpack.c.b16 %v1561, %v1553
    %v1962 = vpack.c.b16 %v1562, %v1554
    %v1963 = vpack.c.b16 %v1571, %v1563
    %v1964 = vpack.c.b16 %v1572, %v1564
    %v1965 = vpack.c.b16 %v1573, %v1565
    %v1966 = vpack.c.b16 %v1574, %v1566
    %v1967 = vpack.c.b16 %v1575, %v1567
    %v1968 = vpack.c.b16 %v1576, %v1568
    %v1969 = vpack.c.b16 %v1577, %v1569
    %v1970 = vpack.c.b16 %v1578, %v1570
    %v1971 = vpack.c.b16 %v1587, %v1579
    %v1972 = vpack.c.b16 %v1588, %v1580
    %v1973 = vpack.c.b16 %v1589, %v1581
    %v1974 = vpack.c.b16 %v1590, %v1582
    %v1975 = vpack.c.b16 %v1591, %v1583
    %v1976 = vpack.c.b16 %v1592, %v1584
    %v1977 = vpack.c.b16 %v1593, %v1585
    %v1978 = vpack.c.b16 %v1594, %v1586
    %v1979 = vpack.c.b16 %v1603, %v1595
    %v1980 = vpack.c.b16 %v1604, %v1596
    %v1981 = vpack.c.b16 %v1605, %v1597
    %v1982 = vpack.c.b16 %v1606, %v1598
    %v1983 = vpack.c.b16 %v1607, %v1599
    %v1984 = vpack.c.b16 %v1608, %v1600
    %v1985 = vpack.c.b16 %v1609, %v1601
    %v1986 = vpack.c.b16 %v1610, %v1602
    %v1987 = vpack.c.b16 %v1619, %v1611
    %v1988 = vpack.c.b16 %v1620, %v1612
    %v1989 = vpack.c.b16 %v1621, %v1613
    %v1990 = vpack.c.b16 %v1622, %v1614
    %v1991 = vpack.c.b16 %v1623, %v1615
    %v1992 = vpack.c.b16 %v1624, %v1616
    %v1993 = vpack.c.b16 %v1625, %v1617
    %v1994 = vpack.c.b16 %v1626, %v1618
    %v1995 = vpack.c.b16 %v1635, %v1627
    %v1996 = vpack.c.b16 %v1636, %v1628
    %v1997 = vpack.c.b16 %v1637, %v1629
    %v1998 = vpack.c.b16 %v1638, %v1630
    %v1999 = vpack.c.b16 %v1639, %v1631
    %v2000 = vpack.c.b16 %v1640, %v1632
    %v2001 = vpack.c.b16 %v1641, %v1633
    %v2002 = vpack.c.b16 %v1642, %v1634
    %v2003 = vpack.c.b16 %v1651, %v1643
    %v2004 = vpack.c.b16 %v1652, %v1644
    %v2005 = vpack.c.b16 %v1653, %v1645
    %v2006 = vpack.c.b16 %v1654, %v1646
    %v2007 = vpack.c.b16 %v1655, %v1647
    %v2008 = vpack.c.b16 %v1656, %v1648
    %v2009 = vpack.c.b16 %v1657, %v1649
    %v2010 = vpack.c.b16 %v1658, %v1650
    %v2011 = vpack.c.b16 %v1667, %v1659
    %v2012 = vpack.c.b16 %v1668, %v1660
    %v2013 = vpack.c.b16 %v1669, %v1661
    %v2014 = vpack.c.b16 %v1670, %v1662
    %v2015 = vpack.c.b16 %v1671, %v1663
    %v2016 = vpack.c.b16 %v1672, %v1664
    %v2017 = vpack.c.b16 %v1673, %v1665
    %v2018 = vpack.c.b16 %v1674, %v1666
    %v2019 = vpack.c.b16 %v1683, %v1675
    %v2020 = vpack.c.b16 %v1684, %v1676
    %v2021 = vpack.c.b16 %v1685, %v1677
    %v2022 = vpack.c.b16 %v1686, %v1678
    %v2023 = vpack.c.b16 %v1687, %v1679
    %v2024 = vpack.c.b16 %v1688, %v1680
    %v2025 = vpack.c.b16 %v1689, %v1681
    %v2026 = vpack.c.b16 %v1690, %v1682
    %v2027 = vpack.c.b16 %v1699, %v1691
    %v2028 = vpack.c.b16 %v1700, %v1692
    %v2029 = vpack.c.b16 %v1701, %v1693
    %v2030 = vpack.c.b16 %v1702, %v1694
    %v2031 = vpack.c.b16 %v1703, %v1695
    %v2032 = vpack.c.b16 %v1704, %v1696
    %v2033 = vpack.c.b16 %v1705, %v1697
    %v2034 = vpack.c.b16 %v1706, %v1698
    %v2035 = vpack.c.b16 %v1715, %v1707
    %v2036 = vpack.c.b16 %v1716, %v1708
    %v2037 = vpack.c.b16 %v1717, %v1709
    %v2038 = vpack.c.b16 %v1718, %v1710
    %v2039 = vpack.c.b16 %v1719, %v1711
    %v2040 = vpack.c.b16 %v1720, %v1712
    %v2041 = vpack.c.b16 %v1721, %v1713
    %v2042 = vpack.c.b16 %v1722, %v1714
    %v2043 = vpack.c.b16 %v1731, %v1723
    %v2044 = vpack.c.b16 %v1732, %v1724
    %v2045 = vpack.c.b16 %v1733, %v1725
    %v2046 = vpack.c.b16 %v1734, %v1726
    %v2047 = vpack.c.b16 %v1735, %v1727
    %v2048 = vpack.c.b16 %v1736, %v1728
    %v2049 = vpack.c.b16 %v1737, %v1729
    %v2050 = vpack.c.b16 %v1738, %v1730
    %v2051 = vpack.c.b16 %v1747, %v1739
    %v2052 = vpack.c.b16 %v1748, %v1740
    %v2053 = vpack.c.b16 %v1749, %v1741
    %v2054 = vpack.c.b16 %v1750, %v1742
    %v2055 = vpack.c.b16 %v1751, %v1743
    %v2056 = vpack.c.b16 %v1752, %v1744
    %v2057 = vpack.c.b16 %v1753, %v1745
    %v2058 = vpack.c.b16 %v1754, %v1746
    %v2059 = vpack.c.b16 %v1763, %v1755
    %v2060 = vpack.c.b16 %v1764, %v1756
    %v2061 = vpack.c.b16 %v1765, %v1757
    %v2062 = vpack.c.b16 %v1766, %v1758
    %v2063 = vpack.c.b16 %v1767, %v1759
    %v2064 = vpack.c.b16 %v1768, %v1760
    %v2065 = vpack.c.b16 %v1769, %v1761
    %v2066 = vpack.c.b16 %v1770, %v1762
    %v2067 = vpack.c.b16 %v1779, %v1771
    %v2068 = vpack.c.b16 %v1780, %v1772
    %v2069 = vpack.c.b16 %v1781, %v1773
    %v2070 = vpack.c.b16 %v1782, %v1774
    %v2071 = vpack.c.b16 %v1783, %v1775
    %v2072 = vpack.c.b16 %v1784, %v1776
    %v2073 = vpack.c.b16 %v1785, %v1777
    %v2074 = vpack.c.b16 %v1786, %v1778
    %v2075 = vpack.c.b16 %v1795, %v1787
    %v2076 = vpack.c.b16 %v1796, %v1788
    %v2077 = vpack.c.b16 %v1797, %v1789
    %v2078 = vpack.c.b16 %v1798, %v1790
    %v2079 = vpack.c.b16 %v1799, %v1791
    %v2080 = vpack.c.b16 %v1800, %v1792
    %v2081 = vpack.c.b16 %v1801, %v1793
    %v2082 = vpack.c.b16 %v1802, %v1794
    %v2083 = vpack.c.b16 %v1811, %v1803
    %v2084 = vpack.c.b16 %v1812, %v1804
    %v2085 = vpack.c.b16 %v1813, %v1805
    %v2086 = vpack.c.b16 %v1814, %v1806
    %v2087 = vpack.c.b16 %v1815, %v1807
    %v2088 = vpack.c.b16 %v1816, %v1808
    %v2089 = vpack.c.b16 %v1817, %v1809
    %v2090 = vpack.c.b16 %v1818, %v1810
    %v2091 = vpack.c.b16 %v1827, %v1819
    %v2092 = vpack.c.b16 %v1828, %v1820
    %v2093 = vpack.c.b16 %v1829, %v1821
    %v2094 = vpack.c.b16 %v1830, %v1822
    %v2095 = vpack.c.b16 %v1831, %v1823
    %v2096 = vpack.c.b16 %v1832, %v1824
    %v2097 = vpack.c.b16 %v1833, %v1825
    %v2098 = vpack.c.b16 %v1834, %v1826
    %v2099 = vpack.c.b16 %v1843, %v1835
    %v2100 = vpack.c.b16 %v1844, %v1836
    %v2101 = vpack.c.b16 %v1845, %v1837
    %v2102 = vpack.c.b16 %v1846, %v1838
    %v2103 = vpack.c.b16 %v1847, %v1839
    %v2104 = vpack.c.b16 %v1848, %v1840
    %v2105 = vpack.c.b16 %v1849, %v1841
    %v2106 = vpack.c.b16 %v1850, %v1842
    %2363 = vmatprep.subr.bf16.mxu0 %v1852
    %2364 = vmatpush1.bf16.msra.mxu0 %v1851
    %2365 = vmatprep.subr.bf16.mxu0 %v1860
    %2366 = vmatpush1.bf16.msra.mxu0 %v1859
    %2367 = vmatprep.subr.bf16.mxu0 %v1868
    %2368 = vmatpush1.bf16.msra.mxu0 %v1867
    %2369 = vmatprep.subr.bf16.mxu0 %v1876
    %2370 = vmatpush1.bf16.msra.mxu0 %v1875
    %2371 = vmatprep.subr.bf16.mxu0 %v1884
    %2372 = vmatpush1.bf16.msra.mxu0 %v1883
    %2373 = vmatprep.subr.bf16.mxu0 %v1892
    %2374 = vmatpush1.bf16.msra.mxu0 %v1891
    %2375 = vmatprep.subr.bf16.mxu0 %v1900
    %2376 = vmatpush1.bf16.msra.mxu0 %v1899
    %2377 = vmatprep.subr.bf16.mxu0 %v1908
    %2378 = vmatpush1.bf16.msra.mxu0 %v1907
    %2379 = vmatprep.subr.bf16.mxu0 %v1916
    %2380 = vmatpush1.bf16.msra.mxu0 %v1915
    %2381 = vmatprep.subr.bf16.mxu0 %v1924
    %2382 = vmatpush1.bf16.msra.mxu0 %v1923
    %2383 = vmatprep.subr.bf16.mxu0 %v1932
    %2384 = vmatpush1.bf16.msra.mxu0 %v1931
    %2385 = vmatprep.subr.bf16.mxu0 %v1940
    %2386 = vmatpush1.bf16.msra.mxu0 %v1939
    %2387 = vmatprep.subr.bf16.mxu0 %v1948
    %2388 = vmatpush1.bf16.msra.mxu0 %v1947
    %2389 = vmatprep.subr.bf16.mxu0 %v1956
    %2390 = vmatpush1.bf16.msra.mxu0 %v1955
    %2391 = vmatprep.subr.bf16.mxu0 %v1964
    %2392 = vmatpush1.bf16.msra.mxu0 %v1963
    %2393 = vmatprep.subr.bf16.mxu0 %v1972
    %2394 = vmatpush1.bf16.msra.mxu0 %v1971
    %2395 = vmatprep.mubr.bf16.mxu0 %v782
    %2396 = vmatmul.mubr.bf16.gmra.mrb[0].mxu0 %v781
    %v2397 = vpop.f32.mrb[0].mxu0
    %v2398 = vadd.f32 %v1046, %v2397
    %v2399 = vpop.f32.mrb[0].mxu0
    %v2400 = vadd.f32 %v1050, %v2399
    %v2401 = vpop.f32.mrb[0].mxu0
    %v2402 = vpop.f32.mrb[0].mxu0
    %2403 = vdwg.mxu0
    %2404 = vmatprep.subr.bf16.mxu0 %v1980
    %2405 = vmatpush1.bf16.msra.mxu0 %v1979
    %2406 = vmatprep.subr.bf16.mxu0 %v1988
    %2407 = vmatpush1.bf16.msra.mxu0 %v1987
    %2408 = vmatprep.subr.bf16.mxu0 %v1996
    %2409 = vmatpush1.bf16.msra.mxu0 %v1995
    %2410 = vmatprep.subr.bf16.mxu0 %v2004
    %2411 = vmatpush1.bf16.msra.mxu0 %v2003
    %2412 = vmatprep.subr.bf16.mxu0 %v2012
    %2413 = vmatpush1.bf16.msra.mxu0 %v2011
    %2414 = vmatprep.subr.bf16.mxu0 %v2020
    %2415 = vmatpush1.bf16.msra.mxu0 %v2019
    %2416 = vmatprep.subr.bf16.mxu0 %v2028
    %2417 = vmatpush1.bf16.msra.mxu0 %v2027
    %2418 = vmatprep.subr.bf16.mxu0 %v2036
    %2419 = vmatpush1.bf16.msra.mxu0 %v2035
    %2420 = vmatprep.subr.bf16.mxu0 %v2044
    %2421 = vmatpush1.bf16.msra.mxu0 %v2043
    %2422 = vmatprep.subr.bf16.mxu0 %v2052
    %2423 = vmatpush1.bf16.msra.mxu0 %v2051
    %2424 = vmatprep.subr.bf16.mxu0 %v2060
    %2425 = vmatpush1.bf16.msra.mxu0 %v2059
    %2426 = vmatprep.subr.bf16.mxu0 %v2068
    %2427 = vmatpush1.bf16.msra.mxu0 %v2067
    %2428 = vmatprep.subr.bf16.mxu0 %v2076
    %2429 = vmatpush1.bf16.msra.mxu0 %v2075
    %2430 = vmatprep.subr.bf16.mxu0 %v2084
    %2431 = vmatpush1.bf16.msra.mxu0 %v2083
    %2432 = vmatprep.subr.bf16.mxu0 %v2092
    %2433 = vmatpush1.bf16.msra.mxu0 %v2091
    %2434 = vmatprep.subr.bf16.mxu0 %v2100
    %2435 = vmatpush1.bf16.msra.mxu0 %v2099
    %2436 = vmatprep.mubr.bf16.mxu0 %v784
    %2437 = vmatmul.mubr.bf16.gmra.mrb[0].mxu0 %v783
    %v2438 = vpop.f32.mrb[0].mxu0
    %v2439 = vadd.f32 %v2398, %v2438
    %v2440 = vpop.f32.mrb[0].mxu0
    %v2441 = vadd.f32 %v2400, %v2440
    %v2442 = vpop.f32.mrb[0].mxu0
    %v2443 = vpop.f32.mrb[0].mxu0
    %2444 = vdwg.mxu0
    %2445 = vmatprep.subr.bf16.mxu0 %v1854
    %2446 = vmatpush1.bf16.msra.mxu0 %v1853
    %2447 = vmatprep.subr.bf16.mxu0 %v1862
    %2448 = vmatpush1.bf16.msra.mxu0 %v1861
    %2449 = vmatprep.subr.bf16.mxu0 %v1870
    %2450 = vmatpush1.bf16.msra.mxu0 %v1869
    %2451 = vmatprep.subr.bf16.mxu0 %v1878
    %2452 = vmatpush1.bf16.msra.mxu0 %v1877
    %2453 = vmatprep.subr.bf16.mxu0 %v1886
    %2454 = vmatpush1.bf16.msra.mxu0 %v1885
    %2455 = vmatprep.subr.bf16.mxu0 %v1894
    %2456 = vmatpush1.bf16.msra.mxu0 %v1893
    %2457 = vmatprep.subr.bf16.mxu0 %v1902
    %2458 = vmatpush1.bf16.msra.mxu0 %v1901
    %2459 = vmatprep.subr.bf16.mxu0 %v1910
    %2460 = vmatpush1.bf16.msra.mxu0 %v1909
    %2461 = vmatprep.subr.bf16.mxu0 %v1918
    %2462 = vmatpush1.bf16.msra.mxu0 %v1917
    %2463 = vmatprep.subr.bf16.mxu0 %v1926
    %2464 = vmatpush1.bf16.msra.mxu0 %v1925
    %2465 = vmatprep.subr.bf16.mxu0 %v1934
    %2466 = vmatpush1.bf16.msra.mxu0 %v1933
    %2467 = vmatprep.subr.bf16.mxu0 %v1942
    %2468 = vmatpush1.bf16.msra.mxu0 %v1941
    %2469 = vmatprep.subr.bf16.mxu0 %v1950
    %2470 = vmatpush1.bf16.msra.mxu0 %v1949
    %2471 = vmatprep.subr.bf16.mxu0 %v1958
    %2472 = vmatpush1.bf16.msra.mxu0 %v1957
    %2473 = vmatprep.subr.bf16.mxu0 %v1966
    %2474 = vmatpush1.bf16.msra.mxu0 %v1965
    %2475 = vmatprep.subr.bf16.mxu0 %v1974
    %2476 = vmatpush1.bf16.msra.mxu0 %v1973
    %2477 = vmatprep.mubr.bf16.mxu0 %v782
    %2478 = vmatmul.mubr.bf16.gmra.mrb[0].mxu0 %v781
    %v2479 = vpop.f32.mrb[0].mxu0
    %v2480 = vadd.f32 %v1054, %v2479
    %v2481 = vpop.f32.mrb[0].mxu0
    %v2482 = vadd.f32 %v1058, %v2481
    %v2483 = vpop.f32.mrb[0].mxu0
    %v2484 = vpop.f32.mrb[0].mxu0
    %2485 = vdwg.mxu0
    %2486 = vmatprep.subr.bf16.mxu0 %v1982
    %2487 = vmatpush1.bf16.msra.mxu0 %v1981
    %2488 = vmatprep.subr.bf16.mxu0 %v1990
    %2489 = vmatpush1.bf16.msra.mxu0 %v1989
    %2490 = vmatprep.subr.bf16.mxu0 %v1998
    %2491 = vmatpush1.bf16.msra.mxu0 %v1997
    %2492 = vmatprep.subr.bf16.mxu0 %v2006
    %2493 = vmatpush1.bf16.msra.mxu0 %v2005
    %2494 = vmatprep.subr.bf16.mxu0 %v2014
    %2495 = vmatpush1.bf16.msra.mxu0 %v2013
    %2496 = vmatprep.subr.bf16.mxu0 %v2022
    %2497 = vmatpush1.bf16.msra.mxu0 %v2021
    %2498 = vmatprep.subr.bf16.mxu0 %v2030
    %2499 = vmatpush1.bf16.msra.mxu0 %v2029
    %2500 = vmatprep.subr.bf16.mxu0 %v2038
    %2501 = vmatpush1.bf16.msra.mxu0 %v2037
    %2502 = vmatprep.subr.bf16.mxu0 %v2046
    %2503 = vmatpush1.bf16.msra.mxu0 %v2045
    %2504 = vmatprep.subr.bf16.mxu0 %v2054
    %2505 = vmatpush1.bf16.msra.mxu0 %v2053
    %2506 = vmatprep.subr.bf16.mxu0 %v2062
    %2507 = vmatpush1.bf16.msra.mxu0 %v2061
    %2508 = vmatprep.subr.bf16.mxu0 %v2070
    %2509 = vmatpush1.bf16.msra.mxu0 %v2069
    %2510 = vmatprep.subr.bf16.mxu0 %v2078
    %2511 = vmatpush1.bf16.msra.mxu0 %v2077
    %2512 = vmatprep.subr.bf16.mxu0 %v2086
    %2513 = vmatpush1.bf16.msra.mxu0 %v2085
    %2514 = vmatprep.subr.bf16.mxu0 %v2094
    %2515 = vmatpush1.bf16.msra.mxu0 %v2093
    %2516 = vmatprep.subr.bf16.mxu0 %v2102
    %2517 = vmatpush1.bf16.msra.mxu0 %v2101
    %2518 = vmatprep.mubr.bf16.mxu0 %v784
    %2519 = vmatmul.mubr.bf16.gmra.mrb[0].mxu0 %v783
    %v2520 = vpop.f32.mrb[0].mxu0
    %v2521 = vadd.f32 %v2480, %v2520
    %v2522 = vpop.f32.mrb[0].mxu0
    %v2523 = vadd.f32 %v2482, %v2522
    %v2524 = vpop.f32.mrb[0].mxu0
    %v2525 = vpop.f32.mrb[0].mxu0
    %2526 = vdwg.mxu0
    %2527 = vmatprep.subr.bf16.mxu0 %v1856
    %2528 = vmatpush1.bf16.msra.mxu0 %v1855
    %2529 = vmatprep.subr.bf16.mxu0 %v1864
    %2530 = vmatpush1.bf16.msra.mxu0 %v1863
    %2531 = vmatprep.subr.bf16.mxu0 %v1872
    %2532 = vmatpush1.bf16.msra.mxu0 %v1871
    %2533 = vmatprep.subr.bf16.mxu0 %v1880
    %2534 = vmatpush1.bf16.msra.mxu0 %v1879
    %2535 = vmatprep.subr.bf16.mxu0 %v1888
    %2536 = vmatpush1.bf16.msra.mxu0 %v1887
    %2537 = vmatprep.subr.bf16.mxu0 %v1896
    %2538 = vmatpush1.bf16.msra.mxu0 %v1895
    %2539 = vmatprep.subr.bf16.mxu0 %v1904
    %2540 = vmatpush1.bf16.msra.mxu0 %v1903
    %2541 = vmatprep.subr.bf16.mxu0 %v1912
    %2542 = vmatpush1.bf16.msra.mxu0 %v1911
    %2543 = vmatprep.subr.bf16.mxu0 %v1920
    %2544 = vmatpush1.bf16.msra.mxu0 %v1919
    %2545 = vmatprep.subr.bf16.mxu0 %v1928
    %2546 = vmatpush1.bf16.msra.mxu0 %v1927
    %2547 = vmatprep.subr.bf16.mxu0 %v1936
    %2548 = vmatpush1.bf16.msra.mxu0 %v1935
    %2549 = vmatprep.subr.bf16.mxu0 %v1944
    %2550 = vmatpush1.bf16.msra.mxu0 %v1943
    %2551 = vmatprep.subr.bf16.mxu0 %v1952
    %2552 = vmatpush1.bf16.msra.mxu0 %v1951
    %2553 = vmatprep.subr.bf16.mxu0 %v1960
    %2554 = vmatpush1.bf16.msra.mxu0 %v1959
    %2555 = vmatprep.subr.bf16.mxu0 %v1968
    %2556 = vmatpush1.bf16.msra.mxu0 %v1967
    %2557 = vmatprep.subr.bf16.mxu0 %v1976
    %2558 = vmatpush1.bf16.msra.mxu0 %v1975
    %2559 = vmatprep.mubr.bf16.mxu0 %v782
    %2560 = vmatmul.mubr.bf16.gmra.mrb[0].mxu0 %v781
    %v2561 = vpop.f32.mrb[0].mxu0
    %v2562 = vadd.f32 %v1062, %v2561
    %v2563 = vpop.f32.mrb[0].mxu0
    %v2564 = vadd.f32 %v1066, %v2563
    %v2565 = vpop.f32.mrb[0].mxu0
    %v2566 = vpop.f32.mrb[0].mxu0
    %2567 = vdwg.mxu0
    %2568 = vmatprep.subr.bf16.mxu0 %v1984
    %2569 = vmatpush1.bf16.msra.mxu0 %v1983
    %2570 = vmatprep.subr.bf16.mxu0 %v1992
    %2571 = vmatpush1.bf16.msra.mxu0 %v1991
    %2572 = vmatprep.subr.bf16.mxu0 %v2000
    %2573 = vmatpush1.bf16.msra.mxu0 %v1999
    %2574 = vmatprep.subr.bf16.mxu0 %v2008
    %2575 = vmatpush1.bf16.msra.mxu0 %v2007
    %2576 = vmatprep.subr.bf16.mxu0 %v2016
    %2577 = vmatpush1.bf16.msra.mxu0 %v2015
    %2578 = vmatprep.subr.bf16.mxu0 %v2024
    %2579 = vmatpush1.bf16.msra.mxu0 %v2023
    %2580 = vmatprep.subr.bf16.mxu0 %v2032
    %2581 = vmatpush1.bf16.msra.mxu0 %v2031
    %2582 = vmatprep.subr.bf16.mxu0 %v2040
    %2583 = vmatpush1.bf16.msra.mxu0 %v2039
    %2584 = vmatprep.subr.bf16.mxu0 %v2048
    %2585 = vmatpush1.bf16.msra.mxu0 %v2047
    %2586 = vmatprep.subr.bf16.mxu0 %v2056
    %2587 = vmatpush1.bf16.msra.mxu0 %v2055
    %2588 = vmatprep.subr.bf16.mxu0 %v2064
    %2589 = vmatpush1.bf16.msra.mxu0 %v2063
    %2590 = vmatprep.subr.bf16.mxu0 %v2072
    %2591 = vmatpush1.bf16.msra.mxu0 %v2071
    %2592 = vmatprep.subr.bf16.mxu0 %v2080
    %2593 = vmatpush1.bf16.msra.mxu0 %v2079
    %2594 = vmatprep.subr.bf16.mxu0 %v2088
    %2595 = vmatpush1.bf16.msra.mxu0 %v2087
    %2596 = vmatprep.subr.bf16.mxu0 %v2096
    %2597 = vmatpush1.bf16.msra.mxu0 %v2095
    %2598 = vmatprep.subr.bf16.mxu0 %v2104
    %2599 = vmatpush1.bf16.msra.mxu0 %v2103
    %2600 = vmatprep.mubr.bf16.mxu0 %v784
    %2601 = vmatmul.mubr.bf16.gmra.mrb[0].mxu0 %v783
    %v2602 = vpop.f32.mrb[0].mxu0
    %v2603 = vadd.f32 %v2562, %v2602
    %v2604 = vpop.f32.mrb[0].mxu0
    %v2605 = vadd.f32 %v2564, %v2604
    %v2606 = vpop.f32.mrb[0].mxu0
    %v2607 = vpop.f32.mrb[0].mxu0
    %2608 = vdwg.mxu0
    %2609 = vmatprep.subr.bf16.mxu0 %v1858
    %2610 = vmatpush1.bf16.msra.mxu0 %v1857
    %2611 = vmatprep.subr.bf16.mxu0 %v1866
    %2612 = vmatpush1.bf16.msra.mxu0 %v1865
    %2613 = vmatprep.subr.bf16.mxu0 %v1874
    %2614 = vmatpush1.bf16.msra.mxu0 %v1873
    %2615 = vmatprep.subr.bf16.mxu0 %v1882
    %2616 = vmatpush1.bf16.msra.mxu0 %v1881
    %2617 = vmatprep.subr.bf16.mxu0 %v1890
    %2618 = vmatpush1.bf16.msra.mxu0 %v1889
    %2619 = vmatprep.subr.bf16.mxu0 %v1898
    %2620 = vmatpush1.bf16.msra.mxu0 %v1897
    %2621 = vmatprep.subr.bf16.mxu0 %v1906
    %2622 = vmatpush1.bf16.msra.mxu0 %v1905
    %2623 = vmatprep.subr.bf16.mxu0 %v1914
    %2624 = vmatpush1.bf16.msra.mxu0 %v1913
    %2625 = vmatprep.subr.bf16.mxu0 %v1922
    %2626 = vmatpush1.bf16.msra.mxu0 %v1921
    %2627 = vmatprep.subr.bf16.mxu0 %v1930
    %2628 = vmatpush1.bf16.msra.mxu0 %v1929
    %2629 = vmatprep.subr.bf16.mxu0 %v1938
    %2630 = vmatpush1.bf16.msra.mxu0 %v1937
    %2631 = vmatprep.subr.bf16.mxu0 %v1946
    %2632 = vmatpush1.bf16.msra.mxu0 %v1945
    %2633 = vmatprep.subr.bf16.mxu0 %v1954
    %2634 = vmatpush1.bf16.msra.mxu0 %v1953
    %2635 = vmatprep.subr.bf16.mxu0 %v1962
    %2636 = vmatpush1.bf16.msra.mxu0 %v1961
    %2637 = vmatprep.subr.bf16.mxu0 %v1970
    %2638 = vmatpush1.bf16.msra.mxu0 %v1969
    %2639 = vmatprep.subr.bf16.mxu0 %v1978
    %2640 = vmatpush1.bf16.msra.mxu0 %v1977
    %2641 = vmatprep.mubr.bf16.mxu0 %v782
    %2642 = vmatmul.mubr.bf16.gmra.mrb[0].mxu0 %v781
    %v2643 = vpop.f32.mrb[0].mxu0
    %v2644 = vadd.f32 %v1070, %v2643
    %v2645 = vpop.f32.mrb[0].mxu0
    %v2646 = vadd.f32 %v1074, %v2645
    %v2647 = vpop.f32.mrb[0].mxu0
    %v2648 = vpop.f32.mrb[0].mxu0
    %2649 = vdwg.mxu0
    %2650 = vmatprep.subr.bf16.mxu0 %v1986
    %2651 = vmatpush1.bf16.msra.mxu0 %v1985
    %2652 = vmatprep.subr.bf16.mxu0 %v1994
    %2653 = vmatpush1.bf16.msra.mxu0 %v1993
    %2654 = vmatprep.subr.bf16.mxu0 %v2002
    %2655 = vmatpush1.bf16.msra.mxu0 %v2001
    %2656 = vmatprep.subr.bf16.mxu0 %v2010
    %2657 = vmatpush1.bf16.msra.mxu0 %v2009
    %2658 = vmatprep.subr.bf16.mxu0 %v2018
    %2659 = vmatpush1.bf16.msra.mxu0 %v2017
    %2660 = vmatprep.subr.bf16.mxu0 %v2026
    %2661 = vmatpush1.bf16.msra.mxu0 %v2025
    %2662 = vmatprep.subr.bf16.mxu0 %v2034
    %2663 = vmatpush1.bf16.msra.mxu0 %v2033
    %2664 = vmatprep.subr.bf16.mxu0 %v2042
    %2665 = vmatpush1.bf16.msra.mxu0 %v2041
    %2666 = vmatprep.subr.bf16.mxu0 %v2050
    %2667 = vmatpush1.bf16.msra.mxu0 %v2049
    %2668 = vmatprep.subr.bf16.mxu0 %v2058
    %2669 = vmatpush1.bf16.msra.mxu0 %v2057
    %2670 = vmatprep.subr.bf16.mxu0 %v2066
    %2671 = vmatpush1.bf16.msra.mxu0 %v2065
    %2672 = vmatprep.subr.bf16.mxu0 %v2074
    %2673 = vmatpush1.bf16.msra.mxu0 %v2073
    %2674 = vmatprep.subr.bf16.mxu0 %v2082
    %2675 = vmatpush1.bf16.msra.mxu0 %v2081
    %2676 = vmatprep.subr.bf16.mxu0 %v2090
    %2677 = vmatpush1.bf16.msra.mxu0 %v2089
    %2678 = vmatprep.subr.bf16.mxu0 %v2098
    %2679 = vmatpush1.bf16.msra.mxu0 %v2097
    %2680 = vmatprep.subr.bf16.mxu0 %v2106
    %2681 = vmatpush1.bf16.msra.mxu0 %v2105
    %2682 = vmatprep.mubr.bf16.mxu0 %v784
    %2683 = vmatmul.mubr.bf16.gmra.mrb[0].mxu0 %v783
    %v2684 = vpop.f32.mrb[0].mxu0
    %v2685 = vadd.f32 %v2644, %v2684
    %v2686 = vpop.f32.mrb[0].mxu0
    %v2687 = vadd.f32 %v2646, %v2686
    %v2688 = vpop.f32.mrb[0].mxu0
    %v2689 = vpop.f32.mrb[0].mxu0
    %2690 = vdwg.mxu0
    %v2691 = vmax.f32 %v2439, 0.0
    %v2692 = vmax.f32 %v2441, 0.0
    %v2693 = vmax.f32 %v2521, 0.0
    %v2694 = vmax.f32 %v2523, 0.0
    %v2695 = vmax.f32 %v2603, 0.0
    %v2696 = vmax.f32 %v2605, 0.0
    %v2697 = vmax.f32 %v2685, 0.0
    %v2698 = vmax.f32 %v2687, 0.0
    %v2699 = vpack.c.bf16 %v2691, %v2691
    %v2700 = vpack.c.bf16 %v2692, %v2692
    %v2701 = vpack.c.bf16 %v2693, %v2693
    %v2702 = vpack.c.bf16 %v2694, %v2694
    %v2703 = vpack.c.bf16 %v2695, %v2695
    %v2704 = vpack.c.bf16 %v2696, %v2696
    %v2705 = vpack.c.bf16 %v2697, %v2697
    %v2706 = vpack.c.bf16 %v2698, %v2698
    %v2707 = vld [vmem:[#allocation13] sm:$0xff]
    %v2708 = vld [vmem:[#allocation13 + $0x8] sm:$0xff]
    %v2709 = vld [vmem:[#allocation13 + $0x10] sm:$0xff]
    %v2710 = vld [vmem:[#allocation13 + $0x18] sm:$0xff]
    %v2711 = vld [vmem:[#allocation13 + $0x20] sm:$0xff]
    %v2712 = vld [vmem:[#allocation13 + $0x28] sm:$0xff]
    %v2713 = vld [vmem:[#allocation13 + $0x30] sm:$0xff]
    %v2714 = vld [vmem:[#allocation13 + $0x38] sm:$0xff]
    %v2715 = vld [vmem:[#allocation13 + $0x40] sm:$0xff]
    %v2716 = vld [vmem:[#allocation13 + $0x48] sm:$0xff]
    %v2717 = vld [vmem:[#allocation13 + $0x50] sm:$0xff]
    %v2718 = vld [vmem:[#allocation13 + $0x58] sm:$0xff]
    %v2719 = vld [vmem:[#allocation13 + $0x60] sm:$0xff]
    %v2720 = vld [vmem:[#allocation13 + $0x68] sm:$0xff]
    %v2721 = vld [vmem:[#allocation13 + $0x70] sm:$0xff]
    %v2722 = vld [vmem:[#allocation13 + $0x78] sm:$0xff]
    %v2723 = vld [vmem:[#allocation13 + $0x80] sm:$0xff]
    %v2724 = vld [vmem:[#allocation13 + $0x88] sm:$0xff]
    %v2725 = vld [vmem:[#allocation13 + $0x90] sm:$0xff]
    %v2726 = vld [vmem:[#allocation13 + $0x98] sm:$0xff]
    %v2727 = vld [vmem:[#allocation13 + $0xa0] sm:$0xff]
    %v2728 = vld [vmem:[#allocation13 + $0xa8] sm:$0xff]
    %v2729 = vld [vmem:[#allocation13 + $0xb0] sm:$0xff]
    %v2730 = vld [vmem:[#allocation13 + $0xb8] sm:$0xff]
    %v2731 = vld [vmem:[#allocation13 + $0xc0] sm:$0xff]
    %v2732 = vld [vmem:[#allocation13 + $0xc8] sm:$0xff]
    %v2733 = vld [vmem:[#allocation13 + $0xd0] sm:$0xff]
    %v2734 = vld [vmem:[#allocation13 + $0xd8] sm:$0xff]
    %v2735 = vld [vmem:[#allocation13 + $0xe0] sm:$0xff]
    %v2736 = vld [vmem:[#allocation13 + $0xe8] sm:$0xff]
    %v2737 = vld [vmem:[#allocation13 + $0xf0] sm:$0xff]
    %v2738 = vld [vmem:[#allocation13 + $0xf8] sm:$0xff]
    %v2739 = vld [vmem:[#allocation13 + $0x100] sm:$0xff]
    %v2740 = vld [vmem:[#allocation13 + $0x108] sm:$0xff]
    %v2741 = vld [vmem:[#allocation13 + $0x110] sm:$0xff]
    %v2742 = vld [vmem:[#allocation13 + $0x118] sm:$0xff]
    %v2743 = vld [vmem:[#allocation13 + $0x120] sm:$0xff]
    %v2744 = vld [vmem:[#allocation13 + $0x128] sm:$0xff]
    %v2745 = vld [vmem:[#allocation13 + $0x130] sm:$0xff]
    %v2746 = vld [vmem:[#allocation13 + $0x138] sm:$0xff]
    %v2747 = vld [vmem:[#allocation13 + $0x140] sm:$0xff]
    %v2748 = vld [vmem:[#allocation13 + $0x148] sm:$0xff]
    %v2749 = vld [vmem:[#allocation13 + $0x150] sm:$0xff]
    %v2750 = vld [vmem:[#allocation13 + $0x158] sm:$0xff]
    %v2751 = vld [vmem:[#allocation13 + $0x160] sm:$0xff]
    %v2752 = vld [vmem:[#allocation13 + $0x168] sm:$0xff]
    %v2753 = vld [vmem:[#allocation13 + $0x170] sm:$0xff]
    %v2754 = vld [vmem:[#allocation13 + $0x178] sm:$0xff]
    %v2755 = vld [vmem:[#allocation13 + $0x180] sm:$0xff]
    %v2756 = vld [vmem:[#allocation13 + $0x188] sm:$0xff]
    %v2757 = vld [vmem:[#allocation13 + $0x190] sm:$0xff]
    %v2758 = vld [vmem:[#allocation13 + $0x198] sm:$0xff]
    %v2759 = vld [vmem:[#allocation13 + $0x1a0] sm:$0xff]
    %v2760 = vld [vmem:[#allocation13 + $0x1a8] sm:$0xff]
    %v2761 = vld [vmem:[#allocation13 + $0x1b0] sm:$0xff]
    %v2762 = vld [vmem:[#allocation13 + $0x1b8] sm:$0xff]
    %v2763 = vld [vmem:[#allocation13 + $0x1c0] sm:$0xff]
    %v2764 = vld [vmem:[#allocation13 + $0x1c8] sm:$0xff]
    %v2765 = vld [vmem:[#allocation13 + $0x1d0] sm:$0xff]
    %v2766 = vld [vmem:[#allocation13 + $0x1d8] sm:$0xff]
    %v2767 = vld [vmem:[#allocation13 + $0x1e0] sm:$0xff]
    %v2768 = vld [vmem:[#allocation13 + $0x1e8] sm:$0xff]
    %v2769 = vld [vmem:[#allocation13 + $0x1f0] sm:$0xff]
    %v2770 = vld [vmem:[#allocation13 + $0x1f8] sm:$0xff]
    %v2771 = vld [vmem:[#allocation13 + $0x200] sm:$0xff]
    %v2772 = vld [vmem:[#allocation13 + $0x208] sm:$0xff]
    %v2773 = vld [vmem:[#allocation13 + $0x210] sm:$0xff]
    %v2774 = vld [vmem:[#allocation13 + $0x218] sm:$0xff]
    %v2775 = vld [vmem:[#allocation13 + $0x220] sm:$0xff]
    %v2776 = vld [vmem:[#allocation13 + $0x228] sm:$0xff]
    %v2777 = vld [vmem:[#allocation13 + $0x230] sm:$0xff]
    %v2778 = vld [vmem:[#allocation13 + $0x238] sm:$0xff]
    %v2779 = vld [vmem:[#allocation13 + $0x240] sm:$0xff]
    %v2780 = vld [vmem:[#allocation13 + $0x248] sm:$0xff]
    %v2781 = vld [vmem:[#allocation13 + $0x250] sm:$0xff]
    %v2782 = vld [vmem:[#allocation13 + $0x258] sm:$0xff]
    %v2783 = vld [vmem:[#allocation13 + $0x260] sm:$0xff]
    %v2784 = vld [vmem:[#allocation13 + $0x268] sm:$0xff]
    %v2785 = vld [vmem:[#allocation13 + $0x270] sm:$0xff]
    %v2786 = vld [vmem:[#allocation13 + $0x278] sm:$0xff]
    %v2787 = vld [vmem:[#allocation13 + $0x280] sm:$0xff]
    %v2788 = vld [vmem:[#allocation13 + $0x288] sm:$0xff]
    %v2789 = vld [vmem:[#allocation13 + $0x290] sm:$0xff]
    %v2790 = vld [vmem:[#allocation13 + $0x298] sm:$0xff]
    %v2791 = vld [vmem:[#allocation13 + $0x2a0] sm:$0xff]
    %v2792 = vld [vmem:[#allocation13 + $0x2a8] sm:$0xff]
    %v2793 = vld [vmem:[#allocation13 + $0x2b0] sm:$0xff]
    %v2794 = vld [vmem:[#allocation13 + $0x2b8] sm:$0xff]
    %v2795 = vld [vmem:[#allocation13 + $0x2c0] sm:$0xff]
    %v2796 = vld [vmem:[#allocation13 + $0x2c8] sm:$0xff]
    %v2797 = vld [vmem:[#allocation13 + $0x2d0] sm:$0xff]
    %v2798 = vld [vmem:[#allocation13 + $0x2d8] sm:$0xff]
    %v2799 = vld [vmem:[#allocation13 + $0x2e0] sm:$0xff]
    %v2800 = vld [vmem:[#allocation13 + $0x2e8] sm:$0xff]
    %v2801 = vld [vmem:[#allocation13 + $0x2f0] sm:$0xff]
    %v2802 = vld [vmem:[#allocation13 + $0x2f8] sm:$0xff]
    %v2803 = vld [vmem:[#allocation13 + $0x300] sm:$0xff]
    %v2804 = vld [vmem:[#allocation13 + $0x308] sm:$0xff]
    %v2805 = vld [vmem:[#allocation13 + $0x310] sm:$0xff]
    %v2806 = vld [vmem:[#allocation13 + $0x318] sm:$0xff]
    %v2807 = vld [vmem:[#allocation13 + $0x320] sm:$0xff]
    %v2808 = vld [vmem:[#allocation13 + $0x328] sm:$0xff]
    %v2809 = vld [vmem:[#allocation13 + $0x330] sm:$0xff]
    %v2810 = vld [vmem:[#allocation13 + $0x338] sm:$0xff]
    %v2811 = vld [vmem:[#allocation13 + $0x340] sm:$0xff]
    %v2812 = vld [vmem:[#allocation13 + $0x348] sm:$0xff]
    %v2813 = vld [vmem:[#allocation13 + $0x350] sm:$0xff]
    %v2814 = vld [vmem:[#allocation13 + $0x358] sm:$0xff]
    %v2815 = vld [vmem:[#allocation13 + $0x360] sm:$0xff]
    %v2816 = vld [vmem:[#allocation13 + $0x368] sm:$0xff]
    %v2817 = vld [vmem:[#allocation13 + $0x370] sm:$0xff]
    %v2818 = vld [vmem:[#allocation13 + $0x378] sm:$0xff]
    %v2819 = vld [vmem:[#allocation13 + $0x380] sm:$0xff]
    %v2820 = vld [vmem:[#allocation13 + $0x388] sm:$0xff]
    %v2821 = vld [vmem:[#allocation13 + $0x390] sm:$0xff]
    %v2822 = vld [vmem:[#allocation13 + $0x398] sm:$0xff]
    %v2823 = vld [vmem:[#allocation13 + $0x3a0] sm:$0xff]
    %v2824 = vld [vmem:[#allocation13 + $0x3a8] sm:$0xff]
    %v2825 = vld [vmem:[#allocation13 + $0x3b0] sm:$0xff]
    %v2826 = vld [vmem:[#allocation13 + $0x3b8] sm:$0xff]
    %v2827 = vld [vmem:[#allocation13 + $0x3c0] sm:$0xff]
    %v2828 = vld [vmem:[#allocation13 + $0x3c8] sm:$0xff]
    %v2829 = vld [vmem:[#allocation13 + $0x3d0] sm:$0xff]
    %v2830 = vld [vmem:[#allocation13 + $0x3d8] sm:$0xff]
    %v2831 = vld [vmem:[#allocation13 + $0x3e0] sm:$0xff]
    %v2832 = vld [vmem:[#allocation13 + $0x3e8] sm:$0xff]
    %v2833 = vld [vmem:[#allocation13 + $0x3f0] sm:$0xff]
    %v2834 = vld [vmem:[#allocation13 + $0x3f8] sm:$0xff]
    %v2835 = vld [vmem:[#allocation13 + $0x400] sm:$0xff]
    %v2836 = vld [vmem:[#allocation13 + $0x408] sm:$0xff]
    %v2837 = vld [vmem:[#allocation13 + $0x410] sm:$0xff]
    %v2838 = vld [vmem:[#allocation13 + $0x418] sm:$0xff]
    %v2839 = vld [vmem:[#allocation13 + $0x420] sm:$0xff]
    %v2840 = vld [vmem:[#allocation13 + $0x428] sm:$0xff]
    %v2841 = vld [vmem:[#allocation13 + $0x430] sm:$0xff]
    %v2842 = vld [vmem:[#allocation13 + $0x438] sm:$0xff]
    %v2843 = vld [vmem:[#allocation13 + $0x440] sm:$0xff]
    %v2844 = vld [vmem:[#allocation13 + $0x448] sm:$0xff]
    %v2845 = vld [vmem:[#allocation13 + $0x450] sm:$0xff]
    %v2846 = vld [vmem:[#allocation13 + $0x458] sm:$0xff]
    %v2847 = vld [vmem:[#allocation13 + $0x460] sm:$0xff]
    %v2848 = vld [vmem:[#allocation13 + $0x468] sm:$0xff]
    %v2849 = vld [vmem:[#allocation13 + $0x470] sm:$0xff]
    %v2850 = vld [vmem:[#allocation13 + $0x478] sm:$0xff]
    %v2851 = vld [vmem:[#allocation13 + $0x480] sm:$0xff]
    %v2852 = vld [vmem:[#allocation13 + $0x488] sm:$0xff]
    %v2853 = vld [vmem:[#allocation13 + $0x490] sm:$0xff]
    %v2854 = vld [vmem:[#allocation13 + $0x498] sm:$0xff]
    %v2855 = vld [vmem:[#allocation13 + $0x4a0] sm:$0xff]
    %v2856 = vld [vmem:[#allocation13 + $0x4a8] sm:$0xff]
    %v2857 = vld [vmem:[#allocation13 + $0x4b0] sm:$0xff]
    %v2858 = vld [vmem:[#allocation13 + $0x4b8] sm:$0xff]
    %v2859 = vld [vmem:[#allocation13 + $0x4c0] sm:$0xff]
    %v2860 = vld [vmem:[#allocation13 + $0x4c8] sm:$0xff]
    %v2861 = vld [vmem:[#allocation13 + $0x4d0] sm:$0xff]
    %v2862 = vld [vmem:[#allocation13 + $0x4d8] sm:$0xff]
    %v2863 = vld [vmem:[#allocation13 + $0x4e0] sm:$0xff]
    %v2864 = vld [vmem:[#allocation13 + $0x4e8] sm:$0xff]
    %v2865 = vld [vmem:[#allocation13 + $0x4f0] sm:$0xff]
    %v2866 = vld [vmem:[#allocation13 + $0x4f8] sm:$0xff]
    %v2867 = vld [vmem:[#allocation13 + $0x500] sm:$0xff]
    %v2868 = vld [vmem:[#allocation13 + $0x508] sm:$0xff]
    %v2869 = vld [vmem:[#allocation13 + $0x510] sm:$0xff]
    %v2870 = vld [vmem:[#allocation13 + $0x518] sm:$0xff]
    %v2871 = vld [vmem:[#allocation13 + $0x520] sm:$0xff]
    %v2872 = vld [vmem:[#allocation13 + $0x528] sm:$0xff]
    %v2873 = vld [vmem:[#allocation13 + $0x530] sm:$0xff]
    %v2874 = vld [vmem:[#allocation13 + $0x538] sm:$0xff]
    %v2875 = vld [vmem:[#allocation13 + $0x540] sm:$0xff]
    %v2876 = vld [vmem:[#allocation13 + $0x548] sm:$0xff]
    %v2877 = vld [vmem:[#allocation13 + $0x550] sm:$0xff]
    %v2878 = vld [vmem:[#allocation13 + $0x558] sm:$0xff]
    %v2879 = vld [vmem:[#allocation13 + $0x560] sm:$0xff]
    %v2880 = vld [vmem:[#allocation13 + $0x568] sm:$0xff]
    %v2881 = vld [vmem:[#allocation13 + $0x570] sm:$0xff]
    %v2882 = vld [vmem:[#allocation13 + $0x578] sm:$0xff]
    %v2883 = vld [vmem:[#allocation13 + $0x580] sm:$0xff]
    %v2884 = vld [vmem:[#allocation13 + $0x588] sm:$0xff]
    %v2885 = vld [vmem:[#allocation13 + $0x590] sm:$0xff]
    %v2886 = vld [vmem:[#allocation13 + $0x598] sm:$0xff]
    %v2887 = vld [vmem:[#allocation13 + $0x5a0] sm:$0xff]
    %v2888 = vld [vmem:[#allocation13 + $0x5a8] sm:$0xff]
    %v2889 = vld [vmem:[#allocation13 + $0x5b0] sm:$0xff]
    %v2890 = vld [vmem:[#allocation13 + $0x5b8] sm:$0xff]
    %v2891 = vld [vmem:[#allocation13 + $0x5c0] sm:$0xff]
    %v2892 = vld [vmem:[#allocation13 + $0x5c8] sm:$0xff]
    %v2893 = vld [vmem:[#allocation13 + $0x5d0] sm:$0xff]
    %v2894 = vld [vmem:[#allocation13 + $0x5d8] sm:$0xff]
    %v2895 = vld [vmem:[#allocation13 + $0x5e0] sm:$0xff]
    %v2896 = vld [vmem:[#allocation13 + $0x5e8] sm:$0xff]
    %v2897 = vld [vmem:[#allocation13 + $0x5f0] sm:$0xff]
    %v2898 = vld [vmem:[#allocation13 + $0x5f8] sm:$0xff]
    %v2899 = vld [vmem:[#allocation13 + $0x600] sm:$0xff]
    %v2900 = vld [vmem:[#allocation13 + $0x608] sm:$0xff]
    %v2901 = vld [vmem:[#allocation13 + $0x610] sm:$0xff]
    %v2902 = vld [vmem:[#allocation13 + $0x618] sm:$0xff]
    %v2903 = vld [vmem:[#allocation13 + $0x620] sm:$0xff]
    %v2904 = vld [vmem:[#allocation13 + $0x628] sm:$0xff]
    %v2905 = vld [vmem:[#allocation13 + $0x630] sm:$0xff]
    %v2906 = vld [vmem:[#allocation13 + $0x638] sm:$0xff]
    %v2907 = vld [vmem:[#allocation13 + $0x640] sm:$0xff]
    %v2908 = vld [vmem:[#allocation13 + $0x648] sm:$0xff]
    %v2909 = vld [vmem:[#allocation13 + $0x650] sm:$0xff]
    %v2910 = vld [vmem:[#allocation13 + $0x658] sm:$0xff]
    %v2911 = vld [vmem:[#allocation13 + $0x660] sm:$0xff]
    %v2912 = vld [vmem:[#allocation13 + $0x668] sm:$0xff]
    %v2913 = vld [vmem:[#allocation13 + $0x670] sm:$0xff]
    %v2914 = vld [vmem:[#allocation13 + $0x678] sm:$0xff]
    %v2915 = vld [vmem:[#allocation13 + $0x680] sm:$0xff]
    %v2916 = vld [vmem:[#allocation13 + $0x688] sm:$0xff]
    %v2917 = vld [vmem:[#allocation13 + $0x690] sm:$0xff]
    %v2918 = vld [vmem:[#allocation13 + $0x698] sm:$0xff]
    %v2919 = vld [vmem:[#allocation13 + $0x6a0] sm:$0xff]
    %v2920 = vld [vmem:[#allocation13 + $0x6a8] sm:$0xff]
    %v2921 = vld [vmem:[#allocation13 + $0x6b0] sm:$0xff]
    %v2922 = vld [vmem:[#allocation13 + $0x6b8] sm:$0xff]
    %v2923 = vld [vmem:[#allocation13 + $0x6c0] sm:$0xff]
    %v2924 = vld [vmem:[#allocation13 + $0x6c8] sm:$0xff]
    %v2925 = vld [vmem:[#allocation13 + $0x6d0] sm:$0xff]
    %v2926 = vld [vmem:[#allocation13 + $0x6d8] sm:$0xff]
    %v2927 = vld [vmem:[#allocation13 + $0x6e0] sm:$0xff]
    %v2928 = vld [vmem:[#allocation13 + $0x6e8] sm:$0xff]
    %v2929 = vld [vmem:[#allocation13 + $0x6f0] sm:$0xff]
    %v2930 = vld [vmem:[#allocation13 + $0x6f8] sm:$0xff]
    %v2931 = vld [vmem:[#allocation13 + $0x700] sm:$0xff]
    %v2932 = vld [vmem:[#allocation13 + $0x708] sm:$0xff]
    %v2933 = vld [vmem:[#allocation13 + $0x710] sm:$0xff]
    %v2934 = vld [vmem:[#allocation13 + $0x718] sm:$0xff]
    %v2935 = vld [vmem:[#allocation13 + $0x720] sm:$0xff]
    %v2936 = vld [vmem:[#allocation13 + $0x728] sm:$0xff]
    %v2937 = vld [vmem:[#allocation13 + $0x730] sm:$0xff]
    %v2938 = vld [vmem:[#allocation13 + $0x738] sm:$0xff]
    %v2939 = vld [vmem:[#allocation13 + $0x740] sm:$0xff]
    %v2940 = vld [vmem:[#allocation13 + $0x748] sm:$0xff]
    %v2941 = vld [vmem:[#allocation13 + $0x750] sm:$0xff]
    %v2942 = vld [vmem:[#allocation13 + $0x758] sm:$0xff]
    %v2943 = vld [vmem:[#allocation13 + $0x760] sm:$0xff]
    %v2944 = vld [vmem:[#allocation13 + $0x768] sm:$0xff]
    %v2945 = vld [vmem:[#allocation13 + $0x770] sm:$0xff]
    %v2946 = vld [vmem:[#allocation13 + $0x778] sm:$0xff]
    %v2947 = vld [vmem:[#allocation13 + $0x780] sm:$0xff]
    %v2948 = vld [vmem:[#allocation13 + $0x788] sm:$0xff]
    %v2949 = vld [vmem:[#allocation13 + $0x790] sm:$0xff]
    %v2950 = vld [vmem:[#allocation13 + $0x798] sm:$0xff]
    %v2951 = vld [vmem:[#allocation13 + $0x7a0] sm:$0xff]
    %v2952 = vld [vmem:[#allocation13 + $0x7a8] sm:$0xff]
    %v2953 = vld [vmem:[#allocation13 + $0x7b0] sm:$0xff]
    %v2954 = vld [vmem:[#allocation13 + $0x7b8] sm:$0xff]
    %v2955 = vld [vmem:[#allocation13 + $0x7c0] sm:$0xff]
    %v2956 = vld [vmem:[#allocation13 + $0x7c8] sm:$0xff]
    %v2957 = vld [vmem:[#allocation13 + $0x7d0] sm:$0xff]
    %v2958 = vld [vmem:[#allocation13 + $0x7d8] sm:$0xff]
    %v2959 = vld [vmem:[#allocation13 + $0x7e0] sm:$0xff]
    %v2960 = vld [vmem:[#allocation13 + $0x7e8] sm:$0xff]
    %v2961 = vld [vmem:[#allocation13 + $0x7f0] sm:$0xff]
    %v2962 = vld [vmem:[#allocation13 + $0x7f8] sm:$0xff]
    %v2963 = vld [vmem:[#allocation13 + $0x800] sm:$0xff]
    %v2964 = vld [vmem:[#allocation13 + $0x808] sm:$0xff]
    %v2965 = vld [vmem:[#allocation13 + $0x810] sm:$0xff]
    %v2966 = vld [vmem:[#allocation13 + $0x818] sm:$0xff]
    %v2967 = vld [vmem:[#allocation13 + $0x820] sm:$0xff]
    %v2968 = vld [vmem:[#allocation13 + $0x828] sm:$0xff]
    %v2969 = vld [vmem:[#allocation13 + $0x830] sm:$0xff]
    %v2970 = vld [vmem:[#allocation13 + $0x838] sm:$0xff]
    %v2971 = vld [vmem:[#allocation13 + $0x840] sm:$0xff]
    %v2972 = vld [vmem:[#allocation13 + $0x848] sm:$0xff]
    %v2973 = vld [vmem:[#allocation13 + $0x850] sm:$0xff]
    %v2974 = vld [vmem:[#allocation13 + $0x858] sm:$0xff]
    %v2975 = vld [vmem:[#allocation13 + $0x860] sm:$0xff]
    %v2976 = vld [vmem:[#allocation13 + $0x868] sm:$0xff]
    %v2977 = vld [vmem:[#allocation13 + $0x870] sm:$0xff]
    %v2978 = vld [vmem:[#allocation13 + $0x878] sm:$0xff]
    %v2979 = vld [vmem:[#allocation13 + $0x880] sm:$0xff]
    %v2980 = vld [vmem:[#allocation13 + $0x888] sm:$0xff]
    %v2981 = vld [vmem:[#allocation13 + $0x890] sm:$0xff]
    %v2982 = vld [vmem:[#allocation13 + $0x898] sm:$0xff]
    %v2983 = vld [vmem:[#allocation13 + $0x8a0] sm:$0xff]
    %v2984 = vld [vmem:[#allocation13 + $0x8a8] sm:$0xff]
    %v2985 = vld [vmem:[#allocation13 + $0x8b0] sm:$0xff]
    %v2986 = vld [vmem:[#allocation13 + $0x8b8] sm:$0xff]
    %v2987 = vld [vmem:[#allocation13 + $0x8c0] sm:$0xff]
    %v2988 = vld [vmem:[#allocation13 + $0x8c8] sm:$0xff]
    %v2989 = vld [vmem:[#allocation13 + $0x8d0] sm:$0xff]
    %v2990 = vld [vmem:[#allocation13 + $0x8d8] sm:$0xff]
    %v2991 = vld [vmem:[#allocation13 + $0x8e0] sm:$0xff]
    %v2992 = vld [vmem:[#allocation13 + $0x8e8] sm:$0xff]
    %v2993 = vld [vmem:[#allocation13 + $0x8f0] sm:$0xff]
    %v2994 = vld [vmem:[#allocation13 + $0x8f8] sm:$0xff]
    %v2995 = vld [vmem:[#allocation13 + $0x900] sm:$0xff]
    %v2996 = vld [vmem:[#allocation13 + $0x908] sm:$0xff]
    %v2997 = vld [vmem:[#allocation13 + $0x910] sm:$0xff]
    %v2998 = vld [vmem:[#allocation13 + $0x918] sm:$0xff]
    %v2999 = vld [vmem:[#allocation13 + $0x920] sm:$0xff]
    %v3000 = vld [vmem:[#allocation13 + $0x928] sm:$0xff]
    %v3001 = vld [vmem:[#allocation13 + $0x930] sm:$0xff]
    %v3002 = vld [vmem:[#allocation13 + $0x938] sm:$0xff]
    %v3003 = vld [vmem:[#allocation13 + $0x940] sm:$0xff]
    %v3004 = vld [vmem:[#allocation13 + $0x948] sm:$0xff]
    %v3005 = vld [vmem:[#allocation13 + $0x950] sm:$0xff]
    %v3006 = vld [vmem:[#allocation13 + $0x958] sm:$0xff]
    %v3007 = vld [vmem:[#allocation13 + $0x960] sm:$0xff]
    %v3008 = vld [vmem:[#allocation13 + $0x968] sm:$0xff]
    %v3009 = vld [vmem:[#allocation13 + $0x970] sm:$0xff]
    %v3010 = vld [vmem:[#allocation13 + $0x978] sm:$0xff]
    %v3011 = vld [vmem:[#allocation13 + $0x980] sm:$0xff]
    %v3012 = vld [vmem:[#allocation13 + $0x988] sm:$0xff]
    %v3013 = vld [vmem:[#allocation13 + $0x990] sm:$0xff]
    %v3014 = vld [vmem:[#allocation13 + $0x998] sm:$0xff]
    %v3015 = vld [vmem:[#allocation13 + $0x9a0] sm:$0xff]
    %v3016 = vld [vmem:[#allocation13 + $0x9a8] sm:$0xff]
    %v3017 = vld [vmem:[#allocation13 + $0x9b0] sm:$0xff]
    %v3018 = vld [vmem:[#allocation13 + $0x9b8] sm:$0xff]
    %v3019 = vld [vmem:[#allocation13 + $0x9c0] sm:$0xff]
    %v3020 = vld [vmem:[#allocation13 + $0x9c8] sm:$0xff]
    %v3021 = vld [vmem:[#allocation13 + $0x9d0] sm:$0xff]
    %v3022 = vld [vmem:[#allocation13 + $0x9d8] sm:$0xff]
    %v3023 = vld [vmem:[#allocation13 + $0x9e0] sm:$0xff]
    %v3024 = vld [vmem:[#allocation13 + $0x9e8] sm:$0xff]
    %v3025 = vld [vmem:[#allocation13 + $0x9f0] sm:$0xff]
    %v3026 = vld [vmem:[#allocation13 + $0x9f8] sm:$0xff]
    %v3027 = vld [vmem:[#allocation13 + $0xa00] sm:$0xff]
    %v3028 = vld [vmem:[#allocation13 + $0xa08] sm:$0xff]
    %v3029 = vld [vmem:[#allocation13 + $0xa10] sm:$0xff]
    %v3030 = vld [vmem:[#allocation13 + $0xa18] sm:$0xff]
    %v3031 = vld [vmem:[#allocation13 + $0xa20] sm:$0xff]
    %v3032 = vld [vmem:[#allocation13 + $0xa28] sm:$0xff]
    %v3033 = vld [vmem:[#allocation13 + $0xa30] sm:$0xff]
    %v3034 = vld [vmem:[#allocation13 + $0xa38] sm:$0xff]
    %v3035 = vld [vmem:[#allocation13 + $0xa40] sm:$0xff]
    %v3036 = vld [vmem:[#allocation13 + $0xa48] sm:$0xff]
    %v3037 = vld [vmem:[#allocation13 + $0xa50] sm:$0xff]
    %v3038 = vld [vmem:[#allocation13 + $0xa58] sm:$0xff]
    %v3039 = vld [vmem:[#allocation13 + $0xa60] sm:$0xff]
    %v3040 = vld [vmem:[#allocation13 + $0xa68] sm:$0xff]
    %v3041 = vld [vmem:[#allocation13 + $0xa70] sm:$0xff]
    %v3042 = vld [vmem:[#allocation13 + $0xa78] sm:$0xff]
    %v3043 = vld [vmem:[#allocation13 + $0xa80] sm:$0xff]
    %v3044 = vld [vmem:[#allocation13 + $0xa88] sm:$0xff]
    %v3045 = vld [vmem:[#allocation13 + $0xa90] sm:$0xff]
    %v3046 = vld [vmem:[#allocation13 + $0xa98] sm:$0xff]
    %v3047 = vld [vmem:[#allocation13 + $0xaa0] sm:$0xff]
    %v3048 = vld [vmem:[#allocation13 + $0xaa8] sm:$0xff]
    %v3049 = vld [vmem:[#allocation13 + $0xab0] sm:$0xff]
    %v3050 = vld [vmem:[#allocation13 + $0xab8] sm:$0xff]
    %v3051 = vld [vmem:[#allocation13 + $0xac0] sm:$0xff]
    %v3052 = vld [vmem:[#allocation13 + $0xac8] sm:$0xff]
    %v3053 = vld [vmem:[#allocation13 + $0xad0] sm:$0xff]
    %v3054 = vld [vmem:[#allocation13 + $0xad8] sm:$0xff]
    %v3055 = vld [vmem:[#allocation13 + $0xae0] sm:$0xff]
    %v3056 = vld [vmem:[#allocation13 + $0xae8] sm:$0xff]
    %v3057 = vld [vmem:[#allocation13 + $0xaf0] sm:$0xff]
    %v3058 = vld [vmem:[#allocation13 + $0xaf8] sm:$0xff]
    %v3059 = vld [vmem:[#allocation13 + $0xb00] sm:$0xff]
    %v3060 = vld [vmem:[#allocation13 + $0xb08] sm:$0xff]
    %v3061 = vld [vmem:[#allocation13 + $0xb10] sm:$0xff]
    %v3062 = vld [vmem:[#allocation13 + $0xb18] sm:$0xff]
    %v3063 = vld [vmem:[#allocation13 + $0xb20] sm:$0xff]
    %v3064 = vld [vmem:[#allocation13 + $0xb28] sm:$0xff]
    %v3065 = vld [vmem:[#allocation13 + $0xb30] sm:$0xff]
    %v3066 = vld [vmem:[#allocation13 + $0xb38] sm:$0xff]
    %v3067 = vld [vmem:[#allocation13 + $0xb40] sm:$0xff]
    %v3068 = vld [vmem:[#allocation13 + $0xb48] sm:$0xff]
    %v3069 = vld [vmem:[#allocation13 + $0xb50] sm:$0xff]
    %v3070 = vld [vmem:[#allocation13 + $0xb58] sm:$0xff]
    %v3071 = vld [vmem:[#allocation13 + $0xb60] sm:$0xff]
    %v3072 = vld [vmem:[#allocation13 + $0xb68] sm:$0xff]
    %v3073 = vld [vmem:[#allocation13 + $0xb70] sm:$0xff]
    %v3074 = vld [vmem:[#allocation13 + $0xb78] sm:$0xff]
    %v3075 = vld [vmem:[#allocation13 + $0xb80] sm:$0xff]
    %v3076 = vld [vmem:[#allocation13 + $0xb88] sm:$0xff]
    %v3077 = vld [vmem:[#allocation13 + $0xb90] sm:$0xff]
    %v3078 = vld [vmem:[#allocation13 + $0xb98] sm:$0xff]
    %v3079 = vld [vmem:[#allocation13 + $0xba0] sm:$0xff]
    %v3080 = vld [vmem:[#allocation13 + $0xba8] sm:$0xff]
    %v3081 = vld [vmem:[#allocation13 + $0xbb0] sm:$0xff]
    %v3082 = vld [vmem:[#allocation13 + $0xbb8] sm:$0xff]
    %v3083 = vld [vmem:[#allocation13 + $0xbc0] sm:$0xff]
    %v3084 = vld [vmem:[#allocation13 + $0xbc8] sm:$0xff]
    %v3085 = vld [vmem:[#allocation13 + $0xbd0] sm:$0xff]
    %v3086 = vld [vmem:[#allocation13 + $0xbd8] sm:$0xff]
    %v3087 = vld [vmem:[#allocation13 + $0xbe0] sm:$0xff]
    %v3088 = vld [vmem:[#allocation13 + $0xbe8] sm:$0xff]
    %v3089 = vld [vmem:[#allocation13 + $0xbf0] sm:$0xff]
    %v3090 = vld [vmem:[#allocation13 + $0xbf8] sm:$0xff]
    %v3091 = vld [vmem:[#allocation13 + $0xc00] sm:$0xff]
    %v3092 = vld [vmem:[#allocation13 + $0xc08] sm:$0xff]
    %v3093 = vld [vmem:[#allocation13 + $0xc10] sm:$0xff]
    %v3094 = vld [vmem:[#allocation13 + $0xc18] sm:$0xff]
    %v3095 = vld [vmem:[#allocation13 + $0xc20] sm:$0xff]
    %v3096 = vld [vmem:[#allocation13 + $0xc28] sm:$0xff]
    %v3097 = vld [vmem:[#allocation13 + $0xc30] sm:$0xff]
    %v3098 = vld [vmem:[#allocation13 + $0xc38] sm:$0xff]
    %v3099 = vld [vmem:[#allocation13 + $0xc40] sm:$0xff]
    %v3100 = vld [vmem:[#allocation13 + $0xc48] sm:$0xff]
    %v3101 = vld [vmem:[#allocation13 + $0xc50] sm:$0xff]
    %v3102 = vld [vmem:[#allocation13 + $0xc58] sm:$0xff]
    %v3103 = vld [vmem:[#allocation13 + $0xc60] sm:$0xff]
    %v3104 = vld [vmem:[#allocation13 + $0xc68] sm:$0xff]
    %v3105 = vld [vmem:[#allocation13 + $0xc70] sm:$0xff]
    %v3106 = vld [vmem:[#allocation13 + $0xc78] sm:$0xff]
    %v3107 = vld [vmem:[#allocation13 + $0xc80] sm:$0xff]
    %v3108 = vld [vmem:[#allocation13 + $0xc88] sm:$0xff]
    %v3109 = vld [vmem:[#allocation13 + $0xc90] sm:$0xff]
    %v3110 = vld [vmem:[#allocation13 + $0xc98] sm:$0xff]
    %v3111 = vld [vmem:[#allocation13 + $0xca0] sm:$0xff]
    %v3112 = vld [vmem:[#allocation13 + $0xca8] sm:$0xff]
    %v3113 = vld [vmem:[#allocation13 + $0xcb0] sm:$0xff]
    %v3114 = vld [vmem:[#allocation13 + $0xcb8] sm:$0xff]
    %v3115 = vld [vmem:[#allocation13 + $0xcc0] sm:$0xff]
    %v3116 = vld [vmem:[#allocation13 + $0xcc8] sm:$0xff]
    %v3117 = vld [vmem:[#allocation13 + $0xcd0] sm:$0xff]
    %v3118 = vld [vmem:[#allocation13 + $0xcd8] sm:$0xff]
    %v3119 = vld [vmem:[#allocation13 + $0xce0] sm:$0xff]
    %v3120 = vld [vmem:[#allocation13 + $0xce8] sm:$0xff]
    %v3121 = vld [vmem:[#allocation13 + $0xcf0] sm:$0xff]
    %v3122 = vld [vmem:[#allocation13 + $0xcf8] sm:$0xff]
    %v3123 = vld [vmem:[#allocation13 + $0xd00] sm:$0xff]
    %v3124 = vld [vmem:[#allocation13 + $0xd08] sm:$0xff]
    %v3125 = vld [vmem:[#allocation13 + $0xd10] sm:$0xff]
    %v3126 = vld [vmem:[#allocation13 + $0xd18] sm:$0xff]
    %v3127 = vld [vmem:[#allocation13 + $0xd20] sm:$0xff]
    %v3128 = vld [vmem:[#allocation13 + $0xd28] sm:$0xff]
    %v3129 = vld [vmem:[#allocation13 + $0xd30] sm:$0xff]
    %v3130 = vld [vmem:[#allocation13 + $0xd38] sm:$0xff]
    %v3131 = vld [vmem:[#allocation13 + $0xd40] sm:$0xff]
    %v3132 = vld [vmem:[#allocation13 + $0xd48] sm:$0xff]
    %v3133 = vld [vmem:[#allocation13 + $0xd50] sm:$0xff]
    %v3134 = vld [vmem:[#allocation13 + $0xd58] sm:$0xff]
    %v3135 = vld [vmem:[#allocation13 + $0xd60] sm:$0xff]
    %v3136 = vld [vmem:[#allocation13 + $0xd68] sm:$0xff]
    %v3137 = vld [vmem:[#allocation13 + $0xd70] sm:$0xff]
    %v3138 = vld [vmem:[#allocation13 + $0xd78] sm:$0xff]
    %v3139 = vld [vmem:[#allocation13 + $0xd80] sm:$0xff]
    %v3140 = vld [vmem:[#allocation13 + $0xd88] sm:$0xff]
    %v3141 = vld [vmem:[#allocation13 + $0xd90] sm:$0xff]
    %v3142 = vld [vmem:[#allocation13 + $0xd98] sm:$0xff]
    %v3143 = vld [vmem:[#allocation13 + $0xda0] sm:$0xff]
    %v3144 = vld [vmem:[#allocation13 + $0xda8] sm:$0xff]
    %v3145 = vld [vmem:[#allocation13 + $0xdb0] sm:$0xff]
    %v3146 = vld [vmem:[#allocation13 + $0xdb8] sm:$0xff]
    %v3147 = vld [vmem:[#allocation13 + $0xdc0] sm:$0xff]
    %v3148 = vld [vmem:[#allocation13 + $0xdc8] sm:$0xff]
    %v3149 = vld [vmem:[#allocation13 + $0xdd0] sm:$0xff]
    %v3150 = vld [vmem:[#allocation13 + $0xdd8] sm:$0xff]
    %v3151 = vld [vmem:[#allocation13 + $0xde0] sm:$0xff]
    %v3152 = vld [vmem:[#allocation13 + $0xde8] sm:$0xff]
    %v3153 = vld [vmem:[#allocation13 + $0xdf0] sm:$0xff]
    %v3154 = vld [vmem:[#allocation13 + $0xdf8] sm:$0xff]
    %v3155 = vld [vmem:[#allocation13 + $0xe00] sm:$0xff]
    %v3156 = vld [vmem:[#allocation13 + $0xe08] sm:$0xff]
    %v3157 = vld [vmem:[#allocation13 + $0xe10] sm:$0xff]
    %v3158 = vld [vmem:[#allocation13 + $0xe18] sm:$0xff]
    %v3159 = vld [vmem:[#allocation13 + $0xe20] sm:$0xff]
    %v3160 = vld [vmem:[#allocation13 + $0xe28] sm:$0xff]
    %v3161 = vld [vmem:[#allocation13 + $0xe30] sm:$0xff]
    %v3162 = vld [vmem:[#allocation13 + $0xe38] sm:$0xff]
    %v3163 = vld [vmem:[#allocation13 + $0xe40] sm:$0xff]
    %v3164 = vld [vmem:[#allocation13 + $0xe48] sm:$0xff]
    %v3165 = vld [vmem:[#allocation13 + $0xe50] sm:$0xff]
    %v3166 = vld [vmem:[#allocation13 + $0xe58] sm:$0xff]
    %v3167 = vld [vmem:[#allocation13 + $0xe60] sm:$0xff]
    %v3168 = vld [vmem:[#allocation13 + $0xe68] sm:$0xff]
    %v3169 = vld [vmem:[#allocation13 + $0xe70] sm:$0xff]
    %v3170 = vld [vmem:[#allocation13 + $0xe78] sm:$0xff]
    %v3171 = vld [vmem:[#allocation13 + $0xe80] sm:$0xff]
    %v3172 = vld [vmem:[#allocation13 + $0xe88] sm:$0xff]
    %v3173 = vld [vmem:[#allocation13 + $0xe90] sm:$0xff]
    %v3174 = vld [vmem:[#allocation13 + $0xe98] sm:$0xff]
    %v3175 = vld [vmem:[#allocation13 + $0xea0] sm:$0xff]
    %v3176 = vld [vmem:[#allocation13 + $0xea8] sm:$0xff]
    %v3177 = vld [vmem:[#allocation13 + $0xeb0] sm:$0xff]
    %v3178 = vld [vmem:[#allocation13 + $0xeb8] sm:$0xff]
    %v3179 = vld [vmem:[#allocation13 + $0xec0] sm:$0xff]
    %v3180 = vld [vmem:[#allocation13 + $0xec8] sm:$0xff]
    %v3181 = vld [vmem:[#allocation13 + $0xed0] sm:$0xff]
    %v3182 = vld [vmem:[#allocation13 + $0xed8] sm:$0xff]
    %v3183 = vld [vmem:[#allocation13 + $0xee0] sm:$0xff]
    %v3184 = vld [vmem:[#allocation13 + $0xee8] sm:$0xff]
    %v3185 = vld [vmem:[#allocation13 + $0xef0] sm:$0xff]
    %v3186 = vld [vmem:[#allocation13 + $0xef8] sm:$0xff]
    %v3187 = vld [vmem:[#allocation13 + $0xf00] sm:$0xff]
    %v3188 = vld [vmem:[#allocation13 + $0xf08] sm:$0xff]
    %v3189 = vld [vmem:[#allocation13 + $0xf10] sm:$0xff]
    %v3190 = vld [vmem:[#allocation13 + $0xf18] sm:$0xff]
    %v3191 = vld [vmem:[#allocation13 + $0xf20] sm:$0xff]
    %v3192 = vld [vmem:[#allocation13 + $0xf28] sm:$0xff]
    %v3193 = vld [vmem:[#allocation13 + $0xf30] sm:$0xff]
    %v3194 = vld [vmem:[#allocation13 + $0xf38] sm:$0xff]
    %v3195 = vld [vmem:[#allocation13 + $0xf40] sm:$0xff]
    %v3196 = vld [vmem:[#allocation13 + $0xf48] sm:$0xff]
    %v3197 = vld [vmem:[#allocation13 + $0xf50] sm:$0xff]
    %v3198 = vld [vmem:[#allocation13 + $0xf58] sm:$0xff]
    %v3199 = vld [vmem:[#allocation13 + $0xf60] sm:$0xff]
    %v3200 = vld [vmem:[#allocation13 + $0xf68] sm:$0xff]
    %v3201 = vld [vmem:[#allocation13 + $0xf70] sm:$0xff]
    %v3202 = vld [vmem:[#allocation13 + $0xf78] sm:$0xff]
    %v3203 = vld [vmem:[#allocation13 + $0xf80] sm:$0xff]
    %v3204 = vld [vmem:[#allocation13 + $0xf88] sm:$0xff]
    %v3205 = vld [vmem:[#allocation13 + $0xf90] sm:$0xff]
    %v3206 = vld [vmem:[#allocation13 + $0xf98] sm:$0xff]
    %v3207 = vld [vmem:[#allocation13 + $0xfa0] sm:$0xff]
    %v3208 = vld [vmem:[#allocation13 + $0xfa8] sm:$0xff]
    %v3209 = vld [vmem:[#allocation13 + $0xfb0] sm:$0xff]
    %v3210 = vld [vmem:[#allocation13 + $0xfb8] sm:$0xff]
    %v3211 = vld [vmem:[#allocation13 + $0xfc0] sm:$0xff]
    %v3212 = vld [vmem:[#allocation13 + $0xfc8] sm:$0xff]
    %v3213 = vld [vmem:[#allocation13 + $0xfd0] sm:$0xff]
    %v3214 = vld [vmem:[#allocation13 + $0xfd8] sm:$0xff]
    %v3215 = vld [vmem:[#allocation13 + $0xfe0] sm:$0xff]
    %v3216 = vld [vmem:[#allocation13 + $0xfe8] sm:$0xff]
    %v3217 = vld [vmem:[#allocation13 + $0xff0] sm:$0xff]
    %v3218 = vld [vmem:[#allocation13 + $0xff8] sm:$0xff]
    %v3219 = vld [vmem:[#allocation14] sm:$0xff]
    %v3221 = vlaneseq
    %v3222 = vshrl.u32 %v3221, 7
    %v3223 = vsub.s32 0, %v3222
    %v3224 = vrot.slane %v3219, %v3223
    %v3225 = vlaneseq
    %v3226 = vshrl.u32 %v3225, 7
    %v3227 = vsub.s32 1, %v3226
    %v3228 = vrot.slane %v3219, %v3227
    %v3229 = vlaneseq
    %v3230 = vshrl.u32 %v3229, 7
    %v3231 = vsub.s32 2, %v3230
    %v3232 = vrot.slane %v3219, %v3231
    %v3233 = vlaneseq
    %v3234 = vshrl.u32 %v3233, 7
    %v3235 = vsub.s32 3, %v3234
    %v3236 = vrot.slane %v3219, %v3235
    %v3237 = vlaneseq
    %v3238 = vshrl.u32 %v3237, 7
    %v3239 = vsub.s32 4, %v3238
    %v3240 = vrot.slane %v3219, %v3239
    %v3241 = vlaneseq
    %v3242 = vshrl.u32 %v3241, 7
    %v3243 = vsub.s32 5, %v3242
    %v3244 = vrot.slane %v3219, %v3243
    %v3245 = vlaneseq
    %v3246 = vshrl.u32 %v3245, 7
    %v3247 = vsub.s32 6, %v3246
    %v3248 = vrot.slane %v3219, %v3247
    %v3249 = vlaneseq
    %v3250 = vshrl.u32 %v3249, 7
    %v3251 = vsub.s32 7, %v3250
    %v3252 = vrot.slane %v3219, %v3251
    %v3773 = vunpack.c.l.b16 %v2707
    %v3774 = vunpack.c.h.b16 %v2707
    %v3775 = vunpack.c.l.b16 %v2708
    %v3776 = vunpack.c.h.b16 %v2708
    %v3777 = vunpack.c.l.b16 %v2709
    %v3778 = vunpack.c.h.b16 %v2709
    %v3779 = vunpack.c.l.b16 %v2710
    %v3780 = vunpack.c.h.b16 %v2710
    %v3781 = vunpack.c.l.b16 %v2711
    %v3782 = vunpack.c.h.b16 %v2711
    %v3783 = vunpack.c.l.b16 %v2712
    %v3784 = vunpack.c.h.b16 %v2712
    %v3785 = vunpack.c.l.b16 %v2713
    %v3786 = vunpack.c.h.b16 %v2713
    %v3787 = vunpack.c.l.b16 %v2714
    %v3788 = vunpack.c.h.b16 %v2714
    %v3789 = vunpack.c.l.b16 %v2715
    %v3790 = vunpack.c.h.b16 %v2715
    %v3791 = vunpack.c.l.b16 %v2716
    %v3792 = vunpack.c.h.b16 %v2716
    %v3793 = vunpack.c.l.b16 %v2717
    %v3794 = vunpack.c.h.b16 %v2717
    %v3795 = vunpack.c.l.b16 %v2718
    %v3796 = vunpack.c.h.b16 %v2718
    %v3797 = vunpack.c.l.b16 %v2719
    %v3798 = vunpack.c.h.b16 %v2719
    %v3799 = vunpack.c.l.b16 %v2720
    %v3800 = vunpack.c.h.b16 %v2720
    %v3801 = vunpack.c.l.b16 %v2721
    %v3802 = vunpack.c.h.b16 %v2721
    %v3803 = vunpack.c.l.b16 %v2722
    %v3804 = vunpack.c.h.b16 %v2722
    %v3805 = vunpack.c.l.b16 %v2723
    %v3806 = vunpack.c.h.b16 %v2723
    %v3807 = vunpack.c.l.b16 %v2724
    %v3808 = vunpack.c.h.b16 %v2724
    %v3809 = vunpack.c.l.b16 %v2725
    %v3810 = vunpack.c.h.b16 %v2725
    %v3811 = vunpack.c.l.b16 %v2726
    %v3812 = vunpack.c.h.b16 %v2726
    %v3813 = vunpack.c.l.b16 %v2727
    %v3814 = vunpack.c.h.b16 %v2727
    %v3815 = vunpack.c.l.b16 %v2728
    %v3816 = vunpack.c.h.b16 %v2728
    %v3817 = vunpack.c.l.b16 %v2729
    %v3818 = vunpack.c.h.b16 %v2729
    %v3819 = vunpack.c.l.b16 %v2730
    %v3820 = vunpack.c.h.b16 %v2730
    %v3821 = vunpack.c.l.b16 %v2731
    %v3822 = vunpack.c.h.b16 %v2731
    %v3823 = vunpack.c.l.b16 %v2732
    %v3824 = vunpack.c.h.b16 %v2732
    %v3825 = vunpack.c.l.b16 %v2733
    %v3826 = vunpack.c.h.b16 %v2733
    %v3827 = vunpack.c.l.b16 %v2734
    %v3828 = vunpack.c.h.b16 %v2734
    %v3829 = vunpack.c.l.b16 %v2735
    %v3830 = vunpack.c.h.b16 %v2735
    %v3831 = vunpack.c.l.b16 %v2736
    %v3832 = vunpack.c.h.b16 %v2736
    %v3833 = vunpack.c.l.b16 %v2737
    %v3834 = vunpack.c.h.b16 %v2737
    %v3835 = vunpack.c.l.b16 %v2738
    %v3836 = vunpack.c.h.b16 %v2738
    %v3837 = vunpack.c.l.b16 %v2739
    %v3838 = vunpack.c.h.b16 %v2739
    %v3839 = vunpack.c.l.b16 %v2740
    %v3840 = vunpack.c.h.b16 %v2740
    %v3841 = vunpack.c.l.b16 %v2741
    %v3842 = vunpack.c.h.b16 %v2741
    %v3843 = vunpack.c.l.b16 %v2742
    %v3844 = vunpack.c.h.b16 %v2742
    %v3845 = vunpack.c.l.b16 %v2743
    %v3846 = vunpack.c.h.b16 %v2743
    %v3847 = vunpack.c.l.b16 %v2744
    %v3848 = vunpack.c.h.b16 %v2744
    %v3849 = vunpack.c.l.b16 %v2745
    %v3850 = vunpack.c.h.b16 %v2745
    %v3851 = vunpack.c.l.b16 %v2746
    %v3852 = vunpack.c.h.b16 %v2746
    %v3853 = vunpack.c.l.b16 %v2747
    %v3854 = vunpack.c.h.b16 %v2747
    %v3855 = vunpack.c.l.b16 %v2748
    %v3856 = vunpack.c.h.b16 %v2748
    %v3857 = vunpack.c.l.b16 %v2749
    %v3858 = vunpack.c.h.b16 %v2749
    %v3859 = vunpack.c.l.b16 %v2750
    %v3860 = vunpack.c.h.b16 %v2750
    %v3861 = vunpack.c.l.b16 %v2751
    %v3862 = vunpack.c.h.b16 %v2751
    %v3863 = vunpack.c.l.b16 %v2752
    %v3864 = vunpack.c.h.b16 %v2752
    %v3865 = vunpack.c.l.b16 %v2753
    %v3866 = vunpack.c.h.b16 %v2753
    %v3867 = vunpack.c.l.b16 %v2754
    %v3868 = vunpack.c.h.b16 %v2754
    %v3869 = vunpack.c.l.b16 %v2755
    %v3870 = vunpack.c.h.b16 %v2755
    %v3871 = vunpack.c.l.b16 %v2756
    %v3872 = vunpack.c.h.b16 %v2756
    %v3873 = vunpack.c.l.b16 %v2757
    %v3874 = vunpack.c.h.b16 %v2757
    %v3875 = vunpack.c.l.b16 %v2758
    %v3876 = vunpack.c.h.b16 %v2758
    %v3877 = vunpack.c.l.b16 %v2759
    %v3878 = vunpack.c.h.b16 %v2759
    %v3879 = vunpack.c.l.b16 %v2760
    %v3880 = vunpack.c.h.b16 %v2760
    %v3881 = vunpack.c.l.b16 %v2761
    %v3882 = vunpack.c.h.b16 %v2761
    %v3883 = vunpack.c.l.b16 %v2762
    %v3884 = vunpack.c.h.b16 %v2762
    %v3885 = vunpack.c.l.b16 %v2763
    %v3886 = vunpack.c.h.b16 %v2763
    %v3887 = vunpack.c.l.b16 %v2764
    %v3888 = vunpack.c.h.b16 %v2764
    %v3889 = vunpack.c.l.b16 %v2765
    %v3890 = vunpack.c.h.b16 %v2765
    %v3891 = vunpack.c.l.b16 %v2766
    %v3892 = vunpack.c.h.b16 %v2766
    %v3893 = vunpack.c.l.b16 %v2767
    %v3894 = vunpack.c.h.b16 %v2767
    %v3895 = vunpack.c.l.b16 %v2768
    %v3896 = vunpack.c.h.b16 %v2768
    %v3897 = vunpack.c.l.b16 %v2769
    %v3898 = vunpack.c.h.b16 %v2769
    %v3899 = vunpack.c.l.b16 %v2770
    %v3900 = vunpack.c.h.b16 %v2770
    %v3901 = vunpack.c.l.b16 %v2771
    %v3902 = vunpack.c.h.b16 %v2771
    %v3903 = vunpack.c.l.b16 %v2772
    %v3904 = vunpack.c.h.b16 %v2772
    %v3905 = vunpack.c.l.b16 %v2773
    %v3906 = vunpack.c.h.b16 %v2773
    %v3907 = vunpack.c.l.b16 %v2774
    %v3908 = vunpack.c.h.b16 %v2774
    %v3909 = vunpack.c.l.b16 %v2775
    %v3910 = vunpack.c.h.b16 %v2775
    %v3911 = vunpack.c.l.b16 %v2776
    %v3912 = vunpack.c.h.b16 %v2776
    %v3913 = vunpack.c.l.b16 %v2777
    %v3914 = vunpack.c.h.b16 %v2777
    %v3915 = vunpack.c.l.b16 %v2778
    %v3916 = vunpack.c.h.b16 %v2778
    %v3917 = vunpack.c.l.b16 %v2779
    %v3918 = vunpack.c.h.b16 %v2779
    %v3919 = vunpack.c.l.b16 %v2780
    %v3920 = vunpack.c.h.b16 %v2780
    %v3921 = vunpack.c.l.b16 %v2781
    %v3922 = vunpack.c.h.b16 %v2781
    %v3923 = vunpack.c.l.b16 %v2782
    %v3924 = vunpack.c.h.b16 %v2782
    %v3925 = vunpack.c.l.b16 %v2783
    %v3926 = vunpack.c.h.b16 %v2783
    %v3927 = vunpack.c.l.b16 %v2784
    %v3928 = vunpack.c.h.b16 %v2784
    %v3929 = vunpack.c.l.b16 %v2785
    %v3930 = vunpack.c.h.b16 %v2785
    %v3931 = vunpack.c.l.b16 %v2786
    %v3932 = vunpack.c.h.b16 %v2786
    %v3933 = vunpack.c.l.b16 %v2787
    %v3934 = vunpack.c.h.b16 %v2787
    %v3935 = vunpack.c.l.b16 %v2788
    %v3936 = vunpack.c.h.b16 %v2788
    %v3937 = vunpack.c.l.b16 %v2789
    %v3938 = vunpack.c.h.b16 %v2789
    %v3939 = vunpack.c.l.b16 %v2790
    %v3940 = vunpack.c.h.b16 %v2790
    %v3941 = vunpack.c.l.b16 %v2791
    %v3942 = vunpack.c.h.b16 %v2791
    %v3943 = vunpack.c.l.b16 %v2792
    %v3944 = vunpack.c.h.b16 %v2792
    %v3945 = vunpack.c.l.b16 %v2793
    %v3946 = vunpack.c.h.b16 %v2793
    %v3947 = vunpack.c.l.b16 %v2794
    %v3948 = vunpack.c.h.b16 %v2794
    %v3949 = vunpack.c.l.b16 %v2795
    %v3950 = vunpack.c.h.b16 %v2795
    %v3951 = vunpack.c.l.b16 %v2796
    %v3952 = vunpack.c.h.b16 %v2796
    %v3953 = vunpack.c.l.b16 %v2797
    %v3954 = vunpack.c.h.b16 %v2797
    %v3955 = vunpack.c.l.b16 %v2798
    %v3956 = vunpack.c.h.b16 %v2798
    %v3957 = vunpack.c.l.b16 %v2799
    %v3958 = vunpack.c.h.b16 %v2799
    %v3959 = vunpack.c.l.b16 %v2800
    %v3960 = vunpack.c.h.b16 %v2800
    %v3961 = vunpack.c.l.b16 %v2801
    %v3962 = vunpack.c.h.b16 %v2801
    %v3963 = vunpack.c.l.b16 %v2802
    %v3964 = vunpack.c.h.b16 %v2802
    %v3965 = vunpack.c.l.b16 %v2803
    %v3966 = vunpack.c.h.b16 %v2803
    %v3967 = vunpack.c.l.b16 %v2804
    %v3968 = vunpack.c.h.b16 %v2804
    %v3969 = vunpack.c.l.b16 %v2805
    %v3970 = vunpack.c.h.b16 %v2805
    %v3971 = vunpack.c.l.b16 %v2806
    %v3972 = vunpack.c.h.b16 %v2806
    %v3973 = vunpack.c.l.b16 %v2807
    %v3974 = vunpack.c.h.b16 %v2807
    %v3975 = vunpack.c.l.b16 %v2808
    %v3976 = vunpack.c.h.b16 %v2808
    %v3977 = vunpack.c.l.b16 %v2809
    %v3978 = vunpack.c.h.b16 %v2809
    %v3979 = vunpack.c.l.b16 %v2810
    %v3980 = vunpack.c.h.b16 %v2810
    %v3981 = vunpack.c.l.b16 %v2811
    %v3982 = vunpack.c.h.b16 %v2811
    %v3983 = vunpack.c.l.b16 %v2812
    %v3984 = vunpack.c.h.b16 %v2812
    %v3985 = vunpack.c.l.b16 %v2813
    %v3986 = vunpack.c.h.b16 %v2813
    %v3987 = vunpack.c.l.b16 %v2814
    %v3988 = vunpack.c.h.b16 %v2814
    %v3989 = vunpack.c.l.b16 %v2815
    %v3990 = vunpack.c.h.b16 %v2815
    %v3991 = vunpack.c.l.b16 %v2816
    %v3992 = vunpack.c.h.b16 %v2816
    %v3993 = vunpack.c.l.b16 %v2817
    %v3994 = vunpack.c.h.b16 %v2817
    %v3995 = vunpack.c.l.b16 %v2818
    %v3996 = vunpack.c.h.b16 %v2818
    %v3997 = vunpack.c.l.b16 %v2819
    %v3998 = vunpack.c.h.b16 %v2819
    %v3999 = vunpack.c.l.b16 %v2820
    %v4000 = vunpack.c.h.b16 %v2820
    %v4001 = vunpack.c.l.b16 %v2821
    %v4002 = vunpack.c.h.b16 %v2821
    %v4003 = vunpack.c.l.b16 %v2822
    %v4004 = vunpack.c.h.b16 %v2822
    %v4005 = vunpack.c.l.b16 %v2823
    %v4006 = vunpack.c.h.b16 %v2823
    %v4007 = vunpack.c.l.b16 %v2824
    %v4008 = vunpack.c.h.b16 %v2824
    %v4009 = vunpack.c.l.b16 %v2825
    %v4010 = vunpack.c.h.b16 %v2825
    %v4011 = vunpack.c.l.b16 %v2826
    %v4012 = vunpack.c.h.b16 %v2826
    %v4013 = vunpack.c.l.b16 %v2827
    %v4014 = vunpack.c.h.b16 %v2827
    %v4015 = vunpack.c.l.b16 %v2828
    %v4016 = vunpack.c.h.b16 %v2828
    %v4017 = vunpack.c.l.b16 %v2829
    %v4018 = vunpack.c.h.b16 %v2829
    %v4019 = vunpack.c.l.b16 %v2830
    %v4020 = vunpack.c.h.b16 %v2830
    %v4021 = vunpack.c.l.b16 %v2831
    %v4022 = vunpack.c.h.b16 %v2831
    %v4023 = vunpack.c.l.b16 %v2832
    %v4024 = vunpack.c.h.b16 %v2832
    %v4025 = vunpack.c.l.b16 %v2833
    %v4026 = vunpack.c.h.b16 %v2833
    %v4027 = vunpack.c.l.b16 %v2834
    %v4028 = vunpack.c.h.b16 %v2834
    %v4029 = vunpack.c.l.b16 %v2835
    %v4030 = vunpack.c.h.b16 %v2835
    %v4031 = vunpack.c.l.b16 %v2836
    %v4032 = vunpack.c.h.b16 %v2836
    %v4033 = vunpack.c.l.b16 %v2837
    %v4034 = vunpack.c.h.b16 %v2837
    %v4035 = vunpack.c.l.b16 %v2838
    %v4036 = vunpack.c.h.b16 %v2838
    %v4037 = vunpack.c.l.b16 %v2839
    %v4038 = vunpack.c.h.b16 %v2839
    %v4039 = vunpack.c.l.b16 %v2840
    %v4040 = vunpack.c.h.b16 %v2840
    %v4041 = vunpack.c.l.b16 %v2841
    %v4042 = vunpack.c.h.b16 %v2841
    %v4043 = vunpack.c.l.b16 %v2842
    %v4044 = vunpack.c.h.b16 %v2842
    %v4045 = vunpack.c.l.b16 %v2843
    %v4046 = vunpack.c.h.b16 %v2843
    %v4047 = vunpack.c.l.b16 %v2844
    %v4048 = vunpack.c.h.b16 %v2844
    %v4049 = vunpack.c.l.b16 %v2845
    %v4050 = vunpack.c.h.b16 %v2845
    %v4051 = vunpack.c.l.b16 %v2846
    %v4052 = vunpack.c.h.b16 %v2846
    %v4053 = vunpack.c.l.b16 %v2847
    %v4054 = vunpack.c.h.b16 %v2847
    %v4055 = vunpack.c.l.b16 %v2848
    %v4056 = vunpack.c.h.b16 %v2848
    %v4057 = vunpack.c.l.b16 %v2849
    %v4058 = vunpack.c.h.b16 %v2849
    %v4059 = vunpack.c.l.b16 %v2850
    %v4060 = vunpack.c.h.b16 %v2850
    %v4061 = vunpack.c.l.b16 %v2851
    %v4062 = vunpack.c.h.b16 %v2851
    %v4063 = vunpack.c.l.b16 %v2852
    %v4064 = vunpack.c.h.b16 %v2852
    %v4065 = vunpack.c.l.b16 %v2853
    %v4066 = vunpack.c.h.b16 %v2853
    %v4067 = vunpack.c.l.b16 %v2854
    %v4068 = vunpack.c.h.b16 %v2854
    %v4069 = vunpack.c.l.b16 %v2855
    %v4070 = vunpack.c.h.b16 %v2855
    %v4071 = vunpack.c.l.b16 %v2856
    %v4072 = vunpack.c.h.b16 %v2856
    %v4073 = vunpack.c.l.b16 %v2857
    %v4074 = vunpack.c.h.b16 %v2857
    %v4075 = vunpack.c.l.b16 %v2858
    %v4076 = vunpack.c.h.b16 %v2858
    %v4077 = vunpack.c.l.b16 %v2859
    %v4078 = vunpack.c.h.b16 %v2859
    %v4079 = vunpack.c.l.b16 %v2860
    %v4080 = vunpack.c.h.b16 %v2860
    %v4081 = vunpack.c.l.b16 %v2861
    %v4082 = vunpack.c.h.b16 %v2861
    %v4083 = vunpack.c.l.b16 %v2862
    %v4084 = vunpack.c.h.b16 %v2862
    %v4085 = vunpack.c.l.b16 %v2863
    %v4086 = vunpack.c.h.b16 %v2863
    %v4087 = vunpack.c.l.b16 %v2864
    %v4088 = vunpack.c.h.b16 %v2864
    %v4089 = vunpack.c.l.b16 %v2865
    %v4090 = vunpack.c.h.b16 %v2865
    %v4091 = vunpack.c.l.b16 %v2866
    %v4092 = vunpack.c.h.b16 %v2866
    %v4093 = vunpack.c.l.b16 %v2867
    %v4094 = vunpack.c.h.b16 %v2867
    %v4095 = vunpack.c.l.b16 %v2868
    %v4096 = vunpack.c.h.b16 %v2868
    %v4097 = vunpack.c.l.b16 %v2869
    %v4098 = vunpack.c.h.b16 %v2869
    %v4099 = vunpack.c.l.b16 %v2870
    %v4100 = vunpack.c.h.b16 %v2870
    %v4101 = vunpack.c.l.b16 %v2871
    %v4102 = vunpack.c.h.b16 %v2871
    %v4103 = vunpack.c.l.b16 %v2872
    %v4104 = vunpack.c.h.b16 %v2872
    %v4105 = vunpack.c.l.b16 %v2873
    %v4106 = vunpack.c.h.b16 %v2873
    %v4107 = vunpack.c.l.b16 %v2874
    %v4108 = vunpack.c.h.b16 %v2874
    %v4109 = vunpack.c.l.b16 %v2875
    %v4110 = vunpack.c.h.b16 %v2875
    %v4111 = vunpack.c.l.b16 %v2876
    %v4112 = vunpack.c.h.b16 %v2876
    %v4113 = vunpack.c.l.b16 %v2877
    %v4114 = vunpack.c.h.b16 %v2877
    %v4115 = vunpack.c.l.b16 %v2878
    %v4116 = vunpack.c.h.b16 %v2878
    %v4117 = vunpack.c.l.b16 %v2879
    %v4118 = vunpack.c.h.b16 %v2879
    %v4119 = vunpack.c.l.b16 %v2880
    %v4120 = vunpack.c.h.b16 %v2880
    %v4121 = vunpack.c.l.b16 %v2881
    %v4122 = vunpack.c.h.b16 %v2881
    %v4123 = vunpack.c.l.b16 %v2882
    %v4124 = vunpack.c.h.b16 %v2882
    %v4125 = vunpack.c.l.b16 %v2883
    %v4126 = vunpack.c.h.b16 %v2883
    %v4127 = vunpack.c.l.b16 %v2884
    %v4128 = vunpack.c.h.b16 %v2884
    %v4129 = vunpack.c.l.b16 %v2885
    %v4130 = vunpack.c.h.b16 %v2885
    %v4131 = vunpack.c.l.b16 %v2886
    %v4132 = vunpack.c.h.b16 %v2886
    %v4133 = vunpack.c.l.b16 %v2887
    %v4134 = vunpack.c.h.b16 %v2887
    %v4135 = vunpack.c.l.b16 %v2888
    %v4136 = vunpack.c.h.b16 %v2888
    %v4137 = vunpack.c.l.b16 %v2889
    %v4138 = vunpack.c.h.b16 %v2889
    %v4139 = vunpack.c.l.b16 %v2890
    %v4140 = vunpack.c.h.b16 %v2890
    %v4141 = vunpack.c.l.b16 %v2891
    %v4142 = vunpack.c.h.b16 %v2891
    %v4143 = vunpack.c.l.b16 %v2892
    %v4144 = vunpack.c.h.b16 %v2892
    %v4145 = vunpack.c.l.b16 %v2893
    %v4146 = vunpack.c.h.b16 %v2893
    %v4147 = vunpack.c.l.b16 %v2894
    %v4148 = vunpack.c.h.b16 %v2894
    %v4149 = vunpack.c.l.b16 %v2895
    %v4150 = vunpack.c.h.b16 %v2895
    %v4151 = vunpack.c.l.b16 %v2896
    %v4152 = vunpack.c.h.b16 %v2896
    %v4153 = vunpack.c.l.b16 %v2897
    %v4154 = vunpack.c.h.b16 %v2897
    %v4155 = vunpack.c.l.b16 %v2898
    %v4156 = vunpack.c.h.b16 %v2898
    %v4157 = vunpack.c.l.b16 %v2899
    %v4158 = vunpack.c.h.b16 %v2899
    %v4159 = vunpack.c.l.b16 %v2900
    %v4160 = vunpack.c.h.b16 %v2900
    %v4161 = vunpack.c.l.b16 %v2901
    %v4162 = vunpack.c.h.b16 %v2901
    %v4163 = vunpack.c.l.b16 %v2902
    %v4164 = vunpack.c.h.b16 %v2902
    %v4165 = vunpack.c.l.b16 %v2903
    %v4166 = vunpack.c.h.b16 %v2903
    %v4167 = vunpack.c.l.b16 %v2904
    %v4168 = vunpack.c.h.b16 %v2904
    %v4169 = vunpack.c.l.b16 %v2905
    %v4170 = vunpack.c.h.b16 %v2905
    %v4171 = vunpack.c.l.b16 %v2906
    %v4172 = vunpack.c.h.b16 %v2906
    %v4173 = vunpack.c.l.b16 %v2907
    %v4174 = vunpack.c.h.b16 %v2907
    %v4175 = vunpack.c.l.b16 %v2908
    %v4176 = vunpack.c.h.b16 %v2908
    %v4177 = vunpack.c.l.b16 %v2909
    %v4178 = vunpack.c.h.b16 %v2909
    %v4179 = vunpack.c.l.b16 %v2910
    %v4180 = vunpack.c.h.b16 %v2910
    %v4181 = vunpack.c.l.b16 %v2911
    %v4182 = vunpack.c.h.b16 %v2911
    %v4183 = vunpack.c.l.b16 %v2912
    %v4184 = vunpack.c.h.b16 %v2912
    %v4185 = vunpack.c.l.b16 %v2913
    %v4186 = vunpack.c.h.b16 %v2913
    %v4187 = vunpack.c.l.b16 %v2914
    %v4188 = vunpack.c.h.b16 %v2914
    %v4189 = vunpack.c.l.b16 %v2915
    %v4190 = vunpack.c.h.b16 %v2915
    %v4191 = vunpack.c.l.b16 %v2916
    %v4192 = vunpack.c.h.b16 %v2916
    %v4193 = vunpack.c.l.b16 %v2917
    %v4194 = vunpack.c.h.b16 %v2917
    %v4195 = vunpack.c.l.b16 %v2918
    %v4196 = vunpack.c.h.b16 %v2918
    %v4197 = vunpack.c.l.b16 %v2919
    %v4198 = vunpack.c.h.b16 %v2919
    %v4199 = vunpack.c.l.b16 %v2920
    %v4200 = vunpack.c.h.b16 %v2920
    %v4201 = vunpack.c.l.b16 %v2921
    %v4202 = vunpack.c.h.b16 %v2921
    %v4203 = vunpack.c.l.b16 %v2922
    %v4204 = vunpack.c.h.b16 %v2922
    %v4205 = vunpack.c.l.b16 %v2923
    %v4206 = vunpack.c.h.b16 %v2923
    %v4207 = vunpack.c.l.b16 %v2924
    %v4208 = vunpack.c.h.b16 %v2924
    %v4209 = vunpack.c.l.b16 %v2925
    %v4210 = vunpack.c.h.b16 %v2925
    %v4211 = vunpack.c.l.b16 %v2926
    %v4212 = vunpack.c.h.b16 %v2926
    %v4213 = vunpack.c.l.b16 %v2927
    %v4214 = vunpack.c.h.b16 %v2927
    %v4215 = vunpack.c.l.b16 %v2928
    %v4216 = vunpack.c.h.b16 %v2928
    %v4217 = vunpack.c.l.b16 %v2929
    %v4218 = vunpack.c.h.b16 %v2929
    %v4219 = vunpack.c.l.b16 %v2930
    %v4220 = vunpack.c.h.b16 %v2930
    %v4221 = vunpack.c.l.b16 %v2931
    %v4222 = vunpack.c.h.b16 %v2931
    %v4223 = vunpack.c.l.b16 %v2932
    %v4224 = vunpack.c.h.b16 %v2932
    %v4225 = vunpack.c.l.b16 %v2933
    %v4226 = vunpack.c.h.b16 %v2933
    %v4227 = vunpack.c.l.b16 %v2934
    %v4228 = vunpack.c.h.b16 %v2934
    %v4229 = vunpack.c.l.b16 %v2935
    %v4230 = vunpack.c.h.b16 %v2935
    %v4231 = vunpack.c.l.b16 %v2936
    %v4232 = vunpack.c.h.b16 %v2936
    %v4233 = vunpack.c.l.b16 %v2937
    %v4234 = vunpack.c.h.b16 %v2937
    %v4235 = vunpack.c.l.b16 %v2938
    %v4236 = vunpack.c.h.b16 %v2938
    %v4237 = vunpack.c.l.b16 %v2939
    %v4238 = vunpack.c.h.b16 %v2939
    %v4239 = vunpack.c.l.b16 %v2940
    %v4240 = vunpack.c.h.b16 %v2940
    %v4241 = vunpack.c.l.b16 %v2941
    %v4242 = vunpack.c.h.b16 %v2941
    %v4243 = vunpack.c.l.b16 %v2942
    %v4244 = vunpack.c.h.b16 %v2942
    %v4245 = vunpack.c.l.b16 %v2943
    %v4246 = vunpack.c.h.b16 %v2943
    %v4247 = vunpack.c.l.b16 %v2944
    %v4248 = vunpack.c.h.b16 %v2944
    %v4249 = vunpack.c.l.b16 %v2945
    %v4250 = vunpack.c.h.b16 %v2945
    %v4251 = vunpack.c.l.b16 %v2946
    %v4252 = vunpack.c.h.b16 %v2946
    %v4253 = vunpack.c.l.b16 %v2947
    %v4254 = vunpack.c.h.b16 %v2947
    %v4255 = vunpack.c.l.b16 %v2948
    %v4256 = vunpack.c.h.b16 %v2948
    %v4257 = vunpack.c.l.b16 %v2949
    %v4258 = vunpack.c.h.b16 %v2949
    %v4259 = vunpack.c.l.b16 %v2950
    %v4260 = vunpack.c.h.b16 %v2950
    %v4261 = vunpack.c.l.b16 %v2951
    %v4262 = vunpack.c.h.b16 %v2951
    %v4263 = vunpack.c.l.b16 %v2952
    %v4264 = vunpack.c.h.b16 %v2952
    %v4265 = vunpack.c.l.b16 %v2953
    %v4266 = vunpack.c.h.b16 %v2953
    %v4267 = vunpack.c.l.b16 %v2954
    %v4268 = vunpack.c.h.b16 %v2954
    %v4269 = vunpack.c.l.b16 %v2955
    %v4270 = vunpack.c.h.b16 %v2955
    %v4271 = vunpack.c.l.b16 %v2956
    %v4272 = vunpack.c.h.b16 %v2956
    %v4273 = vunpack.c.l.b16 %v2957
    %v4274 = vunpack.c.h.b16 %v2957
    %v4275 = vunpack.c.l.b16 %v2958
    %v4276 = vunpack.c.h.b16 %v2958
    %v4277 = vunpack.c.l.b16 %v2959
    %v4278 = vunpack.c.h.b16 %v2959
    %v4279 = vunpack.c.l.b16 %v2960
    %v4280 = vunpack.c.h.b16 %v2960
    %v4281 = vunpack.c.l.b16 %v2961
    %v4282 = vunpack.c.h.b16 %v2961
    %v4283 = vunpack.c.l.b16 %v2962
    %v4284 = vunpack.c.h.b16 %v2962
    %v4285 = vunpack.c.l.b16 %v2963
    %v4286 = vunpack.c.h.b16 %v2963
    %v4287 = vunpack.c.l.b16 %v2964
    %v4288 = vunpack.c.h.b16 %v2964
    %v4289 = vunpack.c.l.b16 %v2965
    %v4290 = vunpack.c.h.b16 %v2965
    %v4291 = vunpack.c.l.b16 %v2966
    %v4292 = vunpack.c.h.b16 %v2966
    %v4293 = vunpack.c.l.b16 %v2967
    %v4294 = vunpack.c.h.b16 %v2967
    %v4295 = vunpack.c.l.b16 %v2968
    %v4296 = vunpack.c.h.b16 %v2968
    %v4297 = vunpack.c.l.b16 %v2969
    %v4298 = vunpack.c.h.b16 %v2969
    %v4299 = vunpack.c.l.b16 %v2970
    %v4300 = vunpack.c.h.b16 %v2970
    %v4301 = vunpack.c.l.b16 %v2971
    %v4302 = vunpack.c.h.b16 %v2971
    %v4303 = vunpack.c.l.b16 %v2972
    %v4304 = vunpack.c.h.b16 %v2972
    %v4305 = vunpack.c.l.b16 %v2973
    %v4306 = vunpack.c.h.b16 %v2973
    %v4307 = vunpack.c.l.b16 %v2974
    %v4308 = vunpack.c.h.b16 %v2974
    %v4309 = vunpack.c.l.b16 %v2975
    %v4310 = vunpack.c.h.b16 %v2975
    %v4311 = vunpack.c.l.b16 %v2976
    %v4312 = vunpack.c.h.b16 %v2976
    %v4313 = vunpack.c.l.b16 %v2977
    %v4314 = vunpack.c.h.b16 %v2977
    %v4315 = vunpack.c.l.b16 %v2978
    %v4316 = vunpack.c.h.b16 %v2978
    %v4317 = vunpack.c.l.b16 %v2979
    %v4318 = vunpack.c.h.b16 %v2979
    %v4319 = vunpack.c.l.b16 %v2980
    %v4320 = vunpack.c.h.b16 %v2980
    %v4321 = vunpack.c.l.b16 %v2981
    %v4322 = vunpack.c.h.b16 %v2981
    %v4323 = vunpack.c.l.b16 %v2982
    %v4324 = vunpack.c.h.b16 %v2982
    %v4325 = vunpack.c.l.b16 %v2983
    %v4326 = vunpack.c.h.b16 %v2983
    %v4327 = vunpack.c.l.b16 %v2984
    %v4328 = vunpack.c.h.b16 %v2984
    %v4329 = vunpack.c.l.b16 %v2985
    %v4330 = vunpack.c.h.b16 %v2985
    %v4331 = vunpack.c.l.b16 %v2986
    %v4332 = vunpack.c.h.b16 %v2986
    %v4333 = vunpack.c.l.b16 %v2987
    %v4334 = vunpack.c.h.b16 %v2987
    %v4335 = vunpack.c.l.b16 %v2988
    %v4336 = vunpack.c.h.b16 %v2988
    %v4337 = vunpack.c.l.b16 %v2989
    %v4338 = vunpack.c.h.b16 %v2989
    %v4339 = vunpack.c.l.b16 %v2990
    %v4340 = vunpack.c.h.b16 %v2990
    %v4341 = vunpack.c.l.b16 %v2991
    %v4342 = vunpack.c.h.b16 %v2991
    %v4343 = vunpack.c.l.b16 %v2992
    %v4344 = vunpack.c.h.b16 %v2992
    %v4345 = vunpack.c.l.b16 %v2993
    %v4346 = vunpack.c.h.b16 %v2993
    %v4347 = vunpack.c.l.b16 %v2994
    %v4348 = vunpack.c.h.b16 %v2994
    %v4349 = vunpack.c.l.b16 %v2995
    %v4350 = vunpack.c.h.b16 %v2995
    %v4351 = vunpack.c.l.b16 %v2996
    %v4352 = vunpack.c.h.b16 %v2996
    %v4353 = vunpack.c.l.b16 %v2997
    %v4354 = vunpack.c.h.b16 %v2997
    %v4355 = vunpack.c.l.b16 %v2998
    %v4356 = vunpack.c.h.b16 %v2998
    %v4357 = vunpack.c.l.b16 %v2999
    %v4358 = vunpack.c.h.b16 %v2999
    %v4359 = vunpack.c.l.b16 %v3000
    %v4360 = vunpack.c.h.b16 %v3000
    %v4361 = vunpack.c.l.b16 %v3001
    %v4362 = vunpack.c.h.b16 %v3001
    %v4363 = vunpack.c.l.b16 %v3002
    %v4364 = vunpack.c.h.b16 %v3002
    %v4365 = vunpack.c.l.b16 %v3003
    %v4366 = vunpack.c.h.b16 %v3003
    %v4367 = vunpack.c.l.b16 %v3004
    %v4368 = vunpack.c.h.b16 %v3004
    %v4369 = vunpack.c.l.b16 %v3005
    %v4370 = vunpack.c.h.b16 %v3005
    %v4371 = vunpack.c.l.b16 %v3006
    %v4372 = vunpack.c.h.b16 %v3006
    %v4373 = vunpack.c.l.b16 %v3007
    %v4374 = vunpack.c.h.b16 %v3007
    %v4375 = vunpack.c.l.b16 %v3008
    %v4376 = vunpack.c.h.b16 %v3008
    %v4377 = vunpack.c.l.b16 %v3009
    %v4378 = vunpack.c.h.b16 %v3009
    %v4379 = vunpack.c.l.b16 %v3010
    %v4380 = vunpack.c.h.b16 %v3010
    %v4381 = vunpack.c.l.b16 %v3011
    %v4382 = vunpack.c.h.b16 %v3011
    %v4383 = vunpack.c.l.b16 %v3012
    %v4384 = vunpack.c.h.b16 %v3012
    %v4385 = vunpack.c.l.b16 %v3013
    %v4386 = vunpack.c.h.b16 %v3013
    %v4387 = vunpack.c.l.b16 %v3014
    %v4388 = vunpack.c.h.b16 %v3014
    %v4389 = vunpack.c.l.b16 %v3015
    %v4390 = vunpack.c.h.b16 %v3015
    %v4391 = vunpack.c.l.b16 %v3016
    %v4392 = vunpack.c.h.b16 %v3016
    %v4393 = vunpack.c.l.b16 %v3017
    %v4394 = vunpack.c.h.b16 %v3017
    %v4395 = vunpack.c.l.b16 %v3018
    %v4396 = vunpack.c.h.b16 %v3018
    %v4397 = vunpack.c.l.b16 %v3019
    %v4398 = vunpack.c.h.b16 %v3019
    %v4399 = vunpack.c.l.b16 %v3020
    %v4400 = vunpack.c.h.b16 %v3020
    %v4401 = vunpack.c.l.b16 %v3021
    %v4402 = vunpack.c.h.b16 %v3021
    %v4403 = vunpack.c.l.b16 %v3022
    %v4404 = vunpack.c.h.b16 %v3022
    %v4405 = vunpack.c.l.b16 %v3023
    %v4406 = vunpack.c.h.b16 %v3023
    %v4407 = vunpack.c.l.b16 %v3024
    %v4408 = vunpack.c.h.b16 %v3024
    %v4409 = vunpack.c.l.b16 %v3025
    %v4410 = vunpack.c.h.b16 %v3025
    %v4411 = vunpack.c.l.b16 %v3026
    %v4412 = vunpack.c.h.b16 %v3026
    %v4413 = vunpack.c.l.b16 %v3027
    %v4414 = vunpack.c.h.b16 %v3027
    %v4415 = vunpack.c.l.b16 %v3028
    %v4416 = vunpack.c.h.b16 %v3028
    %v4417 = vunpack.c.l.b16 %v3029
    %v4418 = vunpack.c.h.b16 %v3029
    %v4419 = vunpack.c.l.b16 %v3030
    %v4420 = vunpack.c.h.b16 %v3030
    %v4421 = vunpack.c.l.b16 %v3031
    %v4422 = vunpack.c.h.b16 %v3031
    %v4423 = vunpack.c.l.b16 %v3032
    %v4424 = vunpack.c.h.b16 %v3032
    %v4425 = vunpack.c.l.b16 %v3033
    %v4426 = vunpack.c.h.b16 %v3033
    %v4427 = vunpack.c.l.b16 %v3034
    %v4428 = vunpack.c.h.b16 %v3034
    %v4429 = vunpack.c.l.b16 %v3035
    %v4430 = vunpack.c.h.b16 %v3035
    %v4431 = vunpack.c.l.b16 %v3036
    %v4432 = vunpack.c.h.b16 %v3036
    %v4433 = vunpack.c.l.b16 %v3037
    %v4434 = vunpack.c.h.b16 %v3037
    %v4435 = vunpack.c.l.b16 %v3038
    %v4436 = vunpack.c.h.b16 %v3038
    %v4437 = vunpack.c.l.b16 %v3039
    %v4438 = vunpack.c.h.b16 %v3039
    %v4439 = vunpack.c.l.b16 %v3040
    %v4440 = vunpack.c.h.b16 %v3040
    %v4441 = vunpack.c.l.b16 %v3041
    %v4442 = vunpack.c.h.b16 %v3041
    %v4443 = vunpack.c.l.b16 %v3042
    %v4444 = vunpack.c.h.b16 %v3042
    %v4445 = vunpack.c.l.b16 %v3043
    %v4446 = vunpack.c.h.b16 %v3043
    %v4447 = vunpack.c.l.b16 %v3044
    %v4448 = vunpack.c.h.b16 %v3044
    %v4449 = vunpack.c.l.b16 %v3045
    %v4450 = vunpack.c.h.b16 %v3045
    %v4451 = vunpack.c.l.b16 %v3046
    %v4452 = vunpack.c.h.b16 %v3046
    %v4453 = vunpack.c.l.b16 %v3047
    %v4454 = vunpack.c.h.b16 %v3047
    %v4455 = vunpack.c.l.b16 %v3048
    %v4456 = vunpack.c.h.b16 %v3048
    %v4457 = vunpack.c.l.b16 %v3049
    %v4458 = vunpack.c.h.b16 %v3049
    %v4459 = vunpack.c.l.b16 %v3050
    %v4460 = vunpack.c.h.b16 %v3050
    %v4461 = vunpack.c.l.b16 %v3051
    %v4462 = vunpack.c.h.b16 %v3051
    %v4463 = vunpack.c.l.b16 %v3052
    %v4464 = vunpack.c.h.b16 %v3052
    %v4465 = vunpack.c.l.b16 %v3053
    %v4466 = vunpack.c.h.b16 %v3053
    %v4467 = vunpack.c.l.b16 %v3054
    %v4468 = vunpack.c.h.b16 %v3054
    %v4469 = vunpack.c.l.b16 %v3055
    %v4470 = vunpack.c.h.b16 %v3055
    %v4471 = vunpack.c.l.b16 %v3056
    %v4472 = vunpack.c.h.b16 %v3056
    %v4473 = vunpack.c.l.b16 %v3057
    %v4474 = vunpack.c.h.b16 %v3057
    %v4475 = vunpack.c.l.b16 %v3058
    %v4476 = vunpack.c.h.b16 %v3058
    %v4477 = vunpack.c.l.b16 %v3059
    %v4478 = vunpack.c.h.b16 %v3059
    %v4479 = vunpack.c.l.b16 %v3060
    %v4480 = vunpack.c.h.b16 %v3060
    %v4481 = vunpack.c.l.b16 %v3061
    %v4482 = vunpack.c.h.b16 %v3061
    %v4483 = vunpack.c.l.b16 %v3062
    %v4484 = vunpack.c.h.b16 %v3062
    %v4485 = vunpack.c.l.b16 %v3063
    %v4486 = vunpack.c.h.b16 %v3063
    %v4487 = vunpack.c.l.b16 %v3064
    %v4488 = vunpack.c.h.b16 %v3064
    %v4489 = vunpack.c.l.b16 %v3065
    %v4490 = vunpack.c.h.b16 %v3065
    %v4491 = vunpack.c.l.b16 %v3066
    %v4492 = vunpack.c.h.b16 %v3066
    %v4493 = vunpack.c.l.b16 %v3067
    %v4494 = vunpack.c.h.b16 %v3067
    %v4495 = vunpack.c.l.b16 %v3068
    %v4496 = vunpack.c.h.b16 %v3068
    %v4497 = vunpack.c.l.b16 %v3069
    %v4498 = vunpack.c.h.b16 %v3069
    %v4499 = vunpack.c.l.b16 %v3070
    %v4500 = vunpack.c.h.b16 %v3070
    %v4501 = vunpack.c.l.b16 %v3071
    %v4502 = vunpack.c.h.b16 %v3071
    %v4503 = vunpack.c.l.b16 %v3072
    %v4504 = vunpack.c.h.b16 %v3072
    %v4505 = vunpack.c.l.b16 %v3073
    %v4506 = vunpack.c.h.b16 %v3073
    %v4507 = vunpack.c.l.b16 %v3074
    %v4508 = vunpack.c.h.b16 %v3074
    %v4509 = vunpack.c.l.b16 %v3075
    %v4510 = vunpack.c.h.b16 %v3075
    %v4511 = vunpack.c.l.b16 %v3076
    %v4512 = vunpack.c.h.b16 %v3076
    %v4513 = vunpack.c.l.b16 %v3077
    %v4514 = vunpack.c.h.b16 %v3077
    %v4515 = vunpack.c.l.b16 %v3078
    %v4516 = vunpack.c.h.b16 %v3078
    %v4517 = vunpack.c.l.b16 %v3079
    %v4518 = vunpack.c.h.b16 %v3079
    %v4519 = vunpack.c.l.b16 %v3080
    %v4520 = vunpack.c.h.b16 %v3080
    %v4521 = vunpack.c.l.b16 %v3081
    %v4522 = vunpack.c.h.b16 %v3081
    %v4523 = vunpack.c.l.b16 %v3082
    %v4524 = vunpack.c.h.b16 %v3082
    %v4525 = vunpack.c.l.b16 %v3083
    %v4526 = vunpack.c.h.b16 %v3083
    %v4527 = vunpack.c.l.b16 %v3084
    %v4528 = vunpack.c.h.b16 %v3084
    %v4529 = vunpack.c.l.b16 %v3085
    %v4530 = vunpack.c.h.b16 %v3085
    %v4531 = vunpack.c.l.b16 %v3086
    %v4532 = vunpack.c.h.b16 %v3086
    %v4533 = vunpack.c.l.b16 %v3087
    %v4534 = vunpack.c.h.b16 %v3087
    %v4535 = vunpack.c.l.b16 %v3088
    %v4536 = vunpack.c.h.b16 %v3088
    %v4537 = vunpack.c.l.b16 %v3089
    %v4538 = vunpack.c.h.b16 %v3089
    %v4539 = vunpack.c.l.b16 %v3090
    %v4540 = vunpack.c.h.b16 %v3090
    %v4541 = vunpack.c.l.b16 %v3091
    %v4542 = vunpack.c.h.b16 %v3091
    %v4543 = vunpack.c.l.b16 %v3092
    %v4544 = vunpack.c.h.b16 %v3092
    %v4545 = vunpack.c.l.b16 %v3093
    %v4546 = vunpack.c.h.b16 %v3093
    %v4547 = vunpack.c.l.b16 %v3094
    %v4548 = vunpack.c.h.b16 %v3094
    %v4549 = vunpack.c.l.b16 %v3095
    %v4550 = vunpack.c.h.b16 %v3095
    %v4551 = vunpack.c.l.b16 %v3096
    %v4552 = vunpack.c.h.b16 %v3096
    %v4553 = vunpack.c.l.b16 %v3097
    %v4554 = vunpack.c.h.b16 %v3097
    %v4555 = vunpack.c.l.b16 %v3098
    %v4556 = vunpack.c.h.b16 %v3098
    %v4557 = vunpack.c.l.b16 %v3099
    %v4558 = vunpack.c.h.b16 %v3099
    %v4559 = vunpack.c.l.b16 %v3100
    %v4560 = vunpack.c.h.b16 %v3100
    %v4561 = vunpack.c.l.b16 %v3101
    %v4562 = vunpack.c.h.b16 %v3101
    %v4563 = vunpack.c.l.b16 %v3102
    %v4564 = vunpack.c.h.b16 %v3102
    %v4565 = vunpack.c.l.b16 %v3103
    %v4566 = vunpack.c.h.b16 %v3103
    %v4567 = vunpack.c.l.b16 %v3104
    %v4568 = vunpack.c.h.b16 %v3104
    %v4569 = vunpack.c.l.b16 %v3105
    %v4570 = vunpack.c.h.b16 %v3105
    %v4571 = vunpack.c.l.b16 %v3106
    %v4572 = vunpack.c.h.b16 %v3106
    %v4573 = vunpack.c.l.b16 %v3107
    %v4574 = vunpack.c.h.b16 %v3107
    %v4575 = vunpack.c.l.b16 %v3108
    %v4576 = vunpack.c.h.b16 %v3108
    %v4577 = vunpack.c.l.b16 %v3109
    %v4578 = vunpack.c.h.b16 %v3109
    %v4579 = vunpack.c.l.b16 %v3110
    %v4580 = vunpack.c.h.b16 %v3110
    %v4581 = vunpack.c.l.b16 %v3111
    %v4582 = vunpack.c.h.b16 %v3111
    %v4583 = vunpack.c.l.b16 %v3112
    %v4584 = vunpack.c.h.b16 %v3112
    %v4585 = vunpack.c.l.b16 %v3113
    %v4586 = vunpack.c.h.b16 %v3113
    %v4587 = vunpack.c.l.b16 %v3114
    %v4588 = vunpack.c.h.b16 %v3114
    %v4589 = vunpack.c.l.b16 %v3115
    %v4590 = vunpack.c.h.b16 %v3115
    %v4591 = vunpack.c.l.b16 %v3116
    %v4592 = vunpack.c.h.b16 %v3116
    %v4593 = vunpack.c.l.b16 %v3117
    %v4594 = vunpack.c.h.b16 %v3117
    %v4595 = vunpack.c.l.b16 %v3118
    %v4596 = vunpack.c.h.b16 %v3118
    %v4597 = vunpack.c.l.b16 %v3119
    %v4598 = vunpack.c.h.b16 %v3119
    %v4599 = vunpack.c.l.b16 %v3120
    %v4600 = vunpack.c.h.b16 %v3120
    %v4601 = vunpack.c.l.b16 %v3121
    %v4602 = vunpack.c.h.b16 %v3121
    %v4603 = vunpack.c.l.b16 %v3122
    %v4604 = vunpack.c.h.b16 %v3122
    %v4605 = vunpack.c.l.b16 %v3123
    %v4606 = vunpack.c.h.b16 %v3123
    %v4607 = vunpack.c.l.b16 %v3124
    %v4608 = vunpack.c.h.b16 %v3124
    %v4609 = vunpack.c.l.b16 %v3125
    %v4610 = vunpack.c.h.b16 %v3125
    %v4611 = vunpack.c.l.b16 %v3126
    %v4612 = vunpack.c.h.b16 %v3126
    %v4613 = vunpack.c.l.b16 %v3127
    %v4614 = vunpack.c.h.b16 %v3127
    %v4615 = vunpack.c.l.b16 %v3128
    %v4616 = vunpack.c.h.b16 %v3128
    %v4617 = vunpack.c.l.b16 %v3129
    %v4618 = vunpack.c.h.b16 %v3129
    %v4619 = vunpack.c.l.b16 %v3130
    %v4620 = vunpack.c.h.b16 %v3130
    %v4621 = vunpack.c.l.b16 %v3131
    %v4622 = vunpack.c.h.b16 %v3131
    %v4623 = vunpack.c.l.b16 %v3132
    %v4624 = vunpack.c.h.b16 %v3132
    %v4625 = vunpack.c.l.b16 %v3133
    %v4626 = vunpack.c.h.b16 %v3133
    %v4627 = vunpack.c.l.b16 %v3134
    %v4628 = vunpack.c.h.b16 %v3134
    %v4629 = vunpack.c.l.b16 %v3135
    %v4630 = vunpack.c.h.b16 %v3135
    %v4631 = vunpack.c.l.b16 %v3136
    %v4632 = vunpack.c.h.b16 %v3136
    %v4633 = vunpack.c.l.b16 %v3137
    %v4634 = vunpack.c.h.b16 %v3137
    %v4635 = vunpack.c.l.b16 %v3138
    %v4636 = vunpack.c.h.b16 %v3138
    %v4637 = vunpack.c.l.b16 %v3139
    %v4638 = vunpack.c.h.b16 %v3139
    %v4639 = vunpack.c.l.b16 %v3140
    %v4640 = vunpack.c.h.b16 %v3140
    %v4641 = vunpack.c.l.b16 %v3141
    %v4642 = vunpack.c.h.b16 %v3141
    %v4643 = vunpack.c.l.b16 %v3142
    %v4644 = vunpack.c.h.b16 %v3142
    %v4645 = vunpack.c.l.b16 %v3143
    %v4646 = vunpack.c.h.b16 %v3143
    %v4647 = vunpack.c.l.b16 %v3144
    %v4648 = vunpack.c.h.b16 %v3144
    %v4649 = vunpack.c.l.b16 %v3145
    %v4650 = vunpack.c.h.b16 %v3145
    %v4651 = vunpack.c.l.b16 %v3146
    %v4652 = vunpack.c.h.b16 %v3146
    %v4653 = vunpack.c.l.b16 %v3147
    %v4654 = vunpack.c.h.b16 %v3147
    %v4655 = vunpack.c.l.b16 %v3148
    %v4656 = vunpack.c.h.b16 %v3148
    %v4657 = vunpack.c.l.b16 %v3149
    %v4658 = vunpack.c.h.b16 %v3149
    %v4659 = vunpack.c.l.b16 %v3150
    %v4660 = vunpack.c.h.b16 %v3150
    %v4661 = vunpack.c.l.b16 %v3151
    %v4662 = vunpack.c.h.b16 %v3151
    %v4663 = vunpack.c.l.b16 %v3152
    %v4664 = vunpack.c.h.b16 %v3152
    %v4665 = vunpack.c.l.b16 %v3153
    %v4666 = vunpack.c.h.b16 %v3153
    %v4667 = vunpack.c.l.b16 %v3154
    %v4668 = vunpack.c.h.b16 %v3154
    %v4669 = vunpack.c.l.b16 %v3155
    %v4670 = vunpack.c.h.b16 %v3155
    %v4671 = vunpack.c.l.b16 %v3156
    %v4672 = vunpack.c.h.b16 %v3156
    %v4673 = vunpack.c.l.b16 %v3157
    %v4674 = vunpack.c.h.b16 %v3157
    %v4675 = vunpack.c.l.b16 %v3158
    %v4676 = vunpack.c.h.b16 %v3158
    %v4677 = vunpack.c.l.b16 %v3159
    %v4678 = vunpack.c.h.b16 %v3159
    %v4679 = vunpack.c.l.b16 %v3160
    %v4680 = vunpack.c.h.b16 %v3160
    %v4681 = vunpack.c.l.b16 %v3161
    %v4682 = vunpack.c.h.b16 %v3161
    %v4683 = vunpack.c.l.b16 %v3162
    %v4684 = vunpack.c.h.b16 %v3162
    %v4685 = vunpack.c.l.b16 %v3163
    %v4686 = vunpack.c.h.b16 %v3163
    %v4687 = vunpack.c.l.b16 %v3164
    %v4688 = vunpack.c.h.b16 %v3164
    %v4689 = vunpack.c.l.b16 %v3165
    %v4690 = vunpack.c.h.b16 %v3165
    %v4691 = vunpack.c.l.b16 %v3166
    %v4692 = vunpack.c.h.b16 %v3166
    %v4693 = vunpack.c.l.b16 %v3167
    %v4694 = vunpack.c.h.b16 %v3167
    %v4695 = vunpack.c.l.b16 %v3168
    %v4696 = vunpack.c.h.b16 %v3168
    %v4697 = vunpack.c.l.b16 %v3169
    %v4698 = vunpack.c.h.b16 %v3169
    %v4699 = vunpack.c.l.b16 %v3170
    %v4700 = vunpack.c.h.b16 %v3170
    %v4701 = vunpack.c.l.b16 %v3171
    %v4702 = vunpack.c.h.b16 %v3171
    %v4703 = vunpack.c.l.b16 %v3172
    %v4704 = vunpack.c.h.b16 %v3172
    %v4705 = vunpack.c.l.b16 %v3173
    %v4706 = vunpack.c.h.b16 %v3173
    %v4707 = vunpack.c.l.b16 %v3174
    %v4708 = vunpack.c.h.b16 %v3174
    %v4709 = vunpack.c.l.b16 %v3175
    %v4710 = vunpack.c.h.b16 %v3175
    %v4711 = vunpack.c.l.b16 %v3176
    %v4712 = vunpack.c.h.b16 %v3176
    %v4713 = vunpack.c.l.b16 %v3177
    %v4714 = vunpack.c.h.b16 %v3177
    %v4715 = vunpack.c.l.b16 %v3178
    %v4716 = vunpack.c.h.b16 %v3178
    %v4717 = vunpack.c.l.b16 %v3179
    %v4718 = vunpack.c.h.b16 %v3179
    %v4719 = vunpack.c.l.b16 %v3180
    %v4720 = vunpack.c.h.b16 %v3180
    %v4721 = vunpack.c.l.b16 %v3181
    %v4722 = vunpack.c.h.b16 %v3181
    %v4723 = vunpack.c.l.b16 %v3182
    %v4724 = vunpack.c.h.b16 %v3182
    %v4725 = vunpack.c.l.b16 %v3183
    %v4726 = vunpack.c.h.b16 %v3183
    %v4727 = vunpack.c.l.b16 %v3184
    %v4728 = vunpack.c.h.b16 %v3184
    %v4729 = vunpack.c.l.b16 %v3185
    %v4730 = vunpack.c.h.b16 %v3185
    %v4731 = vunpack.c.l.b16 %v3186
    %v4732 = vunpack.c.h.b16 %v3186
    %v4733 = vunpack.c.l.b16 %v3187
    %v4734 = vunpack.c.h.b16 %v3187
    %v4735 = vunpack.c.l.b16 %v3188
    %v4736 = vunpack.c.h.b16 %v3188
    %v4737 = vunpack.c.l.b16 %v3189
    %v4738 = vunpack.c.h.b16 %v3189
    %v4739 = vunpack.c.l.b16 %v3190
    %v4740 = vunpack.c.h.b16 %v3190
    %v4741 = vunpack.c.l.b16 %v3191
    %v4742 = vunpack.c.h.b16 %v3191
    %v4743 = vunpack.c.l.b16 %v3192
    %v4744 = vunpack.c.h.b16 %v3192
    %v4745 = vunpack.c.l.b16 %v3193
    %v4746 = vunpack.c.h.b16 %v3193
    %v4747 = vunpack.c.l.b16 %v3194
    %v4748 = vunpack.c.h.b16 %v3194
    %v4749 = vunpack.c.l.b16 %v3195
    %v4750 = vunpack.c.h.b16 %v3195
    %v4751 = vunpack.c.l.b16 %v3196
    %v4752 = vunpack.c.h.b16 %v3196
    %v4753 = vunpack.c.l.b16 %v3197
    %v4754 = vunpack.c.h.b16 %v3197
    %v4755 = vunpack.c.l.b16 %v3198
    %v4756 = vunpack.c.h.b16 %v3198
    %v4757 = vunpack.c.l.b16 %v3199
    %v4758 = vunpack.c.h.b16 %v3199
    %v4759 = vunpack.c.l.b16 %v3200
    %v4760 = vunpack.c.h.b16 %v3200
    %v4761 = vunpack.c.l.b16 %v3201
    %v4762 = vunpack.c.h.b16 %v3201
    %v4763 = vunpack.c.l.b16 %v3202
    %v4764 = vunpack.c.h.b16 %v3202
    %v4765 = vunpack.c.l.b16 %v3203
    %v4766 = vunpack.c.h.b16 %v3203
    %v4767 = vunpack.c.l.b16 %v3204
    %v4768 = vunpack.c.h.b16 %v3204
    %v4769 = vunpack.c.l.b16 %v3205
    %v4770 = vunpack.c.h.b16 %v3205
    %v4771 = vunpack.c.l.b16 %v3206
    %v4772 = vunpack.c.h.b16 %v3206
    %v4773 = vunpack.c.l.b16 %v3207
    %v4774 = vunpack.c.h.b16 %v3207
    %v4775 = vunpack.c.l.b16 %v3208
    %v4776 = vunpack.c.h.b16 %v3208
    %v4777 = vunpack.c.l.b16 %v3209
    %v4778 = vunpack.c.h.b16 %v3209
    %v4779 = vunpack.c.l.b16 %v3210
    %v4780 = vunpack.c.h.b16 %v3210
    %v4781 = vunpack.c.l.b16 %v3211
    %v4782 = vunpack.c.h.b16 %v3211
    %v4783 = vunpack.c.l.b16 %v3212
    %v4784 = vunpack.c.h.b16 %v3212
    %v4785 = vunpack.c.l.b16 %v3213
    %v4786 = vunpack.c.h.b16 %v3213
    %v4787 = vunpack.c.l.b16 %v3214
    %v4788 = vunpack.c.h.b16 %v3214
    %v4789 = vunpack.c.l.b16 %v3215
    %v4790 = vunpack.c.h.b16 %v3215
    %v4791 = vunpack.c.l.b16 %v3216
    %v4792 = vunpack.c.h.b16 %v3216
    %v4793 = vunpack.c.l.b16 %v3217
    %v4794 = vunpack.c.h.b16 %v3217
    %v4795 = vunpack.c.l.b16 %v3218
    %v4796 = vunpack.c.h.b16 %v3218
    %v4797 = vpack.c.b16 %v3781, %v3773
    %v4798 = vpack.c.b16 %v3782, %v3774
    %v4799 = vpack.c.b16 %v3783, %v3775
    %v4800 = vpack.c.b16 %v3784, %v3776
    %v4801 = vpack.c.b16 %v3785, %v3777
    %v4802 = vpack.c.b16 %v3786, %v3778
    %v4803 = vpack.c.b16 %v3787, %v3779
    %v4804 = vpack.c.b16 %v3788, %v3780
    %v4805 = vpack.c.b16 %v3797, %v3789
    %v4806 = vpack.c.b16 %v3798, %v3790
    %v4807 = vpack.c.b16 %v3799, %v3791
    %v4808 = vpack.c.b16 %v3800, %v3792
    %v4809 = vpack.c.b16 %v3801, %v3793
    %v4810 = vpack.c.b16 %v3802, %v3794
    %v4811 = vpack.c.b16 %v3803, %v3795
    %v4812 = vpack.c.b16 %v3804, %v3796
    %v4813 = vpack.c.b16 %v3813, %v3805
    %v4814 = vpack.c.b16 %v3814, %v3806
    %v4815 = vpack.c.b16 %v3815, %v3807
    %v4816 = vpack.c.b16 %v3816, %v3808
    %v4817 = vpack.c.b16 %v3817, %v3809
    %v4818 = vpack.c.b16 %v3818, %v3810
    %v4819 = vpack.c.b16 %v3819, %v3811
    %v4820 = vpack.c.b16 %v3820, %v3812
    %v4821 = vpack.c.b16 %v3829, %v3821
    %v4822 = vpack.c.b16 %v3830, %v3822
    %v4823 = vpack.c.b16 %v3831, %v3823
    %v4824 = vpack.c.b16 %v3832, %v3824
    %v4825 = vpack.c.b16 %v3833, %v3825
    %v4826 = vpack.c.b16 %v3834, %v3826
    %v4827 = vpack.c.b16 %v3835, %v3827
    %v4828 = vpack.c.b16 %v3836, %v3828
    %v4829 = vpack.c.b16 %v3845, %v3837
    %v4830 = vpack.c.b16 %v3846, %v3838
    %v4831 = vpack.c.b16 %v3847, %v3839
    %v4832 = vpack.c.b16 %v3848, %v3840
    %v4833 = vpack.c.b16 %v3849, %v3841
    %v4834 = vpack.c.b16 %v3850, %v3842
    %v4835 = vpack.c.b16 %v3851, %v3843
    %v4836 = vpack.c.b16 %v3852, %v3844
    %v4837 = vpack.c.b16 %v3861, %v3853
    %v4838 = vpack.c.b16 %v3862, %v3854
    %v4839 = vpack.c.b16 %v3863, %v3855
    %v4840 = vpack.c.b16 %v3864, %v3856
    %v4841 = vpack.c.b16 %v3865, %v3857
    %v4842 = vpack.c.b16 %v3866, %v3858
    %v4843 = vpack.c.b16 %v3867, %v3859
    %v4844 = vpack.c.b16 %v3868, %v3860
    %v4845 = vpack.c.b16 %v3877, %v3869
    %v4846 = vpack.c.b16 %v3878, %v3870
    %v4847 = vpack.c.b16 %v3879, %v3871
    %v4848 = vpack.c.b16 %v3880, %v3872
    %v4849 = vpack.c.b16 %v3881, %v3873
    %v4850 = vpack.c.b16 %v3882, %v3874
    %v4851 = vpack.c.b16 %v3883, %v3875
    %v4852 = vpack.c.b16 %v3884, %v3876
    %v4853 = vpack.c.b16 %v3893, %v3885
    %v4854 = vpack.c.b16 %v3894, %v3886
    %v4855 = vpack.c.b16 %v3895, %v3887
    %v4856 = vpack.c.b16 %v3896, %v3888
    %v4857 = vpack.c.b16 %v3897, %v3889
    %v4858 = vpack.c.b16 %v3898, %v3890
    %v4859 = vpack.c.b16 %v3899, %v3891
    %v4860 = vpack.c.b16 %v3900, %v3892
    %v4861 = vpack.c.b16 %v3909, %v3901
    %v4862 = vpack.c.b16 %v3910, %v3902
    %v4863 = vpack.c.b16 %v3911, %v3903
    %v4864 = vpack.c.b16 %v3912, %v3904
    %v4865 = vpack.c.b16 %v3913, %v3905
    %v4866 = vpack.c.b16 %v3914, %v3906
    %v4867 = vpack.c.b16 %v3915, %v3907
    %v4868 = vpack.c.b16 %v3916, %v3908
    %v4869 = vpack.c.b16 %v3925, %v3917
    %v4870 = vpack.c.b16 %v3926, %v3918
    %v4871 = vpack.c.b16 %v3927, %v3919
    %v4872 = vpack.c.b16 %v3928, %v3920
    %v4873 = vpack.c.b16 %v3929, %v3921
    %v4874 = vpack.c.b16 %v3930, %v3922
    %v4875 = vpack.c.b16 %v3931, %v3923
    %v4876 = vpack.c.b16 %v3932, %v3924
    %v4877 = vpack.c.b16 %v3941, %v3933
    %v4878 = vpack.c.b16 %v3942, %v3934
    %v4879 = vpack.c.b16 %v3943, %v3935
    %v4880 = vpack.c.b16 %v3944, %v3936
    %v4881 = vpack.c.b16 %v3945, %v3937
    %v4882 = vpack.c.b16 %v3946, %v3938
    %v4883 = vpack.c.b16 %v3947, %v3939
    %v4884 = vpack.c.b16 %v3948, %v3940
    %v4885 = vpack.c.b16 %v3957, %v3949
    %v4886 = vpack.c.b16 %v3958, %v3950
    %v4887 = vpack.c.b16 %v3959, %v3951
    %v4888 = vpack.c.b16 %v3960, %v3952
    %v4889 = vpack.c.b16 %v3961, %v3953
    %v4890 = vpack.c.b16 %v3962, %v3954
    %v4891 = vpack.c.b16 %v3963, %v3955
    %v4892 = vpack.c.b16 %v3964, %v3956
    %v4893 = vpack.c.b16 %v3973, %v3965
    %v4894 = vpack.c.b16 %v3974, %v3966
    %v4895 = vpack.c.b16 %v3975, %v3967
    %v4896 = vpack.c.b16 %v3976, %v3968
    %v4897 = vpack.c.b16 %v3977, %v3969
    %v4898 = vpack.c.b16 %v3978, %v3970
    %v4899 = vpack.c.b16 %v3979, %v3971
    %v4900 = vpack.c.b16 %v3980, %v3972
    %v4901 = vpack.c.b16 %v3989, %v3981
    %v4902 = vpack.c.b16 %v3990, %v3982
    %v4903 = vpack.c.b16 %v3991, %v3983
    %v4904 = vpack.c.b16 %v3992, %v3984
    %v4905 = vpack.c.b16 %v3993, %v3985
    %v4906 = vpack.c.b16 %v3994, %v3986
    %v4907 = vpack.c.b16 %v3995, %v3987
    %v4908 = vpack.c.b16 %v3996, %v3988
    %v4909 = vpack.c.b16 %v4005, %v3997
    %v4910 = vpack.c.b16 %v4006, %v3998
    %v4911 = vpack.c.b16 %v4007, %v3999
    %v4912 = vpack.c.b16 %v4008, %v4000
    %v4913 = vpack.c.b16 %v4009, %v4001
    %v4914 = vpack.c.b16 %v4010, %v4002
    %v4915 = vpack.c.b16 %v4011, %v4003
    %v4916 = vpack.c.b16 %v4012, %v4004
    %v4917 = vpack.c.b16 %v4021, %v4013
    %v4918 = vpack.c.b16 %v4022, %v4014
    %v4919 = vpack.c.b16 %v4023, %v4015
    %v4920 = vpack.c.b16 %v4024, %v4016
    %v4921 = vpack.c.b16 %v4025, %v4017
    %v4922 = vpack.c.b16 %v4026, %v4018
    %v4923 = vpack.c.b16 %v4027, %v4019
    %v4924 = vpack.c.b16 %v4028, %v4020
    %v4925 = vpack.c.b16 %v4037, %v4029
    %v4926 = vpack.c.b16 %v4038, %v4030
    %v4927 = vpack.c.b16 %v4039, %v4031
    %v4928 = vpack.c.b16 %v4040, %v4032
    %v4929 = vpack.c.b16 %v4041, %v4033
    %v4930 = vpack.c.b16 %v4042, %v4034
    %v4931 = vpack.c.b16 %v4043, %v4035
    %v4932 = vpack.c.b16 %v4044, %v4036
    %v4933 = vpack.c.b16 %v4053, %v4045
    %v4934 = vpack.c.b16 %v4054, %v4046
    %v4935 = vpack.c.b16 %v4055, %v4047
    %v4936 = vpack.c.b16 %v4056, %v4048
    %v4937 = vpack.c.b16 %v4057, %v4049
    %v4938 = vpack.c.b16 %v4058, %v4050
    %v4939 = vpack.c.b16 %v4059, %v4051
    %v4940 = vpack.c.b16 %v4060, %v4052
    %v4941 = vpack.c.b16 %v4069, %v4061
    %v4942 = vpack.c.b16 %v4070, %v4062
    %v4943 = vpack.c.b16 %v4071, %v4063
    %v4944 = vpack.c.b16 %v4072, %v4064
    %v4945 = vpack.c.b16 %v4073, %v4065
    %v4946 = vpack.c.b16 %v4074, %v4066
    %v4947 = vpack.c.b16 %v4075, %v4067
    %v4948 = vpack.c.b16 %v4076, %v4068
    %v4949 = vpack.c.b16 %v4085, %v4077
    %v4950 = vpack.c.b16 %v4086, %v4078
    %v4951 = vpack.c.b16 %v4087, %v4079
    %v4952 = vpack.c.b16 %v4088, %v4080
    %v4953 = vpack.c.b16 %v4089, %v4081
    %v4954 = vpack.c.b16 %v4090, %v4082
    %v4955 = vpack.c.b16 %v4091, %v4083
    %v4956 = vpack.c.b16 %v4092, %v4084
    %v4957 = vpack.c.b16 %v4101, %v4093
    %v4958 = vpack.c.b16 %v4102, %v4094
    %v4959 = vpack.c.b16 %v4103, %v4095
    %v4960 = vpack.c.b16 %v4104, %v4096
    %v4961 = vpack.c.b16 %v4105, %v4097
    %v4962 = vpack.c.b16 %v4106, %v4098
    %v4963 = vpack.c.b16 %v4107, %v4099
    %v4964 = vpack.c.b16 %v4108, %v4100
    %v4965 = vpack.c.b16 %v4117, %v4109
    %v4966 = vpack.c.b16 %v4118, %v4110
    %v4967 = vpack.c.b16 %v4119, %v4111
    %v4968 = vpack.c.b16 %v4120, %v4112
    %v4969 = vpack.c.b16 %v4121, %v4113
    %v4970 = vpack.c.b16 %v4122, %v4114
    %v4971 = vpack.c.b16 %v4123, %v4115
    %v4972 = vpack.c.b16 %v4124, %v4116
    %v4973 = vpack.c.b16 %v4133, %v4125
    %v4974 = vpack.c.b16 %v4134, %v4126
    %v4975 = vpack.c.b16 %v4135, %v4127
    %v4976 = vpack.c.b16 %v4136, %v4128
    %v4977 = vpack.c.b16 %v4137, %v4129
    %v4978 = vpack.c.b16 %v4138, %v4130
    %v4979 = vpack.c.b16 %v4139, %v4131
    %v4980 = vpack.c.b16 %v4140, %v4132
    %v4981 = vpack.c.b16 %v4149, %v4141
    %v4982 = vpack.c.b16 %v4150, %v4142
    %v4983 = vpack.c.b16 %v4151, %v4143
    %v4984 = vpack.c.b16 %v4152, %v4144
    %v4985 = vpack.c.b16 %v4153, %v4145
    %v4986 = vpack.c.b16 %v4154, %v4146
    %v4987 = vpack.c.b16 %v4155, %v4147
    %v4988 = vpack.c.b16 %v4156, %v4148
    %v4989 = vpack.c.b16 %v4165, %v4157
    %v4990 = vpack.c.b16 %v4166, %v4158
    %v4991 = vpack.c.b16 %v4167, %v4159
    %v4992 = vpack.c.b16 %v4168, %v4160
    %v4993 = vpack.c.b16 %v4169, %v4161
    %v4994 = vpack.c.b16 %v4170, %v4162
    %v4995 = vpack.c.b16 %v4171, %v4163
    %v4996 = vpack.c.b16 %v4172, %v4164
    %v4997 = vpack.c.b16 %v4181, %v4173
    %v4998 = vpack.c.b16 %v4182, %v4174
    %v4999 = vpack.c.b16 %v4183, %v4175
    %v5000 = vpack.c.b16 %v4184, %v4176
    %v5001 = vpack.c.b16 %v4185, %v4177
    %v5002 = vpack.c.b16 %v4186, %v4178
    %v5003 = vpack.c.b16 %v4187, %v4179
    %v5004 = vpack.c.b16 %v4188, %v4180
    %v5005 = vpack.c.b16 %v4197, %v4189
    %v5006 = vpack.c.b16 %v4198, %v4190
    %v5007 = vpack.c.b16 %v4199, %v4191
    %v5008 = vpack.c.b16 %v4200, %v4192
    %v5009 = vpack.c.b16 %v4201, %v4193
    %v5010 = vpack.c.b16 %v4202, %v4194
    %v5011 = vpack.c.b16 %v4203, %v4195
    %v5012 = vpack.c.b16 %v4204, %v4196
    %v5013 = vpack.c.b16 %v4213, %v4205
    %v5014 = vpack.c.b16 %v4214, %v4206
    %v5015 = vpack.c.b16 %v4215, %v4207
    %v5016 = vpack.c.b16 %v4216, %v4208
    %v5017 = vpack.c.b16 %v4217, %v4209
    %v5018 = vpack.c.b16 %v4218, %v4210
    %v5019 = vpack.c.b16 %v4219, %v4211
    %v5020 = vpack.c.b16 %v4220, %v4212
    %v5021 = vpack.c.b16 %v4229, %v4221
    %v5022 = vpack.c.b16 %v4230, %v4222
    %v5023 = vpack.c.b16 %v4231, %v4223
    %v5024 = vpack.c.b16 %v4232, %v4224
    %v5025 = vpack.c.b16 %v4233, %v4225
    %v5026 = vpack.c.b16 %v4234, %v4226
    %v5027 = vpack.c.b16 %v4235, %v4227
    %v5028 = vpack.c.b16 %v4236, %v4228
    %v5029 = vpack.c.b16 %v4245, %v4237
    %v5030 = vpack.c.b16 %v4246, %v4238
    %v5031 = vpack.c.b16 %v4247, %v4239
    %v5032 = vpack.c.b16 %v4248, %v4240
    %v5033 = vpack.c.b16 %v4249, %v4241
    %v5034 = vpack.c.b16 %v4250, %v4242
    %v5035 = vpack.c.b16 %v4251, %v4243
    %v5036 = vpack.c.b16 %v4252, %v4244
    %v5037 = vpack.c.b16 %v4261, %v4253
    %v5038 = vpack.c.b16 %v4262, %v4254
    %v5039 = vpack.c.b16 %v4263, %v4255
    %v5040 = vpack.c.b16 %v4264, %v4256
    %v5041 = vpack.c.b16 %v4265, %v4257
    %v5042 = vpack.c.b16 %v4266, %v4258
    %v5043 = vpack.c.b16 %v4267, %v4259
    %v5044 = vpack.c.b16 %v4268, %v4260
    %v5045 = vpack.c.b16 %v4277, %v4269
    %v5046 = vpack.c.b16 %v4278, %v4270
    %v5047 = vpack.c.b16 %v4279, %v4271
    %v5048 = vpack.c.b16 %v4280, %v4272
    %v5049 = vpack.c.b16 %v4281, %v4273
    %v5050 = vpack.c.b16 %v4282, %v4274
    %v5051 = vpack.c.b16 %v4283, %v4275
    %v5052 = vpack.c.b16 %v4284, %v4276
    %v5053 = vpack.c.b16 %v4293, %v4285
    %v5054 = vpack.c.b16 %v4294, %v4286
    %v5055 = vpack.c.b16 %v4295, %v4287
    %v5056 = vpack.c.b16 %v4296, %v4288
    %v5057 = vpack.c.b16 %v4297, %v4289
    %v5058 = vpack.c.b16 %v4298, %v4290
    %v5059 = vpack.c.b16 %v4299, %v4291
    %v5060 = vpack.c.b16 %v4300, %v4292
    %v5061 = vpack.c.b16 %v4309, %v4301
    %v5062 = vpack.c.b16 %v4310, %v4302
    %v5063 = vpack.c.b16 %v4311, %v4303
    %v5064 = vpack.c.b16 %v4312, %v4304
    %v5065 = vpack.c.b16 %v4313, %v4305
    %v5066 = vpack.c.b16 %v4314, %v4306
    %v5067 = vpack.c.b16 %v4315, %v4307
    %v5068 = vpack.c.b16 %v4316, %v4308
    %v5069 = vpack.c.b16 %v4325, %v4317
    %v5070 = vpack.c.b16 %v4326, %v4318
    %v5071 = vpack.c.b16 %v4327, %v4319
    %v5072 = vpack.c.b16 %v4328, %v4320
    %v5073 = vpack.c.b16 %v4329, %v4321
    %v5074 = vpack.c.b16 %v4330, %v4322
    %v5075 = vpack.c.b16 %v4331, %v4323
    %v5076 = vpack.c.b16 %v4332, %v4324
    %v5077 = vpack.c.b16 %v4341, %v4333
    %v5078 = vpack.c.b16 %v4342, %v4334
    %v5079 = vpack.c.b16 %v4343, %v4335
    %v5080 = vpack.c.b16 %v4344, %v4336
    %v5081 = vpack.c.b16 %v4345, %v4337
    %v5082 = vpack.c.b16 %v4346, %v4338
    %v5083 = vpack.c.b16 %v4347, %v4339
    %v5084 = vpack.c.b16 %v4348, %v4340
    %v5085 = vpack.c.b16 %v4357, %v4349
    %v5086 = vpack.c.b16 %v4358, %v4350
    %v5087 = vpack.c.b16 %v4359, %v4351
    %v5088 = vpack.c.b16 %v4360, %v4352
    %v5089 = vpack.c.b16 %v4361, %v4353
    %v5090 = vpack.c.b16 %v4362, %v4354
    %v5091 = vpack.c.b16 %v4363, %v4355
    %v5092 = vpack.c.b16 %v4364, %v4356
    %v5093 = vpack.c.b16 %v4373, %v4365
    %v5094 = vpack.c.b16 %v4374, %v4366
    %v5095 = vpack.c.b16 %v4375, %v4367
    %v5096 = vpack.c.b16 %v4376, %v4368
    %v5097 = vpack.c.b16 %v4377, %v4369
    %v5098 = vpack.c.b16 %v4378, %v4370
    %v5099 = vpack.c.b16 %v4379, %v4371
    %v5100 = vpack.c.b16 %v4380, %v4372
    %v5101 = vpack.c.b16 %v4389, %v4381
    %v5102 = vpack.c.b16 %v4390, %v4382
    %v5103 = vpack.c.b16 %v4391, %v4383
    %v5104 = vpack.c.b16 %v4392, %v4384
    %v5105 = vpack.c.b16 %v4393, %v4385
    %v5106 = vpack.c.b16 %v4394, %v4386
    %v5107 = vpack.c.b16 %v4395, %v4387
    %v5108 = vpack.c.b16 %v4396, %v4388
    %v5109 = vpack.c.b16 %v4405, %v4397
    %v5110 = vpack.c.b16 %v4406, %v4398
    %v5111 = vpack.c.b16 %v4407, %v4399
    %v5112 = vpack.c.b16 %v4408, %v4400
    %v5113 = vpack.c.b16 %v4409, %v4401
    %v5114 = vpack.c.b16 %v4410, %v4402
    %v5115 = vpack.c.b16 %v4411, %v4403
    %v5116 = vpack.c.b16 %v4412, %v4404
    %v5117 = vpack.c.b16 %v4421, %v4413
    %v5118 = vpack.c.b16 %v4422, %v4414
    %v5119 = vpack.c.b16 %v4423, %v4415
    %v5120 = vpack.c.b16 %v4424, %v4416
    %v5121 = vpack.c.b16 %v4425, %v4417
    %v5122 = vpack.c.b16 %v4426, %v4418
    %v5123 = vpack.c.b16 %v4427, %v4419
    %v5124 = vpack.c.b16 %v4428, %v4420
    %v5125 = vpack.c.b16 %v4437, %v4429
    %v5126 = vpack.c.b16 %v4438, %v4430
    %v5127 = vpack.c.b16 %v4439, %v4431
    %v5128 = vpack.c.b16 %v4440, %v4432
    %v5129 = vpack.c.b16 %v4441, %v4433
    %v5130 = vpack.c.b16 %v4442, %v4434
    %v5131 = vpack.c.b16 %v4443, %v4435
    %v5132 = vpack.c.b16 %v4444, %v4436
    %v5133 = vpack.c.b16 %v4453, %v4445
    %v5134 = vpack.c.b16 %v4454, %v4446
    %v5135 = vpack.c.b16 %v4455, %v4447
    %v5136 = vpack.c.b16 %v4456, %v4448
    %v5137 = vpack.c.b16 %v4457, %v4449
    %v5138 = vpack.c.b16 %v4458, %v4450
    %v5139 = vpack.c.b16 %v4459, %v4451
    %v5140 = vpack.c.b16 %v4460, %v4452
    %v5141 = vpack.c.b16 %v4469, %v4461
    %v5142 = vpack.c.b16 %v4470, %v4462
    %v5143 = vpack.c.b16 %v4471, %v4463
    %v5144 = vpack.c.b16 %v4472, %v4464
    %v5145 = vpack.c.b16 %v4473, %v4465
    %v5146 = vpack.c.b16 %v4474, %v4466
    %v5147 = vpack.c.b16 %v4475, %v4467
    %v5148 = vpack.c.b16 %v4476, %v4468
    %v5149 = vpack.c.b16 %v4485, %v4477
    %v5150 = vpack.c.b16 %v4486, %v4478
    %v5151 = vpack.c.b16 %v4487, %v4479
    %v5152 = vpack.c.b16 %v4488, %v4480
    %v5153 = vpack.c.b16 %v4489, %v4481
    %v5154 = vpack.c.b16 %v4490, %v4482
    %v5155 = vpack.c.b16 %v4491, %v4483
    %v5156 = vpack.c.b16 %v4492, %v4484
    %v5157 = vpack.c.b16 %v4501, %v4493
    %v5158 = vpack.c.b16 %v4502, %v4494
    %v5159 = vpack.c.b16 %v4503, %v4495
    %v5160 = vpack.c.b16 %v4504, %v4496
    %v5161 = vpack.c.b16 %v4505, %v4497
    %v5162 = vpack.c.b16 %v4506, %v4498
    %v5163 = vpack.c.b16 %v4507, %v4499
    %v5164 = vpack.c.b16 %v4508, %v4500
    %v5165 = vpack.c.b16 %v4517, %v4509
    %v5166 = vpack.c.b16 %v4518, %v4510
    %v5167 = vpack.c.b16 %v4519, %v4511
    %v5168 = vpack.c.b16 %v4520, %v4512
    %v5169 = vpack.c.b16 %v4521, %v4513
    %v5170 = vpack.c.b16 %v4522, %v4514
    %v5171 = vpack.c.b16 %v4523, %v4515
    %v5172 = vpack.c.b16 %v4524, %v4516
    %v5173 = vpack.c.b16 %v4533, %v4525
    %v5174 = vpack.c.b16 %v4534, %v4526
    %v5175 = vpack.c.b16 %v4535, %v4527
    %v5176 = vpack.c.b16 %v4536, %v4528
    %v5177 = vpack.c.b16 %v4537, %v4529
    %v5178 = vpack.c.b16 %v4538, %v4530
    %v5179 = vpack.c.b16 %v4539, %v4531
    %v5180 = vpack.c.b16 %v4540, %v4532
    %v5181 = vpack.c.b16 %v4549, %v4541
    %v5182 = vpack.c.b16 %v4550, %v4542
    %v5183 = vpack.c.b16 %v4551, %v4543
    %v5184 = vpack.c.b16 %v4552, %v4544
    %v5185 = vpack.c.b16 %v4553, %v4545
    %v5186 = vpack.c.b16 %v4554, %v4546
    %v5187 = vpack.c.b16 %v4555, %v4547
    %v5188 = vpack.c.b16 %v4556, %v4548
    %v5189 = vpack.c.b16 %v4565, %v4557
    %v5190 = vpack.c.b16 %v4566, %v4558
    %v5191 = vpack.c.b16 %v4567, %v4559
    %v5192 = vpack.c.b16 %v4568, %v4560
    %v5193 = vpack.c.b16 %v4569, %v4561
    %v5194 = vpack.c.b16 %v4570, %v4562
    %v5195 = vpack.c.b16 %v4571, %v4563
    %v5196 = vpack.c.b16 %v4572, %v4564
    %v5197 = vpack.c.b16 %v4581, %v4573
    %v5198 = vpack.c.b16 %v4582, %v4574
    %v5199 = vpack.c.b16 %v4583, %v4575
    %v5200 = vpack.c.b16 %v4584, %v4576
    %v5201 = vpack.c.b16 %v4585, %v4577
    %v5202 = vpack.c.b16 %v4586, %v4578
    %v5203 = vpack.c.b16 %v4587, %v4579
    %v5204 = vpack.c.b16 %v4588, %v4580
    %v5205 = vpack.c.b16 %v4597, %v4589
    %v5206 = vpack.c.b16 %v4598, %v4590
    %v5207 = vpack.c.b16 %v4599, %v4591
    %v5208 = vpack.c.b16 %v4600, %v4592
    %v5209 = vpack.c.b16 %v4601, %v4593
    %v5210 = vpack.c.b16 %v4602, %v4594
    %v5211 = vpack.c.b16 %v4603, %v4595
    %v5212 = vpack.c.b16 %v4604, %v4596
    %v5213 = vpack.c.b16 %v4613, %v4605
    %v5214 = vpack.c.b16 %v4614, %v4606
    %v5215 = vpack.c.b16 %v4615, %v4607
    %v5216 = vpack.c.b16 %v4616, %v4608
    %v5217 = vpack.c.b16 %v4617, %v4609
    %v5218 = vpack.c.b16 %v4618, %v4610
    %v5219 = vpack.c.b16 %v4619, %v4611
    %v5220 = vpack.c.b16 %v4620, %v4612
    %v5221 = vpack.c.b16 %v4629, %v4621
    %v5222 = vpack.c.b16 %v4630, %v4622
    %v5223 = vpack.c.b16 %v4631, %v4623
    %v5224 = vpack.c.b16 %v4632, %v4624
    %v5225 = vpack.c.b16 %v4633, %v4625
    %v5226 = vpack.c.b16 %v4634, %v4626
    %v5227 = vpack.c.b16 %v4635, %v4627
    %v5228 = vpack.c.b16 %v4636, %v4628
    %v5229 = vpack.c.b16 %v4645, %v4637
    %v5230 = vpack.c.b16 %v4646, %v4638
    %v5231 = vpack.c.b16 %v4647, %v4639
    %v5232 = vpack.c.b16 %v4648, %v4640
    %v5233 = vpack.c.b16 %v4649, %v4641
    %v5234 = vpack.c.b16 %v4650, %v4642
    %v5235 = vpack.c.b16 %v4651, %v4643
    %v5236 = vpack.c.b16 %v4652, %v4644
    %v5237 = vpack.c.b16 %v4661, %v4653
    %v5238 = vpack.c.b16 %v4662, %v4654
    %v5239 = vpack.c.b16 %v4663, %v4655
    %v5240 = vpack.c.b16 %v4664, %v4656
    %v5241 = vpack.c.b16 %v4665, %v4657
    %v5242 = vpack.c.b16 %v4666, %v4658
    %v5243 = vpack.c.b16 %v4667, %v4659
    %v5244 = vpack.c.b16 %v4668, %v4660
    %v5245 = vpack.c.b16 %v4677, %v4669
    %v5246 = vpack.c.b16 %v4678, %v4670
    %v5247 = vpack.c.b16 %v4679, %v4671
    %v5248 = vpack.c.b16 %v4680, %v4672
    %v5249 = vpack.c.b16 %v4681, %v4673
    %v5250 = vpack.c.b16 %v4682, %v4674
    %v5251 = vpack.c.b16 %v4683, %v4675
    %v5252 = vpack.c.b16 %v4684, %v4676
    %v5253 = vpack.c.b16 %v4693, %v4685
    %v5254 = vpack.c.b16 %v4694, %v4686
    %v5255 = vpack.c.b16 %v4695, %v4687
    %v5256 = vpack.c.b16 %v4696, %v4688
    %v5257 = vpack.c.b16 %v4697, %v4689
    %v5258 = vpack.c.b16 %v4698, %v4690
    %v5259 = vpack.c.b16 %v4699, %v4691
    %v5260 = vpack.c.b16 %v4700, %v4692
    %v5261 = vpack.c.b16 %v4709, %v4701
    %v5262 = vpack.c.b16 %v4710, %v4702
    %v5263 = vpack.c.b16 %v4711, %v4703
    %v5264 = vpack.c.b16 %v4712, %v4704
    %v5265 = vpack.c.b16 %v4713, %v4705
    %v5266 = vpack.c.b16 %v4714, %v4706
    %v5267 = vpack.c.b16 %v4715, %v4707
    %v5268 = vpack.c.b16 %v4716, %v4708
    %v5269 = vpack.c.b16 %v4725, %v4717
    %v5270 = vpack.c.b16 %v4726, %v4718
    %v5271 = vpack.c.b16 %v4727, %v4719
    %v5272 = vpack.c.b16 %v4728, %v4720
    %v5273 = vpack.c.b16 %v4729, %v4721
    %v5274 = vpack.c.b16 %v4730, %v4722
    %v5275 = vpack.c.b16 %v4731, %v4723
    %v5276 = vpack.c.b16 %v4732, %v4724
    %v5277 = vpack.c.b16 %v4741, %v4733
    %v5278 = vpack.c.b16 %v4742, %v4734
    %v5279 = vpack.c.b16 %v4743, %v4735
    %v5280 = vpack.c.b16 %v4744, %v4736
    %v5281 = vpack.c.b16 %v4745, %v4737
    %v5282 = vpack.c.b16 %v4746, %v4738
    %v5283 = vpack.c.b16 %v4747, %v4739
    %v5284 = vpack.c.b16 %v4748, %v4740
    %v5285 = vpack.c.b16 %v4757, %v4749
    %v5286 = vpack.c.b16 %v4758, %v4750
    %v5287 = vpack.c.b16 %v4759, %v4751
    %v5288 = vpack.c.b16 %v4760, %v4752
    %v5289 = vpack.c.b16 %v4761, %v4753
    %v5290 = vpack.c.b16 %v4762, %v4754
    %v5291 = vpack.c.b16 %v4763, %v4755
    %v5292 = vpack.c.b16 %v4764, %v4756
    %v5293 = vpack.c.b16 %v4773, %v4765
    %v5294 = vpack.c.b16 %v4774, %v4766
    %v5295 = vpack.c.b16 %v4775, %v4767
    %v5296 = vpack.c.b16 %v4776, %v4768
    %v5297 = vpack.c.b16 %v4777, %v4769
    %v5298 = vpack.c.b16 %v4778, %v4770
    %v5299 = vpack.c.b16 %v4779, %v4771
    %v5300 = vpack.c.b16 %v4780, %v4772
    %v5301 = vpack.c.b16 %v4789, %v4781
    %v5302 = vpack.c.b16 %v4790, %v4782
    %v5303 = vpack.c.b16 %v4791, %v4783
    %v5304 = vpack.c.b16 %v4792, %v4784
    %v5305 = vpack.c.b16 %v4793, %v4785
    %v5306 = vpack.c.b16 %v4794, %v4786
    %v5307 = vpack.c.b16 %v4795, %v4787
    %v5308 = vpack.c.b16 %v4796, %v4788
    %5821 = vmatprep.subr.bf16.mxu0 %v4798
    %5822 = vmatpush1.bf16.msra.mxu0 %v4797
    %5823 = vmatprep.subr.bf16.mxu0 %v4806
    %5824 = vmatpush1.bf16.msra.mxu0 %v4805
    %5825 = vmatprep.subr.bf16.mxu0 %v4814
    %5826 = vmatpush1.bf16.msra.mxu0 %v4813
    %5827 = vmatprep.subr.bf16.mxu0 %v4822
    %5828 = vmatpush1.bf16.msra.mxu0 %v4821
    %5829 = vmatprep.subr.bf16.mxu0 %v4830
    %5830 = vmatpush1.bf16.msra.mxu0 %v4829
    %5831 = vmatprep.subr.bf16.mxu0 %v4838
    %5832 = vmatpush1.bf16.msra.mxu0 %v4837
    %5833 = vmatprep.subr.bf16.mxu0 %v4846
    %5834 = vmatpush1.bf16.msra.mxu0 %v4845
    %5835 = vmatprep.subr.bf16.mxu0 %v4854
    %5836 = vmatpush1.bf16.msra.mxu0 %v4853
    %5837 = vmatprep.subr.bf16.mxu0 %v4862
    %5838 = vmatpush1.bf16.msra.mxu0 %v4861
    %5839 = vmatprep.subr.bf16.mxu0 %v4870
    %5840 = vmatpush1.bf16.msra.mxu0 %v4869
    %5841 = vmatprep.subr.bf16.mxu0 %v4878
    %5842 = vmatpush1.bf16.msra.mxu0 %v4877
    %5843 = vmatprep.subr.bf16.mxu0 %v4886
    %5844 = vmatpush1.bf16.msra.mxu0 %v4885
    %5845 = vmatprep.subr.bf16.mxu0 %v4894
    %5846 = vmatpush1.bf16.msra.mxu0 %v4893
    %5847 = vmatprep.subr.bf16.mxu0 %v4902
    %5848 = vmatpush1.bf16.msra.mxu0 %v4901
    %5849 = vmatprep.subr.bf16.mxu0 %v4910
    %5850 = vmatpush1.bf16.msra.mxu0 %v4909
    %5851 = vmatprep.subr.bf16.mxu0 %v4918
    %5852 = vmatpush1.bf16.msra.mxu0 %v4917
    %5853 = vmatprep.mubr.bf16.mxu0 %v2700
    %5854 = vmatmul.mubr.bf16.gmra.mrb[0].mxu0 %v2699
    %v5855 = vpop.f32.mrb[0].mxu0
    %v5856 = vadd.f32 %v3224, %v5855
    %v5857 = vpop.f32.mrb[0].mxu0
    %v5858 = vadd.f32 %v3228, %v5857
    %v5859 = vpop.f32.mrb[0].mxu0
    %v5860 = vpop.f32.mrb[0].mxu0
    %5861 = vdwg.mxu0
    %5862 = vmatprep.subr.bf16.mxu0 %v4926
    %5863 = vmatpush1.bf16.msra.mxu0 %v4925
    %5864 = vmatprep.subr.bf16.mxu0 %v4934
    %5865 = vmatpush1.bf16.msra.mxu0 %v4933
    %5866 = vmatprep.subr.bf16.mxu0 %v4942
    %5867 = vmatpush1.bf16.msra.mxu0 %v4941
    %5868 = vmatprep.subr.bf16.mxu0 %v4950
    %5869 = vmatpush1.bf16.msra.mxu0 %v4949
    %5870 = vmatprep.subr.bf16.mxu0 %v4958
    %5871 = vmatpush1.bf16.msra.mxu0 %v4957
    %5872 = vmatprep.subr.bf16.mxu0 %v4966
    %5873 = vmatpush1.bf16.msra.mxu0 %v4965
    %5874 = vmatprep.subr.bf16.mxu0 %v4974
    %5875 = vmatpush1.bf16.msra.mxu0 %v4973
    %5876 = vmatprep.subr.bf16.mxu0 %v4982
    %5877 = vmatpush1.bf16.msra.mxu0 %v4981
    %5878 = vmatprep.subr.bf16.mxu0 %v4990
    %5879 = vmatpush1.bf16.msra.mxu0 %v4989
    %5880 = vmatprep.subr.bf16.mxu0 %v4998
    %5881 = vmatpush1.bf16.msra.mxu0 %v4997
    %5882 = vmatprep.subr.bf16.mxu0 %v5006
    %5883 = vmatpush1.bf16.msra.mxu0 %v5005
    %5884 = vmatprep.subr.bf16.mxu0 %v5014
    %5885 = vmatpush1.bf16.msra.mxu0 %v5013
    %5886 = vmatprep.subr.bf16.mxu0 %v5022
    %5887 = vmatpush1.bf16.msra.mxu0 %v5021
    %5888 = vmatprep.subr.bf16.mxu0 %v5030
    %5889 = vmatpush1.bf16.msra.mxu0 %v5029
    %5890 = vmatprep.subr.bf16.mxu0 %v5038
    %5891 = vmatpush1.bf16.msra.mxu0 %v5037
    %5892 = vmatprep.subr.bf16.mxu0 %v5046
    %5893 = vmatpush1.bf16.msra.mxu0 %v5045
    %5894 = vmatprep.mubr.bf16.mxu0 %v2702
    %5895 = vmatmul.mubr.bf16.gmra.mrb[0].mxu0 %v2701
    %v5896 = vpop.f32.mrb[0].mxu0
    %v5897 = vadd.f32 %v5856, %v5896
    %v5898 = vpop.f32.mrb[0].mxu0
    %v5899 = vadd.f32 %v5858, %v5898
    %v5900 = vpop.f32.mrb[0].mxu0
    %v5901 = vpop.f32.mrb[0].mxu0
    %5902 = vdwg.mxu0
    %5903 = vmatprep.subr.bf16.mxu0 %v5054
    %5904 = vmatpush1.bf16.msra.mxu0 %v5053
    %5905 = vmatprep.subr.bf16.mxu0 %v5062
    %5906 = vmatpush1.bf16.msra.mxu0 %v5061
    %5907 = vmatprep.subr.bf16.mxu0 %v5070
    %5908 = vmatpush1.bf16.msra.mxu0 %v5069
    %5909 = vmatprep.subr.bf16.mxu0 %v5078
    %5910 = vmatpush1.bf16.msra.mxu0 %v5077
    %5911 = vmatprep.subr.bf16.mxu0 %v5086
    %5912 = vmatpush1.bf16.msra.mxu0 %v5085
    %5913 = vmatprep.subr.bf16.mxu0 %v5094
    %5914 = vmatpush1.bf16.msra.mxu0 %v5093
    %5915 = vmatprep.subr.bf16.mxu0 %v5102
    %5916 = vmatpush1.bf16.msra.mxu0 %v5101
    %5917 = vmatprep.subr.bf16.mxu0 %v5110
    %5918 = vmatpush1.bf16.msra.mxu0 %v5109
    %5919 = vmatprep.subr.bf16.mxu0 %v5118
    %5920 = vmatpush1.bf16.msra.mxu0 %v5117
    %5921 = vmatprep.subr.bf16.mxu0 %v5126
    %5922 = vmatpush1.bf16.msra.mxu0 %v5125
    %5923 = vmatprep.subr.bf16.mxu0 %v5134
    %5924 = vmatpush1.bf16.msra.mxu0 %v5133
    %5925 = vmatprep.subr.bf16.mxu0 %v5142
    %5926 = vmatpush1.bf16.msra.mxu0 %v5141
    %5927 = vmatprep.subr.bf16.mxu0 %v5150
    %5928 = vmatpush1.bf16.msra.mxu0 %v5149
    %5929 = vmatprep.subr.bf16.mxu0 %v5158
    %5930 = vmatpush1.bf16.msra.mxu0 %v5157
    %5931 = vmatprep.subr.bf16.mxu0 %v5166
    %5932 = vmatpush1.bf16.msra.mxu0 %v5165
    %5933 = vmatprep.subr.bf16.mxu0 %v5174
    %5934 = vmatpush1.bf16.msra.mxu0 %v5173
    %5935 = vmatprep.mubr.bf16.mxu0 %v2704
    %5936 = vmatmul.mubr.bf16.gmra.mrb[0].mxu0 %v2703
    %v5937 = vpop.f32.mrb[0].mxu0
    %v5938 = vadd.f32 %v5897, %v5937
    %v5939 = vpop.f32.mrb[0].mxu0
    %v5940 = vadd.f32 %v5899, %v5939
    %v5941 = vpop.f32.mrb[0].mxu0
    %v5942 = vpop.f32.mrb[0].mxu0
    %5943 = vdwg.mxu0
    %5944 = vmatprep.subr.bf16.mxu0 %v5182
    %5945 = vmatpush1.bf16.msra.mxu0 %v5181
    %5946 = vmatprep.subr.bf16.mxu0 %v5190
    %5947 = vmatpush1.bf16.msra.mxu0 %v5189
    %5948 = vmatprep.subr.bf16.mxu0 %v5198
    %5949 = vmatpush1.bf16.msra.mxu0 %v5197
    %5950 = vmatprep.subr.bf16.mxu0 %v5206
    %5951 = vmatpush1.bf16.msra.mxu0 %v5205
    %5952 = vmatprep.subr.bf16.mxu0 %v5214
    %5953 = vmatpush1.bf16.msra.mxu0 %v5213
    %5954 = vmatprep.subr.bf16.mxu0 %v5222
    %5955 = vmatpush1.bf16.msra.mxu0 %v5221
    %5956 = vmatprep.subr.bf16.mxu0 %v5230
    %5957 = vmatpush1.bf16.msra.mxu0 %v5229
    %5958 = vmatprep.subr.bf16.mxu0 %v5238
    %5959 = vmatpush1.bf16.msra.mxu0 %v5237
    %5960 = vmatprep.subr.bf16.mxu0 %v5246
    %5961 = vmatpush1.bf16.msra.mxu0 %v5245
    %5962 = vmatprep.subr.bf16.mxu0 %v5254
    %5963 = vmatpush1.bf16.msra.mxu0 %v5253
    %5964 = vmatprep.subr.bf16.mxu0 %v5262
    %5965 = vmatpush1.bf16.msra.mxu0 %v5261
    %5966 = vmatprep.subr.bf16.mxu0 %v5270
    %5967 = vmatpush1.bf16.msra.mxu0 %v5269
    %5968 = vmatprep.subr.bf16.mxu0 %v5278
    %5969 = vmatpush1.bf16.msra.mxu0 %v5277
    %5970 = vmatprep.subr.bf16.mxu0 %v5286
    %5971 = vmatpush1.bf16.msra.mxu0 %v5285
    %5972 = vmatprep.subr.bf16.mxu0 %v5294
    %5973 = vmatpush1.bf16.msra.mxu0 %v5293
    %5974 = vmatprep.subr.bf16.mxu0 %v5302
    %5975 = vmatpush1.bf16.msra.mxu0 %v5301
    %5976 = vmatprep.mubr.bf16.mxu0 %v2706
    %5977 = vmatmul.mubr.bf16.gmra.mrb[0].mxu0 %v2705
    %v5978 = vpop.f32.mrb[0].mxu0
    %v5979 = vadd.f32 %v5938, %v5978
    %v5980 = vpop.f32.mrb[0].mxu0
    %v5981 = vadd.f32 %v5940, %v5980
    %v5982 = vpop.f32.mrb[0].mxu0
    %v5983 = vpop.f32.mrb[0].mxu0
    %5984 = vdwg.mxu0
    %5985 = vmatprep.subr.bf16.mxu0 %v4800
    %5986 = vmatpush1.bf16.msra.mxu0 %v4799
    %5987 = vmatprep.subr.bf16.mxu0 %v4808
    %5988 = vmatpush1.bf16.msra.mxu0 %v4807
    %5989 = vmatprep.subr.bf16.mxu0 %v4816
    %5990 = vmatpush1.bf16.msra.mxu0 %v4815
    %5991 = vmatprep.subr.bf16.mxu0 %v4824
    %5992 = vmatpush1.bf16.msra.mxu0 %v4823
    %5993 = vmatprep.subr.bf16.mxu0 %v4832
    %5994 = vmatpush1.bf16.msra.mxu0 %v4831
    %5995 = vmatprep.subr.bf16.mxu0 %v4840
    %5996 = vmatpush1.bf16.msra.mxu0 %v4839
    %5997 = vmatprep.subr.bf16.mxu0 %v4848
    %5998 = vmatpush1.bf16.msra.mxu0 %v4847
    %5999 = vmatprep.subr.bf16.mxu0 %v4856
    %6000 = vmatpush1.bf16.msra.mxu0 %v4855
    %6001 = vmatprep.subr.bf16.mxu0 %v4864
    %6002 = vmatpush1.bf16.msra.mxu0 %v4863
    %6003 = vmatprep.subr.bf16.mxu0 %v4872
    %6004 = vmatpush1.bf16.msra.mxu0 %v4871
    %6005 = vmatprep.subr.bf16.mxu0 %v4880
    %6006 = vmatpush1.bf16.msra.mxu0 %v4879
    %6007 = vmatprep.subr.bf16.mxu0 %v4888
    %6008 = vmatpush1.bf16.msra.mxu0 %v4887
    %6009 = vmatprep.subr.bf16.mxu0 %v4896
    %6010 = vmatpush1.bf16.msra.mxu0 %v4895
    %6011 = vmatprep.subr.bf16.mxu0 %v4904
    %6012 = vmatpush1.bf16.msra.mxu0 %v4903
    %6013 = vmatprep.subr.bf16.mxu0 %v4912
    %6014 = vmatpush1.bf16.msra.mxu0 %v4911
    %6015 = vmatprep.subr.bf16.mxu0 %v4920
    %6016 = vmatpush1.bf16.msra.mxu0 %v4919
    %6017 = vmatprep.mubr.bf16.mxu0 %v2700
    %6018 = vmatmul.mubr.bf16.gmra.mrb[0].mxu0 %v2699
    %v6019 = vpop.f32.mrb[0].mxu0
    %v6020 = vadd.f32 %v3232, %v6019
    %v6021 = vpop.f32.mrb[0].mxu0
    %v6022 = vadd.f32 %v3236, %v6021
    %v6023 = vpop.f32.mrb[0].mxu0
    %v6024 = vpop.f32.mrb[0].mxu0
    %6025 = vdwg.mxu0
    %6026 = vmatprep.subr.bf16.mxu0 %v4928
    %6027 = vmatpush1.bf16.msra.mxu0 %v4927
    %6028 = vmatprep.subr.bf16.mxu0 %v4936
    %6029 = vmatpush1.bf16.msra.mxu0 %v4935
    %6030 = vmatprep.subr.bf16.mxu0 %v4944
    %6031 = vmatpush1.bf16.msra.mxu0 %v4943
    %6032 = vmatprep.subr.bf16.mxu0 %v4952
    %6033 = vmatpush1.bf16.msra.mxu0 %v4951
    %6034 = vmatprep.subr.bf16.mxu0 %v4960
    %6035 = vmatpush1.bf16.msra.mxu0 %v4959
    %6036 = vmatprep.subr.bf16.mxu0 %v4968
    %6037 = vmatpush1.bf16.msra.mxu0 %v4967
    %6038 = vmatprep.subr.bf16.mxu0 %v4976
    %6039 = vmatpush1.bf16.msra.mxu0 %v4975
    %6040 = vmatprep.subr.bf16.mxu0 %v4984
    %6041 = vmatpush1.bf16.msra.mxu0 %v4983
    %6042 = vmatprep.subr.bf16.mxu0 %v4992
    %6043 = vmatpush1.bf16.msra.mxu0 %v4991
    %6044 = vmatprep.subr.bf16.mxu0 %v5000
    %6045 = vmatpush1.bf16.msra.mxu0 %v4999
    %6046 = vmatprep.subr.bf16.mxu0 %v5008
    %6047 = vmatpush1.bf16.msra.mxu0 %v5007
    %6048 = vmatprep.subr.bf16.mxu0 %v5016
    %6049 = vmatpush1.bf16.msra.mxu0 %v5015
    %6050 = vmatprep.subr.bf16.mxu0 %v5024
    %6051 = vmatpush1.bf16.msra.mxu0 %v5023
    %6052 = vmatprep.subr.bf16.mxu0 %v5032
    %6053 = vmatpush1.bf16.msra.mxu0 %v5031
    %6054 = vmatprep.subr.bf16.mxu0 %v5040
    %6055 = vmatpush1.bf16.msra.mxu0 %v5039
    %6056 = vmatprep.subr.bf16.mxu0 %v5048
    %6057 = vmatpush1.bf16.msra.mxu0 %v5047
    %6058 = vmatprep.mubr.bf16.mxu0 %v2702
    %6059 = vmatmul.mubr.bf16.gmra.mrb[0].mxu0 %v2701
    %v6060 = vpop.f32.mrb[0].mxu0
    %v6061 = vadd.f32 %v6020, %v6060
    %v6062 = vpop.f32.mrb[0].mxu0
    %v6063 = vadd.f32 %v6022, %v6062
    %v6064 = vpop.f32.mrb[0].mxu0
    %v6065 = vpop.f32.mrb[0].mxu0
    %6066 = vdwg.mxu0
    %6067 = vmatprep.subr.bf16.mxu0 %v5056
    %6068 = vmatpush1.bf16.msra.mxu0 %v5055
    %6069 = vmatprep.subr.bf16.mxu0 %v5064
    %6070 = vmatpush1.bf16.msra.mxu0 %v5063
    %6071 = vmatprep.subr.bf16.mxu0 %v5072
    %6072 = vmatpush1.bf16.msra.mxu0 %v5071
    %6073 = vmatprep.subr.bf16.mxu0 %v5080
    %6074 = vmatpush1.bf16.msra.mxu0 %v5079
    %6075 = vmatprep.subr.bf16.mxu0 %v5088
    %6076 = vmatpush1.bf16.msra.mxu0 %v5087
    %6077 = vmatprep.subr.bf16.mxu0 %v5096
    %6078 = vmatpush1.bf16.msra.mxu0 %v5095
    %6079 = vmatprep.subr.bf16.mxu0 %v5104
    %6080 = vmatpush1.bf16.msra.mxu0 %v5103
    %6081 = vmatprep.subr.bf16.mxu0 %v5112
    %6082 = vmatpush1.bf16.msra.mxu0 %v5111
    %6083 = vmatprep.subr.bf16.mxu0 %v5120
    %6084 = vmatpush1.bf16.msra.mxu0 %v5119
    %6085 = vmatprep.subr.bf16.mxu0 %v5128
    %6086 = vmatpush1.bf16.msra.mxu0 %v5127
    %6087 = vmatprep.subr.bf16.mxu0 %v5136
    %6088 = vmatpush1.bf16.msra.mxu0 %v5135
    %6089 = vmatprep.subr.bf16.mxu0 %v5144
    %6090 = vmatpush1.bf16.msra.mxu0 %v5143
    %6091 = vmatprep.subr.bf16.mxu0 %v5152
    %6092 = vmatpush1.bf16.msra.mxu0 %v5151
    %6093 = vmatprep.subr.bf16.mxu0 %v5160
    %6094 = vmatpush1.bf16.msra.mxu0 %v5159
    %6095 = vmatprep.subr.bf16.mxu0 %v5168
    %6096 = vmatpush1.bf16.msra.mxu0 %v5167
    %6097 = vmatprep.subr.bf16.mxu0 %v5176
    %6098 = vmatpush1.bf16.msra.mxu0 %v5175
    %6099 = vmatprep.mubr.bf16.mxu0 %v2704
    %6100 = vmatmul.mubr.bf16.gmra.mrb[0].mxu0 %v2703
    %v6101 = vpop.f32.mrb[0].mxu0
    %v6102 = vadd.f32 %v6061, %v6101
    %v6103 = vpop.f32.mrb[0].mxu0
    %v6104 = vadd.f32 %v6063, %v6103
    %v6105 = vpop.f32.mrb[0].mxu0
    %v6106 = vpop.f32.mrb[0].mxu0
    %6107 = vdwg.mxu0
    %6108 = vmatprep.subr.bf16.mxu0 %v5184
    %6109 = vmatpush1.bf16.msra.mxu0 %v5183
    %6110 = vmatprep.subr.bf16.mxu0 %v5192
    %6111 = vmatpush1.bf16.msra.mxu0 %v5191
    %6112 = vmatprep.subr.bf16.mxu0 %v5200
    %6113 = vmatpush1.bf16.msra.mxu0 %v5199
    %6114 = vmatprep.subr.bf16.mxu0 %v5208
    %6115 = vmatpush1.bf16.msra.mxu0 %v5207
    %6116 = vmatprep.subr.bf16.mxu0 %v5216
    %6117 = vmatpush1.bf16.msra.mxu0 %v5215
    %6118 = vmatprep.subr.bf16.mxu0 %v5224
    %6119 = vmatpush1.bf16.msra.mxu0 %v5223
    %6120 = vmatprep.subr.bf16.mxu0 %v5232
    %6121 = vmatpush1.bf16.msra.mxu0 %v5231
    %6122 = vmatprep.subr.bf16.mxu0 %v5240
    %6123 = vmatpush1.bf16.msra.mxu0 %v5239
    %6124 = vmatprep.subr.bf16.mxu0 %v5248
    %6125 = vmatpush1.bf16.msra.mxu0 %v5247
    %6126 = vmatprep.subr.bf16.mxu0 %v5256
    %6127 = vmatpush1.bf16.msra.mxu0 %v5255
    %6128 = vmatprep.subr.bf16.mxu0 %v5264
    %6129 = vmatpush1.bf16.msra.mxu0 %v5263
    %6130 = vmatprep.subr.bf16.mxu0 %v5272
    %6131 = vmatpush1.bf16.msra.mxu0 %v5271
    %6132 = vmatprep.subr.bf16.mxu0 %v5280
    %6133 = vmatpush1.bf16.msra.mxu0 %v5279
    %6134 = vmatprep.subr.bf16.mxu0 %v5288
    %6135 = vmatpush1.bf16.msra.mxu0 %v5287
    %6136 = vmatprep.subr.bf16.mxu0 %v5296
    %6137 = vmatpush1.bf16.msra.mxu0 %v5295
    %6138 = vmatprep.subr.bf16.mxu0 %v5304
    %6139 = vmatpush1.bf16.msra.mxu0 %v5303
    %6140 = vmatprep.mubr.bf16.mxu0 %v2706
    %6141 = vmatmul.mubr.bf16.gmra.mrb[0].mxu0 %v2705
    %v6142 = vpop.f32.mrb[0].mxu0
    %v6143 = vadd.f32 %v6102, %v6142
    %v6144 = vpop.f32.mrb[0].mxu0
    %v6145 = vadd.f32 %v6104, %v6144
    %v6146 = vpop.f32.mrb[0].mxu0
    %v6147 = vpop.f32.mrb[0].mxu0
    %6148 = vdwg.mxu0
    %6149 = vmatprep.subr.bf16.mxu0 %v4802
    %6150 = vmatpush1.bf16.msra.mxu0 %v4801
    %6151 = vmatprep.subr.bf16.mxu0 %v4810
    %6152 = vmatpush1.bf16.msra.mxu0 %v4809
    %6153 = vmatprep.subr.bf16.mxu0 %v4818
    %6154 = vmatpush1.bf16.msra.mxu0 %v4817
    %6155 = vmatprep.subr.bf16.mxu0 %v4826
    %6156 = vmatpush1.bf16.msra.mxu0 %v4825
    %6157 = vmatprep.subr.bf16.mxu0 %v4834
    %6158 = vmatpush1.bf16.msra.mxu0 %v4833
    %6159 = vmatprep.subr.bf16.mxu0 %v4842
    %6160 = vmatpush1.bf16.msra.mxu0 %v4841
    %6161 = vmatprep.subr.bf16.mxu0 %v4850
    %6162 = vmatpush1.bf16.msra.mxu0 %v4849
    %6163 = vmatprep.subr.bf16.mxu0 %v4858
    %6164 = vmatpush1.bf16.msra.mxu0 %v4857
    %6165 = vmatprep.subr.bf16.mxu0 %v4866
    %6166 = vmatpush1.bf16.msra.mxu0 %v4865
    %6167 = vmatprep.subr.bf16.mxu0 %v4874
    %6168 = vmatpush1.bf16.msra.mxu0 %v4873
    %6169 = vmatprep.subr.bf16.mxu0 %v4882
    %6170 = vmatpush1.bf16.msra.mxu0 %v4881
    %6171 = vmatprep.subr.bf16.mxu0 %v4890
    %6172 = vmatpush1.bf16.msra.mxu0 %v4889
    %6173 = vmatprep.subr.bf16.mxu0 %v4898
    %6174 = vmatpush1.bf16.msra.mxu0 %v4897
    %6175 = vmatprep.subr.bf16.mxu0 %v4906
    %6176 = vmatpush1.bf16.msra.mxu0 %v4905
    %6177 = vmatprep.subr.bf16.mxu0 %v4914
    %6178 = vmatpush1.bf16.msra.mxu0 %v4913
    %6179 = vmatprep.subr.bf16.mxu0 %v4922
    %6180 = vmatpush1.bf16.msra.mxu0 %v4921
    %6181 = vmatprep.mubr.bf16.mxu0 %v2700
    %6182 = vmatmul.mubr.bf16.gmra.mrb[0].mxu0 %v2699
    %v6183 = vpop.f32.mrb[0].mxu0
    %v6184 = vadd.f32 %v3240, %v6183
    %v6185 = vpop.f32.mrb[0].mxu0
    %v6186 = vadd.f32 %v3244, %v6185
    %v6187 = vpop.f32.mrb[0].mxu0
    %v6188 = vpop.f32.mrb[0].mxu0
    %6189 = vdwg.mxu0
    %6190 = vmatprep.subr.bf16.mxu0 %v4930
    %6191 = vmatpush1.bf16.msra.mxu0 %v4929
    %6192 = vmatprep.subr.bf16.mxu0 %v4938
    %6193 = vmatpush1.bf16.msra.mxu0 %v4937
    %6194 = vmatprep.subr.bf16.mxu0 %v4946
    %6195 = vmatpush1.bf16.msra.mxu0 %v4945
    %6196 = vmatprep.subr.bf16.mxu0 %v4954
    %6197 = vmatpush1.bf16.msra.mxu0 %v4953
    %6198 = vmatprep.subr.bf16.mxu0 %v4962
    %6199 = vmatpush1.bf16.msra.mxu0 %v4961
    %6200 = vmatprep.subr.bf16.mxu0 %v4970
    %6201 = vmatpush1.bf16.msra.mxu0 %v4969
    %6202 = vmatprep.subr.bf16.mxu0 %v4978
    %6203 = vmatpush1.bf16.msra.mxu0 %v4977
    %6204 = vmatprep.subr.bf16.mxu0 %v4986
    %6205 = vmatpush1.bf16.msra.mxu0 %v4985
    %6206 = vmatprep.subr.bf16.mxu0 %v4994
    %6207 = vmatpush1.bf16.msra.mxu0 %v4993
    %6208 = vmatprep.subr.bf16.mxu0 %v5002
    %6209 = vmatpush1.bf16.msra.mxu0 %v5001
    %6210 = vmatprep.subr.bf16.mxu0 %v5010
    %6211 = vmatpush1.bf16.msra.mxu0 %v5009
    %6212 = vmatprep.subr.bf16.mxu0 %v5018
    %6213 = vmatpush1.bf16.msra.mxu0 %v5017
    %6214 = vmatprep.subr.bf16.mxu0 %v5026
    %6215 = vmatpush1.bf16.msra.mxu0 %v5025
    %6216 = vmatprep.subr.bf16.mxu0 %v5034
    %6217 = vmatpush1.bf16.msra.mxu0 %v5033
    %6218 = vmatprep.subr.bf16.mxu0 %v5042
    %6219 = vmatpush1.bf16.msra.mxu0 %v5041
    %6220 = vmatprep.subr.bf16.mxu0 %v5050
    %6221 = vmatpush1.bf16.msra.mxu0 %v5049
    %6222 = vmatprep.mubr.bf16.mxu0 %v2702
    %6223 = vmatmul.mubr.bf16.gmra.mrb[0].mxu0 %v2701
    %v6224 = vpop.f32.mrb[0].mxu0
    %v6225 = vadd.f32 %v6184, %v6224
    %v6226 = vpop.f32.mrb[0].mxu0
    %v6227 = vadd.f32 %v6186, %v6226
    %v6228 = vpop.f32.mrb[0].mxu0
    %v6229 = vpop.f32.mrb[0].mxu0
    %6230 = vdwg.mxu0
    %6231 = vmatprep.subr.bf16.mxu0 %v5058
    %6232 = vmatpush1.bf16.msra.mxu0 %v5057
    %6233 = vmatprep.subr.bf16.mxu0 %v5066
    %6234 = vmatpush1.bf16.msra.mxu0 %v5065
    %6235 = vmatprep.subr.bf16.mxu0 %v5074
    %6236 = vmatpush1.bf16.msra.mxu0 %v5073
    %6237 = vmatprep.subr.bf16.mxu0 %v5082
    %6238 = vmatpush1.bf16.msra.mxu0 %v5081
    %6239 = vmatprep.subr.bf16.mxu0 %v5090
    %6240 = vmatpush1.bf16.msra.mxu0 %v5089
    %6241 = vmatprep.subr.bf16.mxu0 %v5098
    %6242 = vmatpush1.bf16.msra.mxu0 %v5097
    %6243 = vmatprep.subr.bf16.mxu0 %v5106
    %6244 = vmatpush1.bf16.msra.mxu0 %v5105
    %6245 = vmatprep.subr.bf16.mxu0 %v5114
    %6246 = vmatpush1.bf16.msra.mxu0 %v5113
    %6247 = vmatprep.subr.bf16.mxu0 %v5122
    %6248 = vmatpush1.bf16.msra.mxu0 %v5121
    %6249 = vmatprep.subr.bf16.mxu0 %v5130
    %6250 = vmatpush1.bf16.msra.mxu0 %v5129
    %6251 = vmatprep.subr.bf16.mxu0 %v5138
    %6252 = vmatpush1.bf16.msra.mxu0 %v5137
    %6253 = vmatprep.subr.bf16.mxu0 %v5146
    %6254 = vmatpush1.bf16.msra.mxu0 %v5145
    %6255 = vmatprep.subr.bf16.mxu0 %v5154
    %6256 = vmatpush1.bf16.msra.mxu0 %v5153
    %6257 = vmatprep.subr.bf16.mxu0 %v5162
    %6258 = vmatpush1.bf16.msra.mxu0 %v5161
    %6259 = vmatprep.subr.bf16.mxu0 %v5170
    %6260 = vmatpush1.bf16.msra.mxu0 %v5169
    %6261 = vmatprep.subr.bf16.mxu0 %v5178
    %6262 = vmatpush1.bf16.msra.mxu0 %v5177
    %6263 = vmatprep.mubr.bf16.mxu0 %v2704
    %6264 = vmatmul.mubr.bf16.gmra.mrb[0].mxu0 %v2703
    %v6265 = vpop.f32.mrb[0].mxu0
    %v6266 = vadd.f32 %v6225, %v6265
    %v6267 = vpop.f32.mrb[0].mxu0
    %v6268 = vadd.f32 %v6227, %v6267
    %v6269 = vpop.f32.mrb[0].mxu0
    %v6270 = vpop.f32.mrb[0].mxu0
    %6271 = vdwg.mxu0
    %6272 = vmatprep.subr.bf16.mxu0 %v5186
    %6273 = vmatpush1.bf16.msra.mxu0 %v5185
    %6274 = vmatprep.subr.bf16.mxu0 %v5194
    %6275 = vmatpush1.bf16.msra.mxu0 %v5193
    %6276 = vmatprep.subr.bf16.mxu0 %v5202
    %6277 = vmatpush1.bf16.msra.mxu0 %v5201
    %6278 = vmatprep.subr.bf16.mxu0 %v5210
    %6279 = vmatpush1.bf16.msra.mxu0 %v5209
    %6280 = vmatprep.subr.bf16.mxu0 %v5218
    %6281 = vmatpush1.bf16.msra.mxu0 %v5217
    %6282 = vmatprep.subr.bf16.mxu0 %v5226
    %6283 = vmatpush1.bf16.msra.mxu0 %v5225
    %6284 = vmatprep.subr.bf16.mxu0 %v5234
    %6285 = vmatpush1.bf16.msra.mxu0 %v5233
    %6286 = vmatprep.subr.bf16.mxu0 %v5242
    %6287 = vmatpush1.bf16.msra.mxu0 %v5241
    %6288 = vmatprep.subr.bf16.mxu0 %v5250
    %6289 = vmatpush1.bf16.msra.mxu0 %v5249
    %6290 = vmatprep.subr.bf16.mxu0 %v5258
    %6291 = vmatpush1.bf16.msra.mxu0 %v5257
    %6292 = vmatprep.subr.bf16.mxu0 %v5266
    %6293 = vmatpush1.bf16.msra.mxu0 %v5265
    %6294 = vmatprep.subr.bf16.mxu0 %v5274
    %6295 = vmatpush1.bf16.msra.mxu0 %v5273
    %6296 = vmatprep.subr.bf16.mxu0 %v5282
    %6297 = vmatpush1.bf16.msra.mxu0 %v5281
    %6298 = vmatprep.subr.bf16.mxu0 %v5290
    %6299 = vmatpush1.bf16.msra.mxu0 %v5289
    %6300 = vmatprep.subr.bf16.mxu0 %v5298
    %6301 = vmatpush1.bf16.msra.mxu0 %v5297
    %6302 = vmatprep.subr.bf16.mxu0 %v5306
    %6303 = vmatpush1.bf16.msra.mxu0 %v5305
    %6304 = vmatprep.mubr.bf16.mxu0 %v2706
    %6305 = vmatmul.mubr.bf16.gmra.mrb[0].mxu0 %v2705
    %v6306 = vpop.f32.mrb[0].mxu0
    %v6307 = vadd.f32 %v6266, %v6306
    %v6308 = vpop.f32.mrb[0].mxu0
    %v6309 = vadd.f32 %v6268, %v6308
    %v6310 = vpop.f32.mrb[0].mxu0
    %v6311 = vpop.f32.mrb[0].mxu0
    %6312 = vdwg.mxu0
    %6313 = vmatprep.subr.bf16.mxu0 %v4804
    %6314 = vmatpush1.bf16.msra.mxu0 %v4803
    %6315 = vmatprep.subr.bf16.mxu0 %v4812
    %6316 = vmatpush1.bf16.msra.mxu0 %v4811
    %6317 = vmatprep.subr.bf16.mxu0 %v4820
    %6318 = vmatpush1.bf16.msra.mxu0 %v4819
    %6319 = vmatprep.subr.bf16.mxu0 %v4828
    %6320 = vmatpush1.bf16.msra.mxu0 %v4827
    %6321 = vmatprep.subr.bf16.mxu0 %v4836
    %6322 = vmatpush1.bf16.msra.mxu0 %v4835
    %6323 = vmatprep.subr.bf16.mxu0 %v4844
    %6324 = vmatpush1.bf16.msra.mxu0 %v4843
    %6325 = vmatprep.subr.bf16.mxu0 %v4852
    %6326 = vmatpush1.bf16.msra.mxu0 %v4851
    %6327 = vmatprep.subr.bf16.mxu0 %v4860
    %6328 = vmatpush1.bf16.msra.mxu0 %v4859
    %6329 = vmatprep.subr.bf16.mxu0 %v4868
    %6330 = vmatpush1.bf16.msra.mxu0 %v4867
    %6331 = vmatprep.subr.bf16.mxu0 %v4876
    %6332 = vmatpush1.bf16.msra.mxu0 %v4875
    %6333 = vmatprep.subr.bf16.mxu0 %v4884
    %6334 = vmatpush1.bf16.msra.mxu0 %v4883
    %6335 = vmatprep.subr.bf16.mxu0 %v4892
    %6336 = vmatpush1.bf16.msra.mxu0 %v4891
    %6337 = vmatprep.subr.bf16.mxu0 %v4900
    %6338 = vmatpush1.bf16.msra.mxu0 %v4899
    %6339 = vmatprep.subr.bf16.mxu0 %v4908
    %6340 = vmatpush1.bf16.msra.mxu0 %v4907
    %6341 = vmatprep.subr.bf16.mxu0 %v4916
    %6342 = vmatpush1.bf16.msra.mxu0 %v4915
    %6343 = vmatprep.subr.bf16.mxu0 %v4924
    %6344 = vmatpush1.bf16.msra.mxu0 %v4923
    %6345 = vmatprep.mubr.bf16.mxu0 %v2700
    %6346 = vmatmul.mubr.bf16.gmra.mrb[0].mxu0 %v2699
    %v6347 = vpop.f32.mrb[0].mxu0
    %v6348 = vadd.f32 %v3248, %v6347
    %v6349 = vpop.f32.mrb[0].mxu0
    %v6350 = vadd.f32 %v3252, %v6349
    %v6351 = vpop.f32.mrb[0].mxu0
    %v6352 = vpop.f32.mrb[0].mxu0
    %6353 = vdwg.mxu0
    %6354 = vmatprep.subr.bf16.mxu0 %v4932
    %6355 = vmatpush1.bf16.msra.mxu0 %v4931
    %6356 = vmatprep.subr.bf16.mxu0 %v4940
    %6357 = vmatpush1.bf16.msra.mxu0 %v4939
    %6358 = vmatprep.subr.bf16.mxu0 %v4948
    %6359 = vmatpush1.bf16.msra.mxu0 %v4947
    %6360 = vmatprep.subr.bf16.mxu0 %v4956
    %6361 = vmatpush1.bf16.msra.mxu0 %v4955
    %6362 = vmatprep.subr.bf16.mxu0 %v4964
    %6363 = vmatpush1.bf16.msra.mxu0 %v4963
    %6364 = vmatprep.subr.bf16.mxu0 %v4972
    %6365 = vmatpush1.bf16.msra.mxu0 %v4971
    %6366 = vmatprep.subr.bf16.mxu0 %v4980
    %6367 = vmatpush1.bf16.msra.mxu0 %v4979
    %6368 = vmatprep.subr.bf16.mxu0 %v4988
    %6369 = vmatpush1.bf16.msra.mxu0 %v4987
    %6370 = vmatprep.subr.bf16.mxu0 %v4996
    %6371 = vmatpush1.bf16.msra.mxu0 %v4995
    %6372 = vmatprep.subr.bf16.mxu0 %v5004
    %6373 = vmatpush1.bf16.msra.mxu0 %v5003
    %6374 = vmatprep.subr.bf16.mxu0 %v5012
    %6375 = vmatpush1.bf16.msra.mxu0 %v5011
    %6376 = vmatprep.subr.bf16.mxu0 %v5020
    %6377 = vmatpush1.bf16.msra.mxu0 %v5019
    %6378 = vmatprep.subr.bf16.mxu0 %v5028
    %6379 = vmatpush1.bf16.msra.mxu0 %v5027
    %6380 = vmatprep.subr.bf16.mxu0 %v5036
    %6381 = vmatpush1.bf16.msra.mxu0 %v5035
    %6382 = vmatprep.subr.bf16.mxu0 %v5044
    %6383 = vmatpush1.bf16.msra.mxu0 %v5043
    %6384 = vmatprep.subr.bf16.mxu0 %v5052
    %6385 = vmatpush1.bf16.msra.mxu0 %v5051
    %6386 = vmatprep.mubr.bf16.mxu0 %v2702
    %6387 = vmatmul.mubr.bf16.gmra.mrb[0].mxu0 %v2701
    %v6388 = vpop.f32.mrb[0].mxu0
    %v6389 = vadd.f32 %v6348, %v6388
    %v6390 = vpop.f32.mrb[0].mxu0
    %v6391 = vadd.f32 %v6350, %v6390
    %v6392 = vpop.f32.mrb[0].mxu0
    %v6393 = vpop.f32.mrb[0].mxu0
    %6394 = vdwg.mxu0
    %6395 = vmatprep.subr.bf16.mxu0 %v5060
    %6396 = vmatpush1.bf16.msra.mxu0 %v5059
    %6397 = vmatprep.subr.bf16.mxu0 %v5068
    %6398 = vmatpush1.bf16.msra.mxu0 %v5067
    %6399 = vmatprep.subr.bf16.mxu0 %v5076
    %6400 = vmatpush1.bf16.msra.mxu0 %v5075
    %6401 = vmatprep.subr.bf16.mxu0 %v5084
    %6402 = vmatpush1.bf16.msra.mxu0 %v5083
    %6403 = vmatprep.subr.bf16.mxu0 %v5092
    %6404 = vmatpush1.bf16.msra.mxu0 %v5091
    %6405 = vmatprep.subr.bf16.mxu0 %v5100
    %6406 = vmatpush1.bf16.msra.mxu0 %v5099
    %6407 = vmatprep.subr.bf16.mxu0 %v5108
    %6408 = vmatpush1.bf16.msra.mxu0 %v5107
    %6409 = vmatprep.subr.bf16.mxu0 %v5116
    %6410 = vmatpush1.bf16.msra.mxu0 %v5115
    %6411 = vmatprep.subr.bf16.mxu0 %v5124
    %6412 = vmatpush1.bf16.msra.mxu0 %v5123
    %6413 = vmatprep.subr.bf16.mxu0 %v5132
    %6414 = vmatpush1.bf16.msra.mxu0 %v5131
    %6415 = vmatprep.subr.bf16.mxu0 %v5140
    %6416 = vmatpush1.bf16.msra.mxu0 %v5139
    %6417 = vmatprep.subr.bf16.mxu0 %v5148
    %6418 = vmatpush1.bf16.msra.mxu0 %v5147
    %6419 = vmatprep.subr.bf16.mxu0 %v5156
    %6420 = vmatpush1.bf16.msra.mxu0 %v5155
    %6421 = vmatprep.subr.bf16.mxu0 %v5164
    %6422 = vmatpush1.bf16.msra.mxu0 %v5163
    %6423 = vmatprep.subr.bf16.mxu0 %v5172
    %6424 = vmatpush1.bf16.msra.mxu0 %v5171
    %6425 = vmatprep.subr.bf16.mxu0 %v5180
    %6426 = vmatpush1.bf16.msra.mxu0 %v5179
    %6427 = vmatprep.mubr.bf16.mxu0 %v2704
    %6428 = vmatmul.mubr.bf16.gmra.mrb[0].mxu0 %v2703
    %v6429 = vpop.f32.mrb[0].mxu0
    %v6430 = vadd.f32 %v6389, %v6429
    %v6431 = vpop.f32.mrb[0].mxu0
    %v6432 = vadd.f32 %v6391, %v6431
    %v6433 = vpop.f32.mrb[0].mxu0
    %v6434 = vpop.f32.mrb[0].mxu0
    %6435 = vdwg.mxu0
    %6436 = vmatprep.subr.bf16.mxu0 %v5188
    %6437 = vmatpush1.bf16.msra.mxu0 %v5187
    %6438 = vmatprep.subr.bf16.mxu0 %v5196
    %6439 = vmatpush1.bf16.msra.mxu0 %v5195
    %6440 = vmatprep.subr.bf16.mxu0 %v5204
    %6441 = vmatpush1.bf16.msra.mxu0 %v5203
    %6442 = vmatprep.subr.bf16.mxu0 %v5212
    %6443 = vmatpush1.bf16.msra.mxu0 %v5211
    %6444 = vmatprep.subr.bf16.mxu0 %v5220
    %6445 = vmatpush1.bf16.msra.mxu0 %v5219
    %6446 = vmatprep.subr.bf16.mxu0 %v5228
    %6447 = vmatpush1.bf16.msra.mxu0 %v5227
    %6448 = vmatprep.subr.bf16.mxu0 %v5236
    %6449 = vmatpush1.bf16.msra.mxu0 %v5235
    %6450 = vmatprep.subr.bf16.mxu0 %v5244
    %6451 = vmatpush1.bf16.msra.mxu0 %v5243
    %6452 = vmatprep.subr.bf16.mxu0 %v5252
    %6453 = vmatpush1.bf16.msra.mxu0 %v5251
    %6454 = vmatprep.subr.bf16.mxu0 %v5260
    %6455 = vmatpush1.bf16.msra.mxu0 %v5259
    %6456 = vmatprep.subr.bf16.mxu0 %v5268
    %6457 = vmatpush1.bf16.msra.mxu0 %v5267
    %6458 = vmatprep.subr.bf16.mxu0 %v5276
    %6459 = vmatpush1.bf16.msra.mxu0 %v5275
    %6460 = vmatprep.subr.bf16.mxu0 %v5284
    %6461 = vmatpush1.bf16.msra.mxu0 %v5283
    %6462 = vmatprep.subr.bf16.mxu0 %v5292
    %6463 = vmatpush1.bf16.msra.mxu0 %v5291
    %6464 = vmatprep.subr.bf16.mxu0 %v5300
    %6465 = vmatpush1.bf16.msra.mxu0 %v5299
    %6466 = vmatprep.subr.bf16.mxu0 %v5308
    %6467 = vmatpush1.bf16.msra.mxu0 %v5307
    %6468 = vmatprep.mubr.bf16.mxu0 %v2706
    %6469 = vmatmul.mubr.bf16.gmra.mrb[0].mxu0 %v2705
    %v6470 = vpop.f32.mrb[0].mxu0
    %v6471 = vadd.f32 %v6430, %v6470
    %v6472 = vpop.f32.mrb[0].mxu0
    %v6473 = vadd.f32 %v6432, %v6472
    %v6474 = vpop.f32.mrb[0].mxu0
    %v6475 = vpop.f32.mrb[0].mxu0
    %6476 = vdwg.mxu0
    %6477 = vst [vmem:[#allocation16] sm:$0xff] %v5979
    %6478 = vst [vmem:[#allocation16 + $0x8] sm:$0xff] %v5981
    %6479 = vst [vmem:[#allocation16 + $0x10] sm:$0xff] %v6143
    %6480 = vst [vmem:[#allocation16 + $0x18] sm:$0xff] %v6145
    %6481 = vst [vmem:[#allocation16 + $0x20] sm:$0xff] %v6307
    %6482 = vst [vmem:[#allocation16 + $0x28] sm:$0xff] %v6309
    %6483 = vst [vmem:[#allocation16 + $0x30] sm:$0xff] %v6471
    %6484 = vst [vmem:[#allocation16 + $0x38] sm:$0xff] %v6473
    // Predicated region
    $region70: #{_generator_forward_impl.1} parent=1 // pred_check
      _
    $region71: #{_generator_forward_impl.1} parent=1 // pred_check_branch
      %6486 = sbr.rel (0) target = $region73
    $region72: #{_generator_forward_impl.1} parent=1 // pred_region
      %s6488 = ssub.s32 1024, 1024
      %6489 = vsyncadd [#allocation4], %s6488
      %s6491 = sshll.u32 [#allocation16], 4
      %s6492 = int_to_ptr.vmem [resolvable:$true] %s6491
      %6494 = dma.vmem_to_hbm [thread:$0]  %s6492, 1024, %s9, [#allocation4]
    $region73: #{_generator_forward_impl.1} parent=1 // pred_fallthru
      _
    // Predicated region
    $region74: #{_generator_forward_impl.1} parent=1 // pred_check
      _
    $region75: #{_generator_forward_impl.1} parent=1 // pred_check_branch
      %6496 = sbr.rel (0) target = $region77
    $region76: #{_generator_forward_impl.1} parent=1 // pred_region
      %6497 = dma.done [#allocation4], 1024
    $region77: #{_generator_forward_impl.1} parent=1 // pred_fallthru
      _
    %6498 = vsyncpa [#allocation3], 1
    %6499 = vsyncpa [#allocation6], 1
    %6500 = vsyncpa [#allocation9], 1
    %6501 = vsyncpa [#allocation12], 1
    %6502 = vsyncpa [#allocation15], 1
    %6503 = vsyncpa [#allocation4], 1

</llo_original>
